<compile_context>
chip_gen: v7x
topology: tpu7x:2x2x1
jax: 0.10.0
libtpu: 0.0.40
codegen_flags: <defaults>
</compile_context>

<pallas_src>
import math

import jax
import jax.numpy as jnp
from jax.experimental import pallas as pl
from jax.experimental.pallas import tpu as pltpu


# ----------------------------- kernel ---------------------------------------

def ladder_kernel(z_ref, a0_ref, a1_ref,
                  dW_ref, dB_ref, uW_ref, uB_ref,
                  qW_ref, qB_ref, kW_ref, kB_ref, vW_ref, vB_ref,
                  m1W_ref, m1B_ref, m2W_ref, m2B_ref,
                  out_ref, rs_ref, d1_ref):
    layer = pl.program_id(1)
    nl = pl.num_programs(1)
    TB, S, h0 = a0_ref.shape
    h1 = dW_ref.shape[1]
    R = TB * S
    scale = 1.0 / math.sqrt(float(h1))

    def matmul(x_f32, w_ref, b_ref):
        # x: (rows, in) f32 -> bf16 on the MXU, f32 accumulation, f32 bias add.
        return jnp.dot(x_f32.astype(jnp.bfloat16), w_ref[...],
                       preferred_element_type=jnp.float32) + b_ref[...]

    # --- residual-stream init: dproj(activs[0]) and dproj(activs[1]) fused
    #     into one stacked matmul; second half staged for injection at layer 1.
    @pl.when(layer == 0)
    def _init():
        a01 = jnp.concatenate([a0_ref[...].reshape(R, h0),
                               a1_ref[...].reshape(R, h0)], axis=0)
        d = jnp.dot(a01.astype(jnp.bfloat16), dW_ref[...],
                    preferred_element_type=jnp.float32) + dB_ref[...]
        rs_ref[...] = d[:R]
        d1_ref[...] = d[R:]

    @pl.when(layer == 1)
    def _inject():
        rs_ref[...] = rs_ref[...] + d1_ref[...]

    rs = rs_ref[...]                                  # (R, h1) f32

    # --- single-head causal self-attention for this layer --------------------
    q = matmul(rs, qW_ref, qB_ref)                    # (R, h1) f32
    k = matmul(rs, kW_ref, kB_ref)
    v = matmul(rs, vW_ref, vB_ref)
    q3 = q.reshape(TB, S, h1).astype(jnp.bfloat16)
    k3 = k.reshape(TB, S, h1).astype(jnp.bfloat16)
    v3 = v.reshape(TB, S, h1).astype(jnp.bfloat16)

    # additive causal mask: 0 where row >= col else -1e9 (tiny (S,S) build).
    row = jax.lax.broadcasted_iota(jnp.int32, (S, S), 0)
    col = jax.lax.broadcasted_iota(jnp.int32, (S, S), 1)
    add_mask = jnp.where(row >= col, 0.0, -1e9).astype(jnp.float32)

    # contracts on the last dim of both operands (no explicit k.T transpose)
    scores = jnp.einsum('bqd,bkd->bqk', q3, k3,
                        preferred_element_type=jnp.float32) * scale + add_mask
    m = jnp.max(scores, axis=-1, keepdims=True)
    e = jnp.exp(scores - m)
    attw = e * pl.reciprocal(jnp.sum(e, axis=-1, keepdims=True), approx=True)
    satt = jnp.einsum('bqk,bkd->bqd', attw.astype(jnp.bfloat16), v3,
                      preferred_element_type=jnp.float32)
    rs = rs + satt.reshape(R, h1)

    # --- MLP ------------------------------------------------------------------
    hid = jnp.maximum(matmul(rs, m1W_ref, m1B_ref), 0.0)      # ReLU
    rs = rs + matmul(hid, m2W_ref, m2B_ref)
    rs_ref[...] = rs

    # --- final uproj + skip connection ----------------------------------------
    @pl.when(layer == nl - 1)
    def _final():
        out = jnp.dot(rs.astype(jnp.bfloat16), uW_ref[...],
                      preferred_element_type=jnp.float32) + uB_ref[...]
        out = out + z_ref[...].reshape(R, h0)
        out_ref[...] = out.reshape(TB, S, h0).astype(out_ref.dtype)


# ----------------------------- wrapper ----------------------------------------

def _pick_tb(B):
    # prefer >= 2 batch tiles (2 TensorCores on v7x) with the largest tile <= 16
    for tb in (16, 8, 4, 2, 1):
        if B % tb == 0 and B // tb >= 2:
            return tb
    return B


@jax.jit
def ladder_forward(z, a0, a1, params):
    B, S, h0 = z.shape
    nl, h1 = params["qW"].shape[0], params["qW"].shape[1]
    assert nl >= 2, "Ladder.forward assumes at least 2 layers"
    tb = _pick_tb(B)

    bf16 = lambda w: w.astype(jnp.bfloat16)   # MXU inputs
    f32 = lambda b: b.astype(jnp.float32)     # biases stay f32
    args = (
        z, a0, a1,
        bf16(params["dW"]), f32(params["dB"]),
        bf16(params["uW"]), f32(params["uB"]),
        bf16(params["qW"]), f32(params["qB"]),
        bf16(params["kW"]), f32(params["kB"]),
        bf16(params["vW"]), f32(params["vB"]),
        bf16(params["m1W"]), f32(params["m1B"]),
        bf16(params["m2W"]), f32(params["m2B"]),
    )

    act_spec = pl.BlockSpec((tb, S, h0), lambda b, l: (b, 0, 0))
    full2d = lambda s: pl.BlockSpec(s, lambda b, l: (0, 0))
    # one layer's weights per grid step (squeezed leading layer dim)
    perlayer = lambda d0, d1: pl.BlockSpec((None, d0, d1), lambda b, l: (l, 0, 0))

    in_specs = [
        act_spec, act_spec, act_spec,
        full2d((h0, h1)), full2d((1, h1)),          # dproj
        full2d((h1, h0)), full2d((1, h0)),          # uproj
        perlayer(h1, h1), perlayer(1, h1),          # wq
        perlayer(h1, h1), perlayer(1, h1),          # wk
        perlayer(h1, h1), perlayer(1, h1),          # wv
        perlayer(h1, 4 * h1), perlayer(1, 4 * h1),  # mlp fc1
        perlayer(4 * h1, h1), perlayer(1, h1),      # mlp fc2
    ]

    # Streaming one layer's (bf16) weights per step keeps the VMEM footprint to
    # ~2 layers' weights + activation tiles, well under the default scoped
    # limit on all of v5e/v6e/v7x, so no vmem_limit_bytes override is needed.
    return pl.pallas_call(
        ladder_kernel,
        out_shape=jax.ShapeDtypeStruct((B, S, h0), z.dtype),
        grid=(B // tb, nl),
        in_specs=in_specs,
        out_specs=pl.BlockSpec((tb, S, h0), lambda b, l: (b, 0, 0)),
        scratch_shapes=[pltpu.VMEM((tb * S, h1), jnp.float32),   # rs accumulator
                        pltpu.VMEM((tb * S, h1), jnp.float32)],  # staged dproj(a1)
        compiler_params=pltpu.CompilerParams(
            dimension_semantics=("parallel", "arbitrary")),
    )(*args)


# ----------------------------- params ------------------------------------------

def init_params(key, h0, h1, nl):
    """Deterministic synthetic weights matching Ladder.createRandom shapes.

    NOTE: createRandom() zeroes uproj; we use small nonzero deterministic
    weights so the output actually exercises the full compute path.
    Weights are stored (in, out); biases are stored (1, out).
    """
    keys = iter(jax.random.split(key, 2 + 5 * nl))

    def lin(k, fin, fout, scale=0.05):
        kw, kb = jax.random.split(k)
        w = jax.random.normal(kw, (fin, fout), jnp.float32) * scale
        b = jax.random.normal(kb, (1, fout), jnp.float32) * scale
        return w, b

    dW, dB = lin(next(keys), h0, h1)      # dproj: Linear(h0, h1)
    uW, uB = lin(next(keys), h1, h0)      # uproj: Linear(h1, h0)

    qW, qB, kW, kB, vW, vB = [], [], [], [], [], []
    m1W, m1B, m2W, m2B = [], [], [], []
    for _ in range(nl):
        w, b = lin(next(keys), h1, h1); qW.append(w); qB.append(b)
        w, b = lin(next(keys), h1, h1); kW.append(w); kB.append(b)
        w, b = lin(next(keys), h1, h1); vW.append(w); vB.append(b)
        w, b = lin(next(keys), h1, 4 * h1); m1W.append(w); m1B.append(b)
        w, b = lin(next(keys), 4 * h1, h1); m2W.append(w); m2B.append(b)

    st = lambda xs: jnp.stack(xs, axis=0)
    return dict(dW=dW, dB=dB, uW=uW, uB=uB,
                qW=st(qW), qB=st(qB), kW=st(kW), kB=st(kB),
                vW=st(vW), vB=st(vB),
                m1W=st(m1W), m1B=st(m1B), m2W=st(m2W), m2B=st(m2B))


# ----------------------------- pure-JAX f32 reference ---------------------------

def ladder_reference(z, a0, a1, p):
    def lin(x, w, b):
        return x @ w + b

    S = z.shape[1]
    h1 = p["dW"].shape[1]
    causal = jnp.tril(jnp.ones((S, S), dtype=bool))

    def attn(i, x):
        q = lin(x, p["qW"][i], p["qB"][i])
        k = lin(x, p["kW"][i], p["kB"][i])
        v = lin(x, p["vW"][i], p["vB"][i])
        s = jnp.einsum("bqd,bkd->bqk", q, k) / math.sqrt(float(h1))
        s = jnp.where(causal, s, -1e9)
        w = jax.nn.softmax(s, axis=-1)
        return jnp.einsum("bqk,bkd->bqd", w, v)

    def mlp(i, x):
        h = jax.nn.relu(lin(x, p["m1W"][i], p["m1B"][i]))
        return lin(h, p["m2W"][i], p["m2B"][i])

    rs = lin(a0, p["dW"], p["dB"])
    rs = rs + attn(0, rs)
    rs = rs + mlp(0, rs)
    rs = rs + lin(a1, p["dW"], p["dB"])
    rs = rs + attn(1, rs)
    rs = rs + mlp(1, rs)
    for i in range(2, p["qW"].shape[0]):
        rs = rs + attn(i, rs)
        rs = rs + mlp(i, rs)
    return lin(rs, p["uW"], p["uB"]) + z


# ----------------------------- main ----------------------------------------------

if __name__ == "__main__":
    # lane-dense channel dims (multiples of 128); B chosen so the batch-tiled
    # grid has >= 2 parallel steps.
    B, S, h0, h1, nl = 16, 8, 128, 128, 3

    key = jax.random.PRNGKey(0)
    kz, ka0, ka1, kp = jax.random.split(key, 4)
    z = jax.random.normal(kz, (B, S, h0), jnp.float32)     # module input `z`
    a0 = jax.random.normal(ka0, (B, S, h0), jnp.float32)   # self.activs[0]
    a1 = jax.random.normal(ka1, (B, S, h0), jnp.float32)   # self.activs[1]
    params = init_params(kp, h0, h1, nl)

    out = ladder_forward(z, a0, a1, params)
    jax.block_until_ready(out)

    ref = ladder_reference(z, a0, a1, params)
    assert out.shape == (B, S, h0)
    # kernel runs matmuls in bf16 with f32 accumulation; compare against the
    # pure-f32 reference with a tolerance sized for that mixed precision.
    assert jnp.allclose(out, ref, atol=5e-2, rtol=5e-2), "mismatch vs JAX reference"

    print("KERNEL_OK")
</pallas_src>

<mosaic_0001>
module attributes {stable_mosaic.version = 11 : i64} {
  func.func @ladder_kernel(%arg0: i32, %arg1: i32, %arg2: memref<8x8x128xf32, #tpu.memory_space<vmem>>, %arg3: memref<8x8x128xf32, #tpu.memory_space<vmem>>, %arg4: memref<8x8x128xf32, #tpu.memory_space<vmem>>, %arg5: memref<128x128xbf16, #tpu.memory_space<vmem>>, %arg6: memref<1x128xf32, #tpu.memory_space<vmem>>, %arg7: memref<128x128xbf16, #tpu.memory_space<vmem>>, %arg8: memref<1x128xf32, #tpu.memory_space<vmem>>, %arg9: memref<1x128x128xbf16, #tpu.memory_space<vmem>>, %arg10: memref<1x1x128xf32, #tpu.memory_space<vmem>>, %arg11: memref<1x128x128xbf16, #tpu.memory_space<vmem>>, %arg12: memref<1x1x128xf32, #tpu.memory_space<vmem>>, %arg13: memref<1x128x128xbf16, #tpu.memory_space<vmem>>, %arg14: memref<1x1x128xf32, #tpu.memory_space<vmem>>, %arg15: memref<1x128x512xbf16, #tpu.memory_space<vmem>>, %arg16: memref<1x1x512xf32, #tpu.memory_space<vmem>>, %arg17: memref<1x512x128xbf16, #tpu.memory_space<vmem>>, %arg18: memref<1x1x128xf32, #tpu.memory_space<vmem>>, %arg19: memref<8x8x128xf32, #tpu.memory_space<vmem>>, %arg20: memref<64x128xf32, #tpu.memory_space<vmem>>, %arg21: memref<64x128xf32, #tpu.memory_space<vmem>>) attributes {dimension_semantics = [#tpu.dimension_semantics<parallel>, #tpu.dimension_semantics<arbitrary>], iteration_bounds = array<i64: 2, 3>, scalar_prefetch = 0 : i64, scratch_operands = 2 : i64, tpu.core_type = #tpu.core_type<tc>, window_params = [{transform_indices = @transform_0, window_bounds = array<i64: 8, 8, 128>}, {transform_indices = @transform_1, window_bounds = array<i64: 8, 8, 128>}, {transform_indices = @transform_2, window_bounds = array<i64: 8, 8, 128>}, {pipeline_mode = #tpu.pipeline_mode<synchronous>, transform_indices = @transform_3, window_bounds = array<i64: 128, 128>}, {pipeline_mode = #tpu.pipeline_mode<synchronous>, transform_indices = @transform_4, window_bounds = array<i64: 1, 128>}, {pipeline_mode = #tpu.pipeline_mode<synchronous>, transform_indices = @transform_5, window_bounds = array<i64: 128, 128>}, {pipeline_mode = #tpu.pipeline_mode<synchronous>, transform_indices = @transform_6, window_bounds = array<i64: 1, 128>}, {transform_indices = @transform_7, window_bounds = array<i64: 1, 128, 128>}, {transform_indices = @transform_8, window_bounds = array<i64: 1, 1, 128>}, {transform_indices = @transform_9, window_bounds = array<i64: 1, 128, 128>}, {transform_indices = @transform_10, window_bounds = array<i64: 1, 1, 128>}, {transform_indices = @transform_11, window_bounds = array<i64: 1, 128, 128>}, {transform_indices = @transform_12, window_bounds = array<i64: 1, 1, 128>}, {transform_indices = @transform_13, window_bounds = array<i64: 1, 128, 512>}, {transform_indices = @transform_14, window_bounds = array<i64: 1, 1, 512>}, {transform_indices = @transform_15, window_bounds = array<i64: 1, 512, 128>}, {transform_indices = @transform_16, window_bounds = array<i64: 1, 1, 128>}, {transform_indices = @transform_17, window_bounds = array<i64: 8, 8, 128>}]} {
    %c0_i32 = arith.constant 0 : i32
    %0 = arith.cmpi eq, %arg1, %c0_i32 : i32
    %1 = arith.extui %0 : i1 to i32
    %c0_i32_0 = arith.constant 0 : i32
    %2 = arith.cmpi ne, %1, %c0_i32_0 : i32
    scf.if %2 {
      %c0_48 = arith.constant 0 : index
      %c0_49 = arith.constant 0 : index
      %c0_50 = arith.constant 0 : index
      %86 = vector.load %arg3[%c0_48, %c0_49, %c0_50] : memref<8x8x128xf32, #tpu.memory_space<vmem>>, vector<8x8x128xf32>
      %87 = vector.shape_cast %86 : vector<8x8x128xf32> to vector<64x128xf32>
      %c0_51 = arith.constant 0 : index
      %c0_52 = arith.constant 0 : index
      %c0_53 = arith.constant 0 : index
      %88 = vector.load %arg4[%c0_51, %c0_52, %c0_53] : memref<8x8x128xf32, #tpu.memory_space<vmem>>, vector<8x8x128xf32>
      %89 = vector.shape_cast %88 : vector<8x8x128xf32> to vector<64x128xf32>
      %90 = tpu.concatenate %87, %89 in 0 : vector<64x128xf32>, vector<64x128xf32> -> vector<128x128xf32>
      %91 = arith.truncf %90 : vector<128x128xf32> to vector<128x128xbf16>
      %c0_54 = arith.constant 0 : index
      %c0_55 = arith.constant 0 : index
      %92 = vector.load %arg5[%c0_54, %c0_55] : memref<128x128xbf16, #tpu.memory_space<vmem>>, vector<128x128xbf16>
      %cst_56 = arith.constant dense<0.000000e+00> : vector<128x128xf32>
      %93 = tpu.matmul %91, %92, %cst_56 {dimension_numbers = #tpu.dot_dimension_numbers<[1], [0], [0], [1], [0, 0, 1, 1], [], []>} : vector<128x128xbf16>, vector<128x128xbf16>, vector<128x128xf32> -> vector<128x128xf32>
      %c0_57 = arith.constant 0 : index
      %c0_58 = arith.constant 0 : index
      %94 = vector.load %arg6[%c0_57, %c0_58] : memref<1x128xf32, #tpu.memory_space<vmem>>, vector<1x128xf32>
      %95 = vector.broadcast %94 : vector<1x128xf32> to vector<128x128xf32>
      %96 = arith.addf %93, %95 : vector<128x128xf32>
      %97 = vector.extract_strided_slice %96 {offsets = [0, 0], sizes = [64, 128], strides = [1, 1]} : vector<128x128xf32> to vector<64x128xf32>
      %c0_59 = arith.constant 0 : index
      %c0_60 = arith.constant 0 : index
      %98 = vector.load %arg20[%c0_59, %c0_60] : memref<64x128xf32, #tpu.memory_space<vmem>>, vector<64x128xf32>
      tpu.vector_store %arg20[%c0_59, %c0_60], %97 {strides = array<i32>} : memref<64x128xf32, #tpu.memory_space<vmem>>, vector<64x128xf32>,
      %99 = vector.extract_strided_slice %96 {offsets = [64, 0], sizes = [64, 128], strides = [1, 1]} : vector<128x128xf32> to vector<64x128xf32>
      %c0_61 = arith.constant 0 : index
      %c0_62 = arith.constant 0 : index
      %100 = vector.load %arg21[%c0_61, %c0_62] : memref<64x128xf32, #tpu.memory_space<vmem>>, vector<64x128xf32>
      tpu.vector_store %arg21[%c0_61, %c0_62], %99 {strides = array<i32>} : memref<64x128xf32, #tpu.memory_space<vmem>>, vector<64x128xf32>,
    } else {
    }
    %c1_i32 = arith.constant 1 : i32
    %3 = arith.cmpi eq, %arg1, %c1_i32 : i32
    %4 = arith.extui %3 : i1 to i32
    %c0_i32_1 = arith.constant 0 : i32
    %5 = arith.cmpi ne, %4, %c0_i32_1 : i32
    scf.if %5 {
      %c0_48 = arith.constant 0 : index
      %c0_49 = arith.constant 0 : index
      %86 = vector.load %arg20[%c0_48, %c0_49] : memref<64x128xf32, #tpu.memory_space<vmem>>, vector<64x128xf32>
      %c0_50 = arith.constant 0 : index
      %c0_51 = arith.constant 0 : index
      %87 = vector.load %arg21[%c0_50, %c0_51] : memref<64x128xf32, #tpu.memory_space<vmem>>, vector<64x128xf32>
      %88 = arith.addf %86, %87 : vector<64x128xf32>
      %c0_52 = arith.constant 0 : index
      %c0_53 = arith.constant 0 : index
      %89 = vector.load %arg20[%c0_52, %c0_53] : memref<64x128xf32, #tpu.memory_space<vmem>>, vector<64x128xf32>
      tpu.vector_store %arg20[%c0_52, %c0_53], %88 {strides = array<i32>} : memref<64x128xf32, #tpu.memory_space<vmem>>, vector<64x128xf32>,
    } else {
    }
    %c0 = arith.constant 0 : index
    %c0_2 = arith.constant 0 : index
    %6 = vector.load %arg20[%c0, %c0_2] : memref<64x128xf32, #tpu.memory_space<vmem>>, vector<64x128xf32>
    %7 = arith.truncf %6 : vector<64x128xf32> to vector<64x128xbf16>
    %c0_3 = arith.constant 0 : index
    %c0_4 = arith.constant 0 : index
    %c0_5 = arith.constant 0 : index
    %8 = vector.load %arg9[%c0_3, %c0_4, %c0_5] : memref<1x128x128xbf16, #tpu.memory_space<vmem>>, vector<1x128x128xbf16>
    %9 = vector.shape_cast %8 : vector<1x128x128xbf16> to vector<128x128xbf16>
    %cst = arith.constant dense<0.000000e+00> : vector<64x128xf32>
    %10 = tpu.matmul %7, %9, %cst {dimension_numbers = #tpu.dot_dimension_numbers<[1], [0], [0], [1], [0, 0, 1, 1], [], []>} : vector<64x128xbf16>, vector<128x128xbf16>, vector<64x128xf32> -> vector<64x128xf32>
    %c0_6 = arith.constant 0 : index
    %c0_7 = arith.constant 0 : index
    %c0_8 = arith.constant 0 : index
    %11 = vector.load %arg10[%c0_6, %c0_7, %c0_8] : memref<1x1x128xf32, #tpu.memory_space<vmem>>, vector<1x1x128xf32>
    %12 = vector.shape_cast %11 : vector<1x1x128xf32> to vector<1x128xf32>
    %13 = vector.broadcast %12 : vector<1x128xf32> to vector<64x128xf32>
    %14 = arith.addf %10, %13 : vector<64x128xf32>
    %15 = arith.truncf %6 : vector<64x128xf32> to vector<64x128xbf16>
    %c0_9 = arith.constant 0 : index
    %c0_10 = arith.constant 0 : index
    %c0_11 = arith.constant 0 : index
    %16 = vector.load %arg11[%c0_9, %c0_10, %c0_11] : memref<1x128x128xbf16, #tpu.memory_space<vmem>>, vector<1x128x128xbf16>
    %17 = vector.shape_cast %16 : vector<1x128x128xbf16> to vector<128x128xbf16>
    %cst_12 = arith.constant dense<0.000000e+00> : vector<64x128xf32>
    %18 = tpu.matmul %15, %17, %cst_12 {dimension_numbers = #tpu.dot_dimension_numbers<[1], [0], [0], [1], [0, 0, 1, 1], [], []>} : vector<64x128xbf16>, vector<128x128xbf16>, vector<64x128xf32> -> vector<64x128xf32>
    %c0_13 = arith.constant 0 : index
    %c0_14 = arith.constant 0 : index
    %c0_15 = arith.constant 0 : index
    %19 = vector.load %arg12[%c0_13, %c0_14, %c0_15] : memref<1x1x128xf32, #tpu.memory_space<vmem>>, vector<1x1x128xf32>
    %20 = vector.shape_cast %19 : vector<1x1x128xf32> to vector<1x128xf32>
    %21 = vector.broadcast %20 : vector<1x128xf32> to vector<64x128xf32>
    %22 = arith.addf %18, %21 : vector<64x128xf32>
    %23 = arith.truncf %6 : vector<64x128xf32> to vector<64x128xbf16>
    %c0_16 = arith.constant 0 : index
    %c0_17 = arith.constant 0 : index
    %c0_18 = arith.constant 0 : index
    %24 = vector.load %arg13[%c0_16, %c0_17, %c0_18] : memref<1x128x128xbf16, #tpu.memory_space<vmem>>, vector<1x128x128xbf16>
    %25 = vector.shape_cast %24 : vector<1x128x128xbf16> to vector<128x128xbf16>
    %cst_19 = arith.constant dense<0.000000e+00> : vector<64x128xf32>
    %26 = tpu.matmul %23, %25, %cst_19 {dimension_numbers = #tpu.dot_dimension_numbers<[1], [0], [0], [1], [0, 0, 1, 1], [], []>} : vector<64x128xbf16>, vector<128x128xbf16>, vector<64x128xf32> -> vector<64x128xf32>
    %c0_20 = arith.constant 0 : index
    %c0_21 = arith.constant 0 : index
    %c0_22 = arith.constant 0 : index
    %27 = vector.load %arg14[%c0_20, %c0_21, %c0_22] : memref<1x1x128xf32, #tpu.memory_space<vmem>>, vector<1x1x128xf32>
    %28 = vector.shape_cast %27 : vector<1x1x128xf32> to vector<1x128xf32>
    %29 = vector.broadcast %28 : vector<1x128xf32> to vector<64x128xf32>
    %30 = arith.addf %26, %29 : vector<64x128xf32>
    %31 = vector.shape_cast %14 : vector<64x128xf32> to vector<8x8x128xf32>
    %32 = arith.truncf %31 : vector<8x8x128xf32> to vector<8x8x128xbf16>
    %33 = vector.shape_cast %22 : vector<64x128xf32> to vector<8x8x128xf32>
    %34 = arith.truncf %33 : vector<8x8x128xf32> to vector<8x8x128xbf16>
    %35 = vector.shape_cast %30 : vector<64x128xf32> to vector<8x8x128xf32>
    %36 = arith.truncf %35 : vector<8x8x128xf32> to vector<8x8x128xbf16>
    %37 = tpu.iota {dimensions = array<i32: 0>} : vector<8x8xi32>
    %38 = tpu.iota {dimensions = array<i32: 1>} : vector<8x8xi32>
    %39 = arith.cmpi sge, %37, %38 : vector<8x8xi32>
    %cst_23 = arith.constant 0.000000e+00 : f32
    %cst_24 = arith.constant -1.000000e+09 : f32
    %40 = vector.broadcast %cst_23 : f32 to vector<8x8xf32>
    %41 = vector.broadcast %cst_24 : f32 to vector<8x8xf32>
    %42 = arith.select %39, %40, %41 : vector<8x8xi1>, vector<8x8xf32>
    "tpu.trace_start"() <{level = 10 : i32, message = "bqd,bkd->bqk"}> : () -> ()
    %cst_25 = arith.constant dense<0.000000e+00> : vector<8x8x8xf32>
    %43 = tpu.matmul %32, %34, %cst_25 {dimension_numbers = #tpu.dot_dimension_numbers<[2], [2], [1], [1], [0, 0, 0, 1, 1, 1], [0], [0]>} : vector<8x8x128xbf16>, vector<8x8x128xbf16>, vector<8x8x8xf32> -> vector<8x8x8xf32>
    "tpu.trace_stop"() : () -> ()
    %cst_26 = arith.constant 0.0883883461 : f32
    %44 = vector.broadcast %cst_26 : f32 to vector<8x8x8xf32>
    %45 = arith.mulf %43, %44 : vector<8x8x8xf32>
    %46 = vector.shape_cast %42 : vector<8x8xf32> to vector<1x8x8xf32>
    %47 = vector.broadcast %46 : vector<1x8x8xf32> to vector<8x8x8xf32>
    %48 = arith.addf %45, %47 : vector<8x8x8xf32>
    %cst_27 = arith.constant dense<0xFF800000> : vector<8x8xf32>
    %49 = vector.multi_reduction <maximumf>, %48, %cst_27 [2] : vector<8x8x8xf32> to vector<8x8xf32>
    %50 = vector.shape_cast %49 : vector<8x8xf32> to vector<8x8x1xf32>
    %51 = vector.broadcast %50 : vector<8x8x1xf32> to vector<8x8x8xf32>
    %52 = arith.subf %48, %51 : vector<8x8x8xf32>
    %53 = math.exp %52 : vector<8x8x8xf32>
    %cst_28 = arith.constant dense<0.000000e+00> : vector<8x8xf32>
    %54 = vector.multi_reduction <add>, %53, %cst_28 [2] : vector<8x8x8xf32> to vector<8x8xf32>
    %55 = vector.shape_cast %54 : vector<8x8xf32> to vector<8x8x1xf32>
    %56 = tpu.reciprocal %55 {approx = true} : vector<8x8x1xf32> -> vector<8x8x1xf32>
    %57 = vector.broadcast %56 : vector<8x8x1xf32> to vector<8x8x8xf32>
    %58 = arith.mulf %53, %57 : vector<8x8x8xf32>
    %59 = arith.truncf %58 : vector<8x8x8xf32> to vector<8x8x8xbf16>
    "tpu.trace_start"() <{level = 10 : i32, message = "bqk,bkd->bqd"}> : () -> ()
    %cst_29 = arith.constant dense<0.000000e+00> : vector<8x8x128xf32>
    %60 = tpu.matmul %59, %36, %cst_29 {dimension_numbers = #tpu.dot_dimension_numbers<[2], [1], [1], [2], [0, 0, 0, 1, 1, 2], [0], [0]>} : vector<8x8x8xbf16>, vector<8x8x128xbf16>, vector<8x8x128xf32> -> vector<8x8x128xf32>
    "tpu.trace_stop"() : () -> ()
    %61 = vector.shape_cast %60 : vector<8x8x128xf32> to vector<64x128xf32>
    %62 = arith.addf %6, %61 : vector<64x128xf32>
    %63 = arith.truncf %62 : vector<64x128xf32> to vector<64x128xbf16>
    %c0_30 = arith.constant 0 : index
    %c0_31 = arith.constant 0 : index
    %c0_32 = arith.constant 0 : index
    %64 = vector.load %arg15[%c0_30, %c0_31, %c0_32] : memref<1x128x512xbf16, #tpu.memory_space<vmem>>, vector<1x128x512xbf16>
    %65 = vector.shape_cast %64 : vector<1x128x512xbf16> to vector<128x512xbf16>
    %cst_33 = arith.constant dense<0.000000e+00> : vector<64x512xf32>
    %66 = tpu.matmul %63, %65, %cst_33 {dimension_numbers = #tpu.dot_dimension_numbers<[1], [0], [0], [1], [0, 0, 1, 1], [], []>} : vector<64x128xbf16>, vector<128x512xbf16>, vector<64x512xf32> -> vector<64x512xf32>
    %c0_34 = arith.constant 0 : index
    %c0_35 = arith.constant 0 : index
    %c0_36 = arith.constant 0 : index
    %67 = vector.load %arg16[%c0_34, %c0_35, %c0_36] : memref<1x1x512xf32, #tpu.memory_space<vmem>>, vector<1x1x512xf32>
    %68 = vector.shape_cast %67 : vector<1x1x512xf32> to vector<1x512xf32>
    %69 = vector.broadcast %68 : vector<1x512xf32> to vector<64x512xf32>
    %70 = arith.addf %66, %69 : vector<64x512xf32>
    %cst_37 = arith.constant 0.000000e+00 : f32
    %71 = vector.broadcast %cst_37 : f32 to vector<64x512xf32>
    %72 = arith.maximumf %70, %71 : vector<64x512xf32>
    %73 = arith.truncf %72 : vector<64x512xf32> to vector<64x512xbf16>
    %c0_38 = arith.constant 0 : index
    %c0_39 = arith.constant 0 : index
    %c0_40 = arith.constant 0 : index
    %74 = vector.load %arg17[%c0_38, %c0_39, %c0_40] : memref<1x512x128xbf16, #tpu.memory_space<vmem>>, vector<1x512x128xbf16>
    %75 = vector.shape_cast %74 : vector<1x512x128xbf16> to vector<512x128xbf16>
    %cst_41 = arith.constant dense<0.000000e+00> : vector<64x128xf32>
    %76 = tpu.matmul %73, %75, %cst_41 {dimension_numbers = #tpu.dot_dimension_numbers<[1], [0], [0], [1], [0, 0, 1, 1], [], []>} : vector<64x512xbf16>, vector<512x128xbf16>, vector<64x128xf32> -> vector<64x128xf32>
    %c0_42 = arith.constant 0 : index
    %c0_43 = arith.constant 0 : index
    %c0_44 = arith.constant 0 : index
    %77 = vector.load %arg18[%c0_42, %c0_43, %c0_44] : memref<1x1x128xf32, #tpu.memory_space<vmem>>, vector<1x1x128xf32>
    %78 = vector.shape_cast %77 : vector<1x1x128xf32> to vector<1x128xf32>
    %79 = vector.broadcast %78 : vector<1x128xf32> to vector<64x128xf32>
    %80 = arith.addf %76, %79 : vector<64x128xf32>
    %81 = arith.addf %62, %80 : vector<64x128xf32>
    %c0_45 = arith.constant 0 : index
    %c0_46 = arith.constant 0 : index
    %82 = vector.load %arg20[%c0_45, %c0_46] : memref<64x128xf32, #tpu.memory_space<vmem>>, vector<64x128xf32>
    tpu.vector_store %arg20[%c0_45, %c0_46], %81 {strides = array<i32>} : memref<64x128xf32, #tpu.memory_space<vmem>>, vector<64x128xf32>,
    %c2_i32 = arith.constant 2 : i32
    %83 = arith.cmpi eq, %arg1, %c2_i32 : i32
    %84 = arith.extui %83 : i1 to i32
    %c0_i32_47 = arith.constant 0 : i32
    %85 = arith.cmpi ne, %84, %c0_i32_47 : i32
    scf.if %85 {
      %86 = arith.truncf %81 : vector<64x128xf32> to vector<64x128xbf16>
      %c0_48 = arith.constant 0 : index
      %c0_49 = arith.constant 0 : index
      %87 = vector.load %arg7[%c0_48, %c0_49] : memref<128x128xbf16, #tpu.memory_space<vmem>>, vector<128x128xbf16>
      %cst_50 = arith.constant dense<0.000000e+00> : vector<64x128xf32>
      %88 = tpu.matmul %86, %87, %cst_50 {dimension_numbers = #tpu.dot_dimension_numbers<[1], [0], [0], [1], [0, 0, 1, 1], [], []>} : vector<64x128xbf16>, vector<128x128xbf16>, vector<64x128xf32> -> vector<64x128xf32>
      %c0_51 = arith.constant 0 : index
      %c0_52 = arith.constant 0 : index
      %89 = vector.load %arg8[%c0_51, %c0_52] : memref<1x128xf32, #tpu.memory_space<vmem>>, vector<1x128xf32>
      %90 = vector.broadcast %89 : vector<1x128xf32> to vector<64x128xf32>
      %91 = arith.addf %88, %90 : vector<64x128xf32>
      %c0_53 = arith.constant 0 : index
      %c0_54 = arith.constant 0 : index
      %c0_55 = arith.constant 0 : index
      %92 = vector.load %arg2[%c0_53, %c0_54, %c0_55] : memref<8x8x128xf32, #tpu.memory_space<vmem>>, vector<8x8x128xf32>
      %93 = vector.shape_cast %92 : vector<8x8x128xf32> to vector<64x128xf32>
      %94 = arith.addf %91, %93 : vector<64x128xf32>
      %95 = vector.shape_cast %94 : vector<64x128xf32> to vector<8x8x128xf32>
      %c0_56 = arith.constant 0 : index
      %c0_57 = arith.constant 0 : index
      %c0_58 = arith.constant 0 : index
      %96 = vector.load %arg19[%c0_56, %c0_57, %c0_58] : memref<8x8x128xf32, #tpu.memory_space<vmem>>, vector<8x8x128xf32>
      tpu.vector_store %arg19[%c0_56, %c0_57, %c0_58], %95 {strides = array<i32>} : memref<8x8x128xf32, #tpu.memory_space<vmem>>, vector<8x8x128xf32>,
    } else {
    }
    return
  }
  func.func @transform_0(%arg0: i32, %arg1: i32) -> (i32, i32, i32) {
    %c0_i32 = arith.constant 0 : i32
    %c0_i32_0 = arith.constant 0 : i32
    %c0_i32_1 = arith.constant 0 : i32
    return %arg0, %c0_i32, %c0_i32_0 : i32, i32, i32
  }
  func.func @transform_1(%arg0: i32, %arg1: i32) -> (i32, i32, i32) {
    %c0_i32 = arith.constant 0 : i32
    %c0_i32_0 = arith.constant 0 : i32
    %c0_i32_1 = arith.constant 0 : i32
    return %arg0, %c0_i32, %c0_i32_0 : i32, i32, i32
  }
  func.func @transform_2(%arg0: i32, %arg1: i32) -> (i32, i32, i32) {
    %c0_i32 = arith.constant 0 : i32
    %c0_i32_0 = arith.constant 0 : i32
    %c0_i32_1 = arith.constant 0 : i32
    return %arg0, %c0_i32, %c0_i32_0 : i32, i32, i32
  }
  func.func @transform_3(%arg0: i32, %arg1: i32) -> (i32, i32) {
    %c0_i32 = arith.constant 0 : i32
    %c0_i32_0 = arith.constant 0 : i32
    %c0_i32_1 = arith.constant 0 : i32
    return %c0_i32, %c0_i32_0 : i32, i32
  }
  func.func @transform_4(%arg0: i32, %arg1: i32) -> (i32, i32) {
    %c0_i32 = arith.constant 0 : i32
    %c0_i32_0 = arith.constant 0 : i32
    %c0_i32_1 = arith.constant 0 : i32
    return %c0_i32, %c0_i32_0 : i32, i32
  }
  func.func @transform_5(%arg0: i32, %arg1: i32) -> (i32, i32) {
    %c0_i32 = arith.constant 0 : i32
    %c0_i32_0 = arith.constant 0 : i32
    %c0_i32_1 = arith.constant 0 : i32
    return %c0_i32, %c0_i32_0 : i32, i32
  }
  func.func @transform_6(%arg0: i32, %arg1: i32) -> (i32, i32) {
    %c0_i32 = arith.constant 0 : i32
    %c0_i32_0 = arith.constant 0 : i32
    %c0_i32_1 = arith.constant 0 : i32
    return %c0_i32, %c0_i32_0 : i32, i32
  }
  func.func @transform_7(%arg0: i32, %arg1: i32) -> (i32, i32, i32) {
    %c0_i32 = arith.constant 0 : i32
    %c0_i32_0 = arith.constant 0 : i32
    %c0_i32_1 = arith.constant 0 : i32
    return %arg1, %c0_i32, %c0_i32_0 : i32, i32, i32
  }
  func.func @transform_8(%arg0: i32, %arg1: i32) -> (i32, i32, i32) {
    %c0_i32 = arith.constant 0 : i32
    %c0_i32_0 = arith.constant 0 : i32
    %c0_i32_1 = arith.constant 0 : i32
    return %arg1, %c0_i32, %c0_i32_0 : i32, i32, i32
  }
  func.func @transform_9(%arg0: i32, %arg1: i32) -> (i32, i32, i32) {
    %c0_i32 = arith.constant 0 : i32
    %c0_i32_0 = arith.constant 0 : i32
    %c0_i32_1 = arith.constant 0 : i32
    return %arg1, %c0_i32, %c0_i32_0 : i32, i32, i32
  }
  func.func @transform_10(%arg0: i32, %arg1: i32) -> (i32, i32, i32) {
    %c0_i32 = arith.constant 0 : i32
    %c0_i32_0 = arith.constant 0 : i32
    %c0_i32_1 = arith.constant 0 : i32
    return %arg1, %c0_i32, %c0_i32_0 : i32, i32, i32
  }
  func.func @transform_11(%arg0: i32, %arg1: i32) -> (i32, i32, i32) {
    %c0_i32 = arith.constant 0 : i32
    %c0_i32_0 = arith.constant 0 : i32
    %c0_i32_1 = arith.constant 0 : i32
    return %arg1, %c0_i32, %c0_i32_0 : i32, i32, i32
  }
  func.func @transform_12(%arg0: i32, %arg1: i32) -> (i32, i32, i32) {
    %c0_i32 = arith.constant 0 : i32
    %c0_i32_0 = arith.constant 0 : i32
    %c0_i32_1 = arith.constant 0 : i32
    return %arg1, %c0_i32, %c0_i32_0 : i32, i32, i32
  }
  func.func @transform_13(%arg0: i32, %arg1: i32) -> (i32, i32, i32) {
    %c0_i32 = arith.constant 0 : i32
    %c0_i32_0 = arith.constant 0 : i32
    %c0_i32_1 = arith.constant 0 : i32
    return %arg1, %c0_i32, %c0_i32_0 : i32, i32, i32
  }
  func.func @transform_14(%arg0: i32, %arg1: i32) -> (i32, i32, i32) {
    %c0_i32 = arith.constant 0 : i32
    %c0_i32_0 = arith.constant 0 : i32
    %c0_i32_1 = arith.constant 0 : i32
    return %arg1, %c0_i32, %c0_i32_0 : i32, i32, i32
  }
  func.func @transform_15(%arg0: i32, %arg1: i32) -> (i32, i32, i32) {
    %c0_i32 = arith.constant 0 : i32
    %c0_i32_0 = arith.constant 0 : i32
    %c0_i32_1 = arith.constant 0 : i32
    return %arg1, %c0_i32, %c0_i32_0 : i32, i32, i32
  }
  func.func @transform_16(%arg0: i32, %arg1: i32) -> (i32, i32, i32) {
    %c0_i32 = arith.constant 0 : i32
    %c0_i32_0 = arith.constant 0 : i32
    %c0_i32_1 = arith.constant 0 : i32
    return %arg1, %c0_i32, %c0_i32_0 : i32, i32, i32
  }
  func.func @transform_17(%arg0: i32, %arg1: i32) -> (i32, i32, i32) {
    %c0_i32 = arith.constant 0 : i32
    %c0_i32_0 = arith.constant 0 : i32
    %c0_i32_1 = arith.constant 0 : i32
    return %arg0, %c0_i32, %c0_i32_0 : i32, i32, i32
  }
}

</mosaic_0001>

<llo_original>
// kernel: ladder_forward.1
$region0: #{ladder_forward.1}
  #allocation0 [shape = 'u32[]', space=smem, size = 0x4, offset = 0x4, fixed_abs, tag = 'smem constant byte address 0x4 - core index']
  #allocation1 [shape = 'u32[144,128]{1,0:T(1,128)}', space=vmem, size = 0x12000, scoped, tag = 'internal scratch']
  #allocation2 [shape = 'f32[64,128]{1,0:T(8,128)}', space=vmem, size = 0x8000, scoped, tag = 'scratch operand']
  #allocation3 [shape = 'f32[64,128]{1,0:T(8,128)}', space=vmem, size = 0x8000, scoped, tag = 'scratch operand']
  %s0 = inlined_call_operand.vmem [shape: f32[16,8,128], index: 0, kind: input, shape index: {}]
  %s1 = inlined_call_operand.vmem [shape: f32[16,8,128], index: 1, kind: input, shape index: {}]
  %s2 = inlined_call_operand.vmem [shape: f32[16,8,128], index: 2, kind: input, shape index: {}]
  %s3 = inlined_call_operand.vmem [shape: bf16[128,128], index: 3, kind: input, shape index: {}]
  %s4 = inlined_call_operand.vmem [shape: f32[1,128], index: 4, kind: input, shape index: {}]
  %s5 = inlined_call_operand.vmem [shape: bf16[128,128], index: 5, kind: input, shape index: {}]
  %s6 = inlined_call_operand.vmem [shape: f32[1,128], index: 6, kind: input, shape index: {}]
  %s7 = inlined_call_operand.vmem [shape: bf16[3,128,128], index: 7, kind: input, shape index: {}]
  %s8 = inlined_call_operand.vmem [shape: f32[3,1,128], index: 8, kind: input, shape index: {}]
  %s9 = inlined_call_operand.vmem [shape: bf16[3,128,128], index: 9, kind: input, shape index: {}]
  %s10 = inlined_call_operand.vmem [shape: f32[3,1,128], index: 10, kind: input, shape index: {}]
  %s11 = inlined_call_operand.vmem [shape: bf16[3,128,128], index: 11, kind: input, shape index: {}]
  %s12 = inlined_call_operand.vmem [shape: f32[3,1,128], index: 12, kind: input, shape index: {}]
  %s13 = inlined_call_operand.vmem [shape: bf16[3,128,512], index: 13, kind: input, shape index: {}]
  %s14 = inlined_call_operand.vmem [shape: f32[3,1,512], index: 14, kind: input, shape index: {}]
  %s15 = inlined_call_operand.vmem [shape: bf16[3,512,128], index: 15, kind: input, shape index: {}]
  %s16 = inlined_call_operand.vmem [shape: f32[3,1,128], index: 16, kind: input, shape index: {}]
  %s17 = inlined_call_operand.hbm [shape: f32[16,8,128], index: 17, kind: output, shape index: {}]
  %s18 = sld [smem:[#allocation0]]
  $region113: #{ladder_forward.1} parent=0
    _
  %s20 = ssub.s32 1, %s18
  %s21 = scalar_select 0, %s20, %s18
  $region1: #{ladder_forward.1} parent=0
    #allocation4 [shape = 'u8[65536]{0}', space=vmem, size = 0x10000, scoped, tag = 'output window, operand 0']
    #allocation5 [shape = 's32[2]{0}', space=sflag, size = 0x8, scoped, tag = 'scoped memory for ladder_forward.1']
    %22 = vsyncpa [#allocation5], 0
    %s23 = scalar_lea.sflag [#allocation5], 1
    %24 = vsyncpa %s23, 0
    loop: start=0, step=1, limit=8
    $region2: #{ladder_forward.1} parent=1 // loop_pre_header
      _
    $region3: #{ladder_forward.1} parent=1 // loop_header
      %s26 = sphi 0, %s30
      %p27 = scmp.ge.s32.totalorder %s26, 8
      %s33 = sphi 0, %s45
      %s34 = sphi 0, %s41
      %s35 = sphi 0, %s33
      %s36 = sphi 0, %s34
      %s37 = sphi 0, %s35
      %s38 = sphi 0, %s36
      %s48 = sphi 0, %s50
      %s51 = sphi 0, %s48
      %s52 = sphi 0, %s51
      %s68 = sphi 0, %s52
      %s74 = sphi 0, %s76
      %s77 = sphi 0, %s74
      %s78 = sphi 0, %s77
      %s94 = sphi 0, %s78
      %s100 = sphi 0, %s102
      %s103 = sphi 0, %s100
      %s104 = sphi 0, %s103
      %s120 = sphi 0, %s104
      %s124 = sphi 0, %s124
      %s126 = sphi 0, %s124
      %s127 = sphi 0, %s126
      %s141 = sphi 0, %s127
      %s145 = sphi 0, %s145
      %s147 = sphi 0, %s145
      %s148 = sphi 0, %s147
      %s162 = sphi 0, %s148
      %s166 = sphi 0, %s166
      %s168 = sphi 0, %s166
      %s169 = sphi 0, %s168
      %s183 = sphi 0, %s169
      %s187 = sphi 0, %s187
      %s189 = sphi 0, %s187
      %s190 = sphi 0, %s189
      %s204 = sphi 0, %s190
      %s210 = sphi 0, %s212
      %s213 = sphi 0, %s210
      %s214 = sphi 0, %s213
      %s230 = sphi 0, %s214
      %s236 = sphi 0, %s238
      %s239 = sphi 0, %s236
      %s240 = sphi 0, %s239
      %s256 = sphi 0, %s240
      %s262 = sphi 0, %s264
      %s265 = sphi 0, %s262
      %s266 = sphi 0, %s265
      %s282 = sphi 0, %s266
      %s288 = sphi 0, %s290
      %s291 = sphi 0, %s288
      %s292 = sphi 0, %s291
      %s308 = sphi 0, %s292
      %s314 = sphi 0, %s316
      %s317 = sphi 0, %s314
      %s318 = sphi 0, %s317
      %s334 = sphi 0, %s318
      %s340 = sphi 0, %s342
      %s343 = sphi 0, %s340
      %s344 = sphi 0, %s343
      %s360 = sphi 0, %s344
      %s366 = sphi 0, %s368
      %s369 = sphi 0, %s366
      %s370 = sphi 0, %s369
      %s386 = sphi 0, %s370
      %s392 = sphi 0, %s394
      %s395 = sphi 0, %s392
      %s396 = sphi 0, %s395
      %s412 = sphi 0, %s396
      %s418 = sphi 0, %s420
      %s421 = sphi 0, %s418
      %s422 = sphi 0, %s421
      %s438 = sphi 0, %s422
      %s444 = sphi 0, %s446
      %s447 = sphi 0, %s444
      %s448 = sphi 0, %s447
      %s464 = sphi 0, %s448
      %s470 = sphi 0, %s472
      %s473 = sphi 0, %s470
      %s474 = sphi 0, %s473
      %s490 = sphi 0, %s474
    $region4: #{ladder_forward.1} parent=1 // loop_header_branch
      %29 = sbr.rel (%p27) target = $region8
    $region5: #{ladder_forward.1} parent=1 // loop_body
      %s31 = ssub.s32 %s26, 1
      %s32 = ssub.s32 %s26, 2
      %s39 = sadd.s32 1, %s34
      %p40 = scmp.ge.s32.totalorder %s39, 3
      %s41 = scalar_select %p40, 0, %s39
      %s42 = sadd.s32 1, %s33
      %s43 = scalar_select %p40, %s42, %s33
      %p44 = scmp.ge.s32.totalorder %s43, 2
      %s45 = scalar_select %p44, 0, %s43
      %s46 = ssub.s32 %s33, %s45
      %p47 = scmp.eq.s32.totalorder %s46, 0
      %s49 = sadd.s32 %s48, 1
      %s50 = scalar_select %p47, %s48, %s49
      %p53 = pneg %p47
      %p54 = scmp.eq.s32.totalorder %s26, 5
      %p55 = por %p53, %p54
      %p56 = scmp.ne.s32.totalorder %s48, %s51
      %p57 = scmp.eq.s32.totalorder %s26, 0
      %p58 = por %p56, %p57
      %p59 = scmp.ne.s32.totalorder %s48, %s51
      %p60 = scmp.eq.s32.totalorder %s31, 5
      %p61 = por %p59, %p60
      %p62 = scmp.ne.s32.totalorder %s51, %s52
      %p63 = scmp.eq.s32.totalorder %s31, 0
      %p64 = por %p62, %p63
      %p65 = scmp.ne.s32.totalorder %s51, %s52
      %p66 = scmp.eq.s32.totalorder %s32, 5
      %p67 = por %p65, %p66
      %p69 = scmp.ne.s32.totalorder %s52, %s68
      %p70 = scmp.eq.s32.totalorder %s32, 0
      %p71 = por %p69, %p70
      %s72 = ssub.s32 %s33, %s45
      %p73 = scmp.eq.s32.totalorder %s72, 0
      %s75 = sadd.s32 %s74, 1
      %s76 = scalar_select %p73, %s74, %s75
      %p79 = pneg %p73
      %p80 = scmp.eq.s32.totalorder %s26, 5
      %p81 = por %p79, %p80
      %p82 = scmp.ne.s32.totalorder %s74, %s77
      %p83 = scmp.eq.s32.totalorder %s26, 0
      %p84 = por %p82, %p83
      %p85 = scmp.ne.s32.totalorder %s74, %s77
      %p86 = scmp.eq.s32.totalorder %s31, 5
      %p87 = por %p85, %p86
      %p88 = scmp.ne.s32.totalorder %s77, %s78
      %p89 = scmp.eq.s32.totalorder %s31, 0
      %p90 = por %p88, %p89
      %p91 = scmp.ne.s32.totalorder %s77, %s78
      %p92 = scmp.eq.s32.totalorder %s32, 5
      %p93 = por %p91, %p92
      %p95 = scmp.ne.s32.totalorder %s78, %s94
      %p96 = scmp.eq.s32.totalorder %s32, 0
      %p97 = por %p95, %p96
      %s98 = ssub.s32 %s33, %s45
      %p99 = scmp.eq.s32.totalorder %s98, 0
      %s101 = sadd.s32 %s100, 1
      %s102 = scalar_select %p99, %s100, %s101
      %p105 = pneg %p99
      %p106 = scmp.eq.s32.totalorder %s26, 5
      %p107 = por %p105, %p106
      %p108 = scmp.ne.s32.totalorder %s100, %s103
      %p109 = scmp.eq.s32.totalorder %s26, 0
      %p110 = por %p108, %p109
      %p111 = scmp.ne.s32.totalorder %s100, %s103
      %p112 = scmp.eq.s32.totalorder %s31, 5
      %p113 = por %p111, %p112
      %p114 = scmp.ne.s32.totalorder %s103, %s104
      %p115 = scmp.eq.s32.totalorder %s31, 0
      %p116 = por %p114, %p115
      %p117 = scmp.ne.s32.totalorder %s103, %s104
      %p118 = scmp.eq.s32.totalorder %s32, 5
      %p119 = por %p117, %p118
      %p121 = scmp.ne.s32.totalorder %s104, %s120
      %p122 = scmp.eq.s32.totalorder %s32, 0
      %p123 = por %p121, %p122
      %s125 = sadd.s32 %s124, 1
      %p128 = scmp.eq.s32.totalorder %s26, 5
      %p129 = scmp.ne.s32.totalorder %s124, %s126
      %p130 = scmp.eq.s32.totalorder %s26, 0
      %p131 = por %p129, %p130
      %p132 = scmp.ne.s32.totalorder %s124, %s126
      %p133 = scmp.eq.s32.totalorder %s31, 5
      %p134 = por %p132, %p133
      %p135 = scmp.ne.s32.totalorder %s126, %s127
      %p136 = scmp.eq.s32.totalorder %s31, 0
      %p137 = por %p135, %p136
      %p138 = scmp.ne.s32.totalorder %s126, %s127
      %p139 = scmp.eq.s32.totalorder %s32, 5
      %p140 = por %p138, %p139
      %p142 = scmp.ne.s32.totalorder %s127, %s141
      %p143 = scmp.eq.s32.totalorder %s32, 0
      %p144 = por %p142, %p143
      %s146 = sadd.s32 %s145, 1
      %p149 = scmp.eq.s32.totalorder %s26, 5
      %p150 = scmp.ne.s32.totalorder %s145, %s147
      %p151 = scmp.eq.s32.totalorder %s26, 0
      %p152 = por %p150, %p151
      %p153 = scmp.ne.s32.totalorder %s145, %s147
      %p154 = scmp.eq.s32.totalorder %s31, 5
      %p155 = por %p153, %p154
      %p156 = scmp.ne.s32.totalorder %s147, %s148
      %p157 = scmp.eq.s32.totalorder %s31, 0
      %p158 = por %p156, %p157
      %p159 = scmp.ne.s32.totalorder %s147, %s148
      %p160 = scmp.eq.s32.totalorder %s32, 5
      %p161 = por %p159, %p160
      %p163 = scmp.ne.s32.totalorder %s148, %s162
      %p164 = scmp.eq.s32.totalorder %s32, 0
      %p165 = por %p163, %p164
      %s167 = sadd.s32 %s166, 1
      %p170 = scmp.eq.s32.totalorder %s26, 5
      %p171 = scmp.ne.s32.totalorder %s166, %s168
      %p172 = scmp.eq.s32.totalorder %s26, 0
      %p173 = por %p171, %p172
      %p174 = scmp.ne.s32.totalorder %s166, %s168
      %p175 = scmp.eq.s32.totalorder %s31, 5
      %p176 = por %p174, %p175
      %p177 = scmp.ne.s32.totalorder %s168, %s169
      %p178 = scmp.eq.s32.totalorder %s31, 0
      %p179 = por %p177, %p178
      %p180 = scmp.ne.s32.totalorder %s168, %s169
      %p181 = scmp.eq.s32.totalorder %s32, 5
      %p182 = por %p180, %p181
      %p184 = scmp.ne.s32.totalorder %s169, %s183
      %p185 = scmp.eq.s32.totalorder %s32, 0
      %p186 = por %p184, %p185
      %s188 = sadd.s32 %s187, 1
      %p191 = scmp.eq.s32.totalorder %s26, 5
      %p192 = scmp.ne.s32.totalorder %s187, %s189
      %p193 = scmp.eq.s32.totalorder %s26, 0
      %p194 = por %p192, %p193
      %p195 = scmp.ne.s32.totalorder %s187, %s189
      %p196 = scmp.eq.s32.totalorder %s31, 5
      %p197 = por %p195, %p196
      %p198 = scmp.ne.s32.totalorder %s189, %s190
      %p199 = scmp.eq.s32.totalorder %s31, 0
      %p200 = por %p198, %p199
      %p201 = scmp.ne.s32.totalorder %s189, %s190
      %p202 = scmp.eq.s32.totalorder %s32, 5
      %p203 = por %p201, %p202
      %p205 = scmp.ne.s32.totalorder %s190, %s204
      %p206 = scmp.eq.s32.totalorder %s32, 0
      %p207 = por %p205, %p206
      %s208 = ssub.s32 %s34, %s41
      %p209 = scmp.eq.s32.totalorder %s208, 0
      %s211 = sadd.s32 %s210, 1
      %s212 = scalar_select %p209, %s210, %s211
      %p215 = pneg %p209
      %p216 = scmp.eq.s32.totalorder %s26, 5
      %p217 = por %p215, %p216
      %p218 = scmp.ne.s32.totalorder %s210, %s213
      %p219 = scmp.eq.s32.totalorder %s26, 0
      %p220 = por %p218, %p219
      %p221 = scmp.ne.s32.totalorder %s210, %s213
      %p222 = scmp.eq.s32.totalorder %s31, 5
      %p223 = por %p221, %p222
      %p224 = scmp.ne.s32.totalorder %s213, %s214
      %p225 = scmp.eq.s32.totalorder %s31, 0
      %p226 = por %p224, %p225
      %p227 = scmp.ne.s32.totalorder %s213, %s214
      %p228 = scmp.eq.s32.totalorder %s32, 5
      %p229 = por %p227, %p228
      %p231 = scmp.ne.s32.totalorder %s214, %s230
      %p232 = scmp.eq.s32.totalorder %s32, 0
      %p233 = por %p231, %p232
      %s234 = ssub.s32 %s34, %s41
      %p235 = scmp.eq.s32.totalorder %s234, 0
      %s237 = sadd.s32 %s236, 1
      %s238 = scalar_select %p235, %s236, %s237
      %p241 = pneg %p235
      %p242 = scmp.eq.s32.totalorder %s26, 5
      %p243 = por %p241, %p242
      %p244 = scmp.ne.s32.totalorder %s236, %s239
      %p245 = scmp.eq.s32.totalorder %s26, 0
      %p246 = por %p244, %p245
      %p247 = scmp.ne.s32.totalorder %s236, %s239
      %p248 = scmp.eq.s32.totalorder %s31, 5
      %p249 = por %p247, %p248
      %p250 = scmp.ne.s32.totalorder %s239, %s240
      %p251 = scmp.eq.s32.totalorder %s31, 0
      %p252 = por %p250, %p251
      %p253 = scmp.ne.s32.totalorder %s239, %s240
      %p254 = scmp.eq.s32.totalorder %s32, 5
      %p255 = por %p253, %p254
      %p257 = scmp.ne.s32.totalorder %s240, %s256
      %p258 = scmp.eq.s32.totalorder %s32, 0
      %p259 = por %p257, %p258
      %s260 = ssub.s32 %s34, %s41
      %p261 = scmp.eq.s32.totalorder %s260, 0
      %s263 = sadd.s32 %s262, 1
      %s264 = scalar_select %p261, %s262, %s263
      %p267 = pneg %p261
      %p268 = scmp.eq.s32.totalorder %s26, 5
      %p269 = por %p267, %p268
      %p270 = scmp.ne.s32.totalorder %s262, %s265
      %p271 = scmp.eq.s32.totalorder %s26, 0
      %p272 = por %p270, %p271
      %p273 = scmp.ne.s32.totalorder %s262, %s265
      %p274 = scmp.eq.s32.totalorder %s31, 5
      %p275 = por %p273, %p274
      %p276 = scmp.ne.s32.totalorder %s265, %s266
      %p277 = scmp.eq.s32.totalorder %s31, 0
      %p278 = por %p276, %p277
      %p279 = scmp.ne.s32.totalorder %s265, %s266
      %p280 = scmp.eq.s32.totalorder %s32, 5
      %p281 = por %p279, %p280
      %p283 = scmp.ne.s32.totalorder %s266, %s282
      %p284 = scmp.eq.s32.totalorder %s32, 0
      %p285 = por %p283, %p284
      %s286 = ssub.s32 %s34, %s41
      %p287 = scmp.eq.s32.totalorder %s286, 0
      %s289 = sadd.s32 %s288, 1
      %s290 = scalar_select %p287, %s288, %s289
      %p293 = pneg %p287
      %p294 = scmp.eq.s32.totalorder %s26, 5
      %p295 = por %p293, %p294
      %p296 = scmp.ne.s32.totalorder %s288, %s291
      %p297 = scmp.eq.s32.totalorder %s26, 0
      %p298 = por %p296, %p297
      %p299 = scmp.ne.s32.totalorder %s288, %s291
      %p300 = scmp.eq.s32.totalorder %s31, 5
      %p301 = por %p299, %p300
      %p302 = scmp.ne.s32.totalorder %s291, %s292
      %p303 = scmp.eq.s32.totalorder %s31, 0
      %p304 = por %p302, %p303
      %p305 = scmp.ne.s32.totalorder %s291, %s292
      %p306 = scmp.eq.s32.totalorder %s32, 5
      %p307 = por %p305, %p306
      %p309 = scmp.ne.s32.totalorder %s292, %s308
      %p310 = scmp.eq.s32.totalorder %s32, 0
      %p311 = por %p309, %p310
      %s312 = ssub.s32 %s34, %s41
      %p313 = scmp.eq.s32.totalorder %s312, 0
      %s315 = sadd.s32 %s314, 1
      %s316 = scalar_select %p313, %s314, %s315
      %p319 = pneg %p313
      %p320 = scmp.eq.s32.totalorder %s26, 5
      %p321 = por %p319, %p320
      %p322 = scmp.ne.s32.totalorder %s314, %s317
      %p323 = scmp.eq.s32.totalorder %s26, 0
      %p324 = por %p322, %p323
      %p325 = scmp.ne.s32.totalorder %s314, %s317
      %p326 = scmp.eq.s32.totalorder %s31, 5
      %p327 = por %p325, %p326
      %p328 = scmp.ne.s32.totalorder %s317, %s318
      %p329 = scmp.eq.s32.totalorder %s31, 0
      %p330 = por %p328, %p329
      %p331 = scmp.ne.s32.totalorder %s317, %s318
      %p332 = scmp.eq.s32.totalorder %s32, 5
      %p333 = por %p331, %p332
      %p335 = scmp.ne.s32.totalorder %s318, %s334
      %p336 = scmp.eq.s32.totalorder %s32, 0
      %p337 = por %p335, %p336
      %s338 = ssub.s32 %s34, %s41
      %p339 = scmp.eq.s32.totalorder %s338, 0
      %s341 = sadd.s32 %s340, 1
      %s342 = scalar_select %p339, %s340, %s341
      %p345 = pneg %p339
      %p346 = scmp.eq.s32.totalorder %s26, 5
      %p347 = por %p345, %p346
      %p348 = scmp.ne.s32.totalorder %s340, %s343
      %p349 = scmp.eq.s32.totalorder %s26, 0
      %p350 = por %p348, %p349
      %p351 = scmp.ne.s32.totalorder %s340, %s343
      %p352 = scmp.eq.s32.totalorder %s31, 5
      %p353 = por %p351, %p352
      %p354 = scmp.ne.s32.totalorder %s343, %s344
      %p355 = scmp.eq.s32.totalorder %s31, 0
      %p356 = por %p354, %p355
      %p357 = scmp.ne.s32.totalorder %s343, %s344
      %p358 = scmp.eq.s32.totalorder %s32, 5
      %p359 = por %p357, %p358
      %p361 = scmp.ne.s32.totalorder %s344, %s360
      %p362 = scmp.eq.s32.totalorder %s32, 0
      %p363 = por %p361, %p362
      %s364 = ssub.s32 %s34, %s41
      %p365 = scmp.eq.s32.totalorder %s364, 0
      %s367 = sadd.s32 %s366, 1
      %s368 = scalar_select %p365, %s366, %s367
      %p371 = pneg %p365
      %p372 = scmp.eq.s32.totalorder %s26, 5
      %p373 = por %p371, %p372
      %p374 = scmp.ne.s32.totalorder %s366, %s369
      %p375 = scmp.eq.s32.totalorder %s26, 0
      %p376 = por %p374, %p375
      %p377 = scmp.ne.s32.totalorder %s366, %s369
      %p378 = scmp.eq.s32.totalorder %s31, 5
      %p379 = por %p377, %p378
      %p380 = scmp.ne.s32.totalorder %s369, %s370
      %p381 = scmp.eq.s32.totalorder %s31, 0
      %p382 = por %p380, %p381
      %p383 = scmp.ne.s32.totalorder %s369, %s370
      %p384 = scmp.eq.s32.totalorder %s32, 5
      %p385 = por %p383, %p384
      %p387 = scmp.ne.s32.totalorder %s370, %s386
      %p388 = scmp.eq.s32.totalorder %s32, 0
      %p389 = por %p387, %p388
      %s390 = ssub.s32 %s34, %s41
      %p391 = scmp.eq.s32.totalorder %s390, 0
      %s393 = sadd.s32 %s392, 1
      %s394 = scalar_select %p391, %s392, %s393
      %p397 = pneg %p391
      %p398 = scmp.eq.s32.totalorder %s26, 5
      %p399 = por %p397, %p398
      %p400 = scmp.ne.s32.totalorder %s392, %s395
      %p401 = scmp.eq.s32.totalorder %s26, 0
      %p402 = por %p400, %p401
      %p403 = scmp.ne.s32.totalorder %s392, %s395
      %p404 = scmp.eq.s32.totalorder %s31, 5
      %p405 = por %p403, %p404
      %p406 = scmp.ne.s32.totalorder %s395, %s396
      %p407 = scmp.eq.s32.totalorder %s31, 0
      %p408 = por %p406, %p407
      %p409 = scmp.ne.s32.totalorder %s395, %s396
      %p410 = scmp.eq.s32.totalorder %s32, 5
      %p411 = por %p409, %p410
      %p413 = scmp.ne.s32.totalorder %s396, %s412
      %p414 = scmp.eq.s32.totalorder %s32, 0
      %p415 = por %p413, %p414
      %s416 = ssub.s32 %s34, %s41
      %p417 = scmp.eq.s32.totalorder %s416, 0
      %s419 = sadd.s32 %s418, 1
      %s420 = scalar_select %p417, %s418, %s419
      %p423 = pneg %p417
      %p424 = scmp.eq.s32.totalorder %s26, 5
      %p425 = por %p423, %p424
      %p426 = scmp.ne.s32.totalorder %s418, %s421
      %p427 = scmp.eq.s32.totalorder %s26, 0
      %p428 = por %p426, %p427
      %p429 = scmp.ne.s32.totalorder %s418, %s421
      %p430 = scmp.eq.s32.totalorder %s31, 5
      %p431 = por %p429, %p430
      %p432 = scmp.ne.s32.totalorder %s421, %s422
      %p433 = scmp.eq.s32.totalorder %s31, 0
      %p434 = por %p432, %p433
      %p435 = scmp.ne.s32.totalorder %s421, %s422
      %p436 = scmp.eq.s32.totalorder %s32, 5
      %p437 = por %p435, %p436
      %p439 = scmp.ne.s32.totalorder %s422, %s438
      %p440 = scmp.eq.s32.totalorder %s32, 0
      %p441 = por %p439, %p440
      %s442 = ssub.s32 %s34, %s41
      %p443 = scmp.eq.s32.totalorder %s442, 0
      %s445 = sadd.s32 %s444, 1
      %s446 = scalar_select %p443, %s444, %s445
      %p449 = pneg %p443
      %p450 = scmp.eq.s32.totalorder %s26, 5
      %p451 = por %p449, %p450
      %p452 = scmp.ne.s32.totalorder %s444, %s447
      %p453 = scmp.eq.s32.totalorder %s26, 0
      %p454 = por %p452, %p453
      %p455 = scmp.ne.s32.totalorder %s444, %s447
      %p456 = scmp.eq.s32.totalorder %s31, 5
      %p457 = por %p455, %p456
      %p458 = scmp.ne.s32.totalorder %s447, %s448
      %p459 = scmp.eq.s32.totalorder %s31, 0
      %p460 = por %p458, %p459
      %p461 = scmp.ne.s32.totalorder %s447, %s448
      %p462 = scmp.eq.s32.totalorder %s32, 5
      %p463 = por %p461, %p462
      %p465 = scmp.ne.s32.totalorder %s448, %s464
      %p466 = scmp.eq.s32.totalorder %s32, 0
      %p467 = por %p465, %p466
      %s468 = ssub.s32 %s33, %s45
      %p469 = scmp.eq.s32.totalorder %s468, 0
      %s471 = sadd.s32 %s470, 1
      %s472 = scalar_select %p469, %s470, %s471
      %p475 = pneg %p469
      %p476 = scmp.eq.s32.totalorder %s26, 5
      %p477 = por %p475, %p476
      %p478 = scmp.ne.s32.totalorder %s470, %s473
      %p479 = scmp.eq.s32.totalorder %s26, 0
      %p480 = por %p478, %p479
      %p481 = scmp.ne.s32.totalorder %s470, %s473
      %p482 = scmp.eq.s32.totalorder %s31, 5
      %p483 = por %p481, %p482
      %p484 = scmp.ne.s32.totalorder %s473, %s474
      %p485 = scmp.eq.s32.totalorder %s31, 0
      %p486 = por %p484, %p485
      %p487 = scmp.ne.s32.totalorder %s473, %s474
      %p488 = scmp.eq.s32.totalorder %s32, 5
      %p489 = por %p487, %p488
      %p491 = scmp.ne.s32.totalorder %s474, %s490
      %p492 = scmp.eq.s32.totalorder %s32, 0
      %p493 = por %p491, %p492
      %p494 = scmp.le.s32.totalorder 1, %s26
      %p495 = scmp.lt.s32.totalorder %s26, 7
      %p496 = pnand %p494, %p495
      %p497 = pneg %p496
      // Predicated region
      $region9: #{ladder_forward.1} parent=5 // pred_check
        _
      $region10: #{ladder_forward.1} parent=5 // pred_check_branch
        %499 = sbr.rel (%p496) target = $region12
      $region11: #{ladder_forward.1} parent=5 // pred_region
        %s500 = ssub.s32 %s26, 1
        // Predicated region
        $region13: #{ladder_forward.1} parent=11 // pred_check
          %p501 = pneg %p137
        $region14: #{ladder_forward.1} parent=11 // pred_check_branch
          %503 = sbr.rel (%p501) target = $region16
        $region15: #{ladder_forward.1} parent=11 // pred_region
          _
        $region16: #{ladder_forward.1} parent=11 // pred_fallthru
          _
        // Predicated region
        $region17: #{ladder_forward.1} parent=11 // pred_check
          %p504 = pneg %p158
        $region18: #{ladder_forward.1} parent=11 // pred_check_branch
          %506 = sbr.rel (%p504) target = $region20
        $region19: #{ladder_forward.1} parent=11 // pred_region
          _
        $region20: #{ladder_forward.1} parent=11 // pred_fallthru
          _
        // Predicated region
        $region21: #{ladder_forward.1} parent=11 // pred_check
          %p507 = pneg %p179
        $region22: #{ladder_forward.1} parent=11 // pred_check_branch
          %509 = sbr.rel (%p507) target = $region24
        $region23: #{ladder_forward.1} parent=11 // pred_region
          _
        $region24: #{ladder_forward.1} parent=11 // pred_fallthru
          _
        // Predicated region
        $region25: #{ladder_forward.1} parent=11 // pred_check
          %p510 = pneg %p200
        $region26: #{ladder_forward.1} parent=11 // pred_check_branch
          %512 = sbr.rel (%p510) target = $region28
        $region27: #{ladder_forward.1} parent=11 // pred_region
          _
        $region28: #{ladder_forward.1} parent=11 // pred_fallthru
          _
      $region12: #{ladder_forward.1} parent=5 // pred_fallthru
        _
      %p513 = scmp.lt.s32.totalorder %s26, 6
      // Predicated region
      $region29: #{ladder_forward.1} parent=5 // pred_check
        %p514 = pneg %p513
      $region30: #{ladder_forward.1} parent=5 // pred_check_branch
        %516 = sbr.rel (%p514) target = $region32
      $region31: #{ladder_forward.1} parent=5 // pred_region
        // Predicated region
        $region33: #{ladder_forward.1} parent=31 // pred_check
          %p517 = pneg %p58
        $region34: #{ladder_forward.1} parent=31 // pred_check_branch
          %519 = sbr.rel (%p517) target = $region36
        $region35: #{ladder_forward.1} parent=31 // pred_region
          %s520 = smul.u32 8, %s33
          %p521 = scmp.lt.s32.totalorder %s520, 15
          %s522 = scalar_select %p521, %s520, 15
          %s523 = smul.addr %s522, 8
          %s524 = scalar_lea.vmem %s0, %s523
          %s525 = smul.u32 8, %s33
        $region36: #{ladder_forward.1} parent=31 // pred_fallthru
          _
        // Predicated region
        $region37: #{ladder_forward.1} parent=31 // pred_check
          %p526 = pneg %p84
        $region38: #{ladder_forward.1} parent=31 // pred_check_branch
          %528 = sbr.rel (%p526) target = $region40
        $region39: #{ladder_forward.1} parent=31 // pred_region
          %s529 = smul.u32 8, %s33
          %p530 = scmp.lt.s32.totalorder %s529, 15
          %s531 = scalar_select %p530, %s529, 15
          %s532 = smul.addr %s531, 8
          %s533 = scalar_lea.vmem %s1, %s532
          %s534 = smul.u32 8, %s33
        $region40: #{ladder_forward.1} parent=31 // pred_fallthru
          _
        // Predicated region
        $region41: #{ladder_forward.1} parent=31 // pred_check
          %p535 = pneg %p110
        $region42: #{ladder_forward.1} parent=31 // pred_check_branch
          %537 = sbr.rel (%p535) target = $region44
        $region43: #{ladder_forward.1} parent=31 // pred_region
          %s538 = smul.u32 8, %s33
          %p539 = scmp.lt.s32.totalorder %s538, 15
          %s540 = scalar_select %p539, %s538, 15
          %s541 = smul.addr %s540, 8
          %s542 = scalar_lea.vmem %s2, %s541
          %s543 = smul.u32 8, %s33
        $region44: #{ladder_forward.1} parent=31 // pred_fallthru
          _
        // Predicated region
        $region45: #{ladder_forward.1} parent=31 // pred_check
          %p544 = pneg %p220
        $region46: #{ladder_forward.1} parent=31 // pred_check_branch
          %546 = sbr.rel (%p544) target = $region48
        $region47: #{ladder_forward.1} parent=31 // pred_region
          %p547 = scmp.lt.s32.totalorder %s34, 2
          %s548 = scalar_select %p547, %s34, 2
          %s549 = smul.addr %s548, 16
          %s550 = smul.addr %s549, 4
          %s551 = scalar_lea.vmem %s7, %s550
        $region48: #{ladder_forward.1} parent=31 // pred_fallthru
          _
        // Predicated region
        $region49: #{ladder_forward.1} parent=31 // pred_check
          %p552 = pneg %p246
        $region50: #{ladder_forward.1} parent=31 // pred_check_branch
          %554 = sbr.rel (%p552) target = $region52
        $region51: #{ladder_forward.1} parent=31 // pred_region
          %p555 = scmp.lt.s32.totalorder %s34, 2
          %s556 = scalar_select %p555, %s34, 2
          %s557 = scalar_lea.vmem %s8, %s556
        $region52: #{ladder_forward.1} parent=31 // pred_fallthru
          _
        // Predicated region
        $region53: #{ladder_forward.1} parent=31 // pred_check
          %p558 = pneg %p272
        $region54: #{ladder_forward.1} parent=31 // pred_check_branch
          %560 = sbr.rel (%p558) target = $region56
        $region55: #{ladder_forward.1} parent=31 // pred_region
          %p561 = scmp.lt.s32.totalorder %s34, 2
          %s562 = scalar_select %p561, %s34, 2
          %s563 = smul.addr %s562, 16
          %s564 = smul.addr %s563, 4
          %s565 = scalar_lea.vmem %s9, %s564
        $region56: #{ladder_forward.1} parent=31 // pred_fallthru
          _
        // Predicated region
        $region57: #{ladder_forward.1} parent=31 // pred_check
          %p566 = pneg %p298
        $region58: #{ladder_forward.1} parent=31 // pred_check_branch
          %568 = sbr.rel (%p566) target = $region60
        $region59: #{ladder_forward.1} parent=31 // pred_region
          %p569 = scmp.lt.s32.totalorder %s34, 2
          %s570 = scalar_select %p569, %s34, 2
          %s571 = scalar_lea.vmem %s10, %s570
        $region60: #{ladder_forward.1} parent=31 // pred_fallthru
          _
        // Predicated region
        $region61: #{ladder_forward.1} parent=31 // pred_check
          %p572 = pneg %p324
        $region62: #{ladder_forward.1} parent=31 // pred_check_branch
          %574 = sbr.rel (%p572) target = $region64
        $region63: #{ladder_forward.1} parent=31 // pred_region
          %p575 = scmp.lt.s32.totalorder %s34, 2
          %s576 = scalar_select %p575, %s34, 2
          %s577 = smul.addr %s576, 16
          %s578 = smul.addr %s577, 4
          %s579 = scalar_lea.vmem %s11, %s578
        $region64: #{ladder_forward.1} parent=31 // pred_fallthru
          _
        // Predicated region
        $region65: #{ladder_forward.1} parent=31 // pred_check
          %p580 = pneg %p350
        $region66: #{ladder_forward.1} parent=31 // pred_check_branch
          %582 = sbr.rel (%p580) target = $region68
        $region67: #{ladder_forward.1} parent=31 // pred_region
          %p583 = scmp.lt.s32.totalorder %s34, 2
          %s584 = scalar_select %p583, %s34, 2
          %s585 = scalar_lea.vmem %s12, %s584
        $region68: #{ladder_forward.1} parent=31 // pred_fallthru
          _
        // Predicated region
        $region69: #{ladder_forward.1} parent=31 // pred_check
          %p586 = pneg %p376
        $region70: #{ladder_forward.1} parent=31 // pred_check_branch
          %588 = sbr.rel (%p586) target = $region72
        $region71: #{ladder_forward.1} parent=31 // pred_region
          %p589 = scmp.lt.s32.totalorder %s34, 2
          %s590 = scalar_select %p589, %s34, 2
          %s591 = smul.addr %s590, 64
          %s592 = smul.addr %s591, 4
          %s593 = scalar_lea.vmem %s13, %s592
        $region72: #{ladder_forward.1} parent=31 // pred_fallthru
          _
        // Predicated region
        $region73: #{ladder_forward.1} parent=31 // pred_check
          %p594 = pneg %p402
        $region74: #{ladder_forward.1} parent=31 // pred_check_branch
          %596 = sbr.rel (%p594) target = $region76
        $region75: #{ladder_forward.1} parent=31 // pred_region
          %p597 = scmp.lt.s32.totalorder %s34, 2
          %s598 = scalar_select %p597, %s34, 2
          %s599 = smul.addr %s598, 4
          %s600 = scalar_lea.vmem %s14, %s599
        $region76: #{ladder_forward.1} parent=31 // pred_fallthru
          _
        // Predicated region
        $region77: #{ladder_forward.1} parent=31 // pred_check
          %p601 = pneg %p428
        $region78: #{ladder_forward.1} parent=31 // pred_check_branch
          %603 = sbr.rel (%p601) target = $region80
        $region79: #{ladder_forward.1} parent=31 // pred_region
          %p604 = scmp.lt.s32.totalorder %s34, 2
          %s605 = scalar_select %p604, %s34, 2
          %s606 = smul.addr %s605, 64
          %s607 = smul.addr %s606, 4
          %s608 = scalar_lea.vmem %s15, %s607
        $region80: #{ladder_forward.1} parent=31 // pred_fallthru
          _
        // Predicated region
        $region81: #{ladder_forward.1} parent=31 // pred_check
          %p609 = pneg %p454
        $region82: #{ladder_forward.1} parent=31 // pred_check_branch
          %611 = sbr.rel (%p609) target = $region84
        $region83: #{ladder_forward.1} parent=31 // pred_region
          %p612 = scmp.lt.s32.totalorder %s34, 2
          %s613 = scalar_select %p612, %s34, 2
          %s614 = scalar_lea.vmem %s16, %s613
        $region84: #{ladder_forward.1} parent=31 // pred_fallthru
          _
      $region32: #{ladder_forward.1} parent=5 // pred_fallthru
        _
      %p615 = scmp.le.s32.totalorder 1, %s26
      %p616 = scmp.lt.s32.totalorder %s26, 7
      %p617 = pnand %p615, %p616
      %p618 = pneg %p617
      // Predicated region
      $region85: #{ladder_forward.1} parent=5 // pred_check
        _
      $region86: #{ladder_forward.1} parent=5 // pred_check_branch
        %620 = sbr.rel (%p617) target = $region88
      $region87: #{ladder_forward.1} parent=5 // pred_region
        %s621 = ssub.s32 %s26, 1
        %s622 = smul.u32 8, %s35
        %p623 = scmp.lt.s32.totalorder %s622, 15
        %s624 = scalar_select %p623, %s622, 15
        %s625 = smul.addr %s624, 8
        %s626 = scalar_lea.vmem %s0, %s625
        %p627 = pneg %p64
        %p628 = pneg %p61
        %s629 = smul.u32 8, %s35
        %p630 = scmp.lt.s32.totalorder %s629, 15
        %s631 = scalar_select %p630, %s629, 15
        %s632 = smul.addr %s631, 8
        %s633 = scalar_lea.vmem %s1, %s632
        %p634 = pneg %p90
        %p635 = pneg %p87
        %s636 = smul.u32 8, %s35
        %p637 = scmp.lt.s32.totalorder %s636, 15
        %s638 = scalar_select %p637, %s636, 15
        %s639 = smul.addr %s638, 8
        %s640 = scalar_lea.vmem %s2, %s639
        %p641 = pneg %p116
        %p642 = pneg %p113
        %p643 = pneg %p137
        %p644 = pneg %p134
        %p645 = pneg %p158
        %p646 = pneg %p155
        %p647 = pneg %p179
        %p648 = pneg %p176
        %p649 = pneg %p200
        %p650 = pneg %p197
        %p651 = scmp.lt.s32.totalorder %s36, 2
        %s652 = scalar_select %p651, %s36, 2
        %s653 = smul.addr %s652, 16
        %s654 = smul.addr %s653, 4
        %s655 = scalar_lea.vmem %s7, %s654
        %p656 = pneg %p226
        %p657 = pneg %p223
        %p658 = scmp.lt.s32.totalorder %s36, 2
        %s659 = scalar_select %p658, %s36, 2
        %s660 = scalar_lea.vmem %s8, %s659
        %p661 = pneg %p252
        %p662 = pneg %p249
        %p663 = scmp.lt.s32.totalorder %s36, 2
        %s664 = scalar_select %p663, %s36, 2
        %s665 = smul.addr %s664, 16
        %s666 = smul.addr %s665, 4
        %s667 = scalar_lea.vmem %s9, %s666
        %p668 = pneg %p278
        %p669 = pneg %p275
        %p670 = scmp.lt.s32.totalorder %s36, 2
        %s671 = scalar_select %p670, %s36, 2
        %s672 = scalar_lea.vmem %s10, %s671
        %p673 = pneg %p304
        %p674 = pneg %p301
        %p675 = scmp.lt.s32.totalorder %s36, 2
        %s676 = scalar_select %p675, %s36, 2
        %s677 = smul.addr %s676, 16
        %s678 = smul.addr %s677, 4
        %s679 = scalar_lea.vmem %s11, %s678
        %p680 = pneg %p330
        %p681 = pneg %p327
        %p682 = scmp.lt.s32.totalorder %s36, 2
        %s683 = scalar_select %p682, %s36, 2
        %s684 = scalar_lea.vmem %s12, %s683
        %p685 = pneg %p356
        %p686 = pneg %p353
        %p687 = scmp.lt.s32.totalorder %s36, 2
        %s688 = scalar_select %p687, %s36, 2
        %s689 = smul.addr %s688, 64
        %s690 = smul.addr %s689, 4
        %s691 = scalar_lea.vmem %s13, %s690
        %p692 = pneg %p382
        %p693 = pneg %p379
        %p694 = scmp.lt.s32.totalorder %s36, 2
        %s695 = scalar_select %p694, %s36, 2
        %s696 = smul.addr %s695, 4
        %s697 = scalar_lea.vmem %s14, %s696
        %p698 = pneg %p408
        %p699 = pneg %p405
        %p700 = scmp.lt.s32.totalorder %s36, 2
        %s701 = scalar_select %p700, %s36, 2
        %s702 = smul.addr %s701, 64
        %s703 = smul.addr %s702, 4
        %s704 = scalar_lea.vmem %s15, %s703
        %p705 = pneg %p434
        %p706 = pneg %p431
        %p707 = scmp.lt.s32.totalorder %s36, 2
        %s708 = scalar_select %p707, %s36, 2
        %s709 = scalar_lea.vmem %s16, %s708
        %p710 = pneg %p460
        %p711 = pneg %p457
        %p712 = pneg %p486
        %p713 = pneg %p483
        %s714 = sand.u32 %s473, 1
        %s715 = scalar_lea.sflag [#allocation5], %s714
        %s716 = sand.u32 %s473, 1
        %s717 = smul.addr %s716, 64
        %s718 = scalar_lea.vmem [#allocation4], %s717
        %s719 = smul.u32 8, %s35
        %p720 = scmp.lt.s32.totalorder %s719, 15
        %s721 = scalar_select %p720, %s719, 15
        %s722 = smul.addr %s721, 8
        %s723 = scalar_lea.vmem %s0, %s722
        %s724 = smul.u32 8, %s35
        %s725 = smul.u32 8, %s35
        %p726 = scmp.lt.s32.totalorder %s725, 15
        %s727 = scalar_select %p726, %s725, 15
        %s728 = smul.addr %s727, 8
        %s729 = scalar_lea.vmem %s1, %s728
        %s730 = smul.u32 8, %s35
        %s731 = smul.u32 8, %s35
        %p732 = scmp.lt.s32.totalorder %s731, 15
        %s733 = scalar_select %p732, %s731, 15
        %s734 = smul.addr %s733, 8
        %s735 = scalar_lea.vmem %s2, %s734
        %s736 = smul.u32 8, %s35
        %p737 = scmp.lt.s32.totalorder %s36, 2
        %s738 = scalar_select %p737, %s36, 2
        %s739 = smul.addr %s738, 16
        %s740 = smul.addr %s739, 4
        %s741 = scalar_lea.vmem %s7, %s740
        %p742 = scmp.lt.s32.totalorder %s36, 2
        %s743 = scalar_select %p742, %s36, 2
        %s744 = scalar_lea.vmem %s8, %s743
        %p745 = scmp.lt.s32.totalorder %s36, 2
        %s746 = scalar_select %p745, %s36, 2
        %s747 = smul.addr %s746, 16
        %s748 = smul.addr %s747, 4
        %s749 = scalar_lea.vmem %s9, %s748
        %p750 = scmp.lt.s32.totalorder %s36, 2
        %s751 = scalar_select %p750, %s36, 2
        %s752 = scalar_lea.vmem %s10, %s751
        %p753 = scmp.lt.s32.totalorder %s36, 2
        %s754 = scalar_select %p753, %s36, 2
        %s755 = smul.addr %s754, 16
        %s756 = smul.addr %s755, 4
        %s757 = scalar_lea.vmem %s11, %s756
        %p758 = scmp.lt.s32.totalorder %s36, 2
        %s759 = scalar_select %p758, %s36, 2
        %s760 = scalar_lea.vmem %s12, %s759
        %p761 = scmp.lt.s32.totalorder %s36, 2
        %s762 = scalar_select %p761, %s36, 2
        %s763 = smul.addr %s762, 64
        %s764 = smul.addr %s763, 4
        %s765 = scalar_lea.vmem %s13, %s764
        %p766 = scmp.lt.s32.totalorder %s36, 2
        %s767 = scalar_select %p766, %s36, 2
        %s768 = smul.addr %s767, 4
        %s769 = scalar_lea.vmem %s14, %s768
        %p770 = scmp.lt.s32.totalorder %s36, 2
        %s771 = scalar_select %p770, %s36, 2
        %s772 = smul.addr %s771, 64
        %s773 = smul.addr %s772, 4
        %s774 = scalar_lea.vmem %s15, %s773
        %p775 = scmp.lt.s32.totalorder %s36, 2
        %s776 = scalar_select %p775, %s36, 2
        %s777 = scalar_lea.vmem %s16, %s776
        %s778 = smul.u32 8, %s35
        %p780 = scmp.eq.s32.totalorder %s36, 0
        // Predicated region
        $region89: #{ladder_forward.1} parent=87 // pred_check
          %p781 = pneg %p780
        $region90: #{ladder_forward.1} parent=87 // pred_check_branch
          %783 = sbr.rel (%p781) target = $region92
        $region91: #{ladder_forward.1} parent=87 // pred_region
          %v784 = vld [vmem:[%s729] sm:$0xff]
          %v785 = vld [vmem:[%s729 + $0x8] sm:$0xff]
          %v786 = vld [vmem:[%s729 + $0x10] sm:$0xff]
          %v787 = vld [vmem:[%s729 + $0x18] sm:$0xff]
          %v788 = vld [vmem:[%s729 + $0x20] sm:$0xff]
          %v789 = vld [vmem:[%s729 + $0x28] sm:$0xff]
          %v790 = vld [vmem:[%s729 + $0x30] sm:$0xff]
          %v791 = vld [vmem:[%s729 + $0x38] sm:$0xff]
          %v792 = vld [vmem:[%s735] sm:$0xff]
          %v793 = vld [vmem:[%s735 + $0x8] sm:$0xff]
          %v794 = vld [vmem:[%s735 + $0x10] sm:$0xff]
          %v795 = vld [vmem:[%s735 + $0x18] sm:$0xff]
          %v796 = vld [vmem:[%s735 + $0x20] sm:$0xff]
          %v797 = vld [vmem:[%s735 + $0x28] sm:$0xff]
          %v798 = vld [vmem:[%s735 + $0x30] sm:$0xff]
          %v799 = vld [vmem:[%s735 + $0x38] sm:$0xff]
          %v800 = vpack.c.bf16 %v785, %v784
          %v801 = vpack.c.bf16 %v787, %v786
          %v802 = vpack.c.bf16 %v789, %v788
          %v803 = vpack.c.bf16 %v791, %v790
          %v804 = vpack.c.bf16 %v793, %v792
          %v805 = vpack.c.bf16 %v795, %v794
          %v806 = vpack.c.bf16 %v797, %v796
          %v807 = vpack.c.bf16 %v799, %v798
          %v808 = vld [vmem:[%s3] sm:$0xf]
          %v809 = vld [vmem:[%s3 + $0x4] sm:$0xf]
          %v810 = vld [vmem:[%s3 + $0x8] sm:$0xf]
          %v811 = vld [vmem:[%s3 + $0xc] sm:$0xf]
          %v812 = vld [vmem:[%s3 + $0x10] sm:$0xf]
          %v813 = vld [vmem:[%s3 + $0x14] sm:$0xf]
          %v814 = vld [vmem:[%s3 + $0x18] sm:$0xf]
          %v815 = vld [vmem:[%s3 + $0x1c] sm:$0xf]
          %v816 = vld [vmem:[%s3 + $0x20] sm:$0xf]
          %v817 = vld [vmem:[%s3 + $0x24] sm:$0xf]
          %v818 = vld [vmem:[%s3 + $0x28] sm:$0xf]
          %v819 = vld [vmem:[%s3 + $0x2c] sm:$0xf]
          %v820 = vld [vmem:[%s3 + $0x30] sm:$0xf]
          %v821 = vld [vmem:[%s3 + $0x34] sm:$0xf]
          %v822 = vld [vmem:[%s3 + $0x38] sm:$0xf]
          %v823 = vld [vmem:[%s3 + $0x3c] sm:$0xf]
          %v824 = vld [vmem:[%s4] sm:$0x1]
          %v826 = vlaneseq
          %v827 = vshrl.u32 %v826, 7
          %v828 = vsub.s32 0, %v827
          %v829 = vrot.slane %v824, %v828
          %v847 = vunpack.c.l.b16 %v808
          %v848 = vunpack.c.l.b16 %v809
          %v849 = vunpack.c.l.b16 %v810
          %v850 = vunpack.c.l.b16 %v811
          %v851 = vunpack.c.l.b16 %v812
          %v852 = vunpack.c.l.b16 %v813
          %v853 = vunpack.c.l.b16 %v814
          %v854 = vunpack.c.l.b16 %v815
          %v855 = vunpack.c.l.b16 %v816
          %v856 = vunpack.c.l.b16 %v817
          %v857 = vunpack.c.l.b16 %v818
          %v858 = vunpack.c.l.b16 %v819
          %v859 = vunpack.c.l.b16 %v820
          %v860 = vunpack.c.l.b16 %v821
          %v861 = vunpack.c.l.b16 %v822
          %v862 = vunpack.c.l.b16 %v823
          %v863 = vpack.c.b16 %v848, %v847
          %v864 = vpack.c.b16 %v850, %v849
          %v865 = vpack.c.b16 %v852, %v851
          %v866 = vpack.c.b16 %v854, %v853
          %v867 = vpack.c.b16 %v856, %v855
          %v868 = vpack.c.b16 %v858, %v857
          %v869 = vpack.c.b16 %v860, %v859
          %v870 = vpack.c.b16 %v862, %v861
          %879 = vmatprep.subr.bf16.mxu0 0
          %880 = vmatpush1.bf16.msra.mxu0 %v863
          %881 = vmatprep.subr.bf16.mxu0 0
          %882 = vmatpush1.bf16.msra.mxu0 %v864
          %883 = vmatprep.subr.bf16.mxu0 0
          %884 = vmatpush1.bf16.msra.mxu0 %v865
          %885 = vmatprep.subr.bf16.mxu0 0
          %886 = vmatpush1.bf16.msra.mxu0 %v866
          %887 = vmatprep.subr.bf16.mxu0 0
          %888 = vmatpush1.bf16.msra.mxu0 %v867
          %889 = vmatprep.subr.bf16.mxu0 0
          %890 = vmatpush1.bf16.msra.mxu0 %v868
          %891 = vmatprep.subr.bf16.mxu0 0
          %892 = vmatpush1.bf16.msra.mxu0 %v869
          %893 = vmatprep.subr.bf16.mxu0 0
          %894 = vmatpush1.bf16.msra.mxu0 %v870
          %895 = vmatprep.subr.bf16.mxu0 0
          %896 = vmatpush1.bf16.msra.mxu0 0
          %897 = vmatprep.subr.bf16.mxu0 0
          %898 = vmatpush1.bf16.msra.mxu0 0
          %899 = vmatprep.subr.bf16.mxu0 0
          %900 = vmatpush1.bf16.msra.mxu0 0
          %901 = vmatprep.subr.bf16.mxu0 0
          %902 = vmatpush1.bf16.msra.mxu0 0
          %903 = vmatprep.subr.bf16.mxu0 0
          %904 = vmatpush1.bf16.msra.mxu0 0
          %905 = vmatprep.subr.bf16.mxu0 0
          %906 = vmatpush1.bf16.msra.mxu0 0
          %907 = vmatprep.subr.bf16.mxu0 0
          %908 = vmatpush1.bf16.msra.mxu0 0
          %909 = vmatprep.subr.bf16.mxu0 0
          %910 = vmatpush1.bf16.msra.mxu0 0
          %911 = vmatprep.mubr.bf16.mxu0 0
          %912 = vmatmul.mubr.bf16.gmra.mrb[0].mxu0 %v800
          %v913 = vpop.f32.mrb[0].mxu0
          %v914 = vadd.f32 %v829, %v913
          %v915 = vpop.f32.mrb[0].mxu0
          %v916 = vpop.f32.mrb[0].mxu0
          %v917 = vadd.f32 %v829, %v916
          %v918 = vpop.f32.mrb[0].mxu0
          %919 = vmatprep.mubr.bf16.mxu0 0
          %920 = vmatmul.mubr.bf16.gmra.mrb[0].mxu0 %v801
          %v921 = vpop.f32.mrb[0].mxu0
          %v922 = vadd.f32 %v829, %v921
          %v923 = vpop.f32.mrb[0].mxu0
          %v924 = vpop.f32.mrb[0].mxu0
          %v925 = vadd.f32 %v829, %v924
          %v926 = vpop.f32.mrb[0].mxu0
          %927 = vmatprep.mubr.bf16.mxu0 0
          %928 = vmatmul.mubr.bf16.gmra.mrb[0].mxu0 %v802
          %v929 = vpop.f32.mrb[0].mxu0
          %v930 = vadd.f32 %v829, %v929
          %v931 = vpop.f32.mrb[0].mxu0
          %v932 = vpop.f32.mrb[0].mxu0
          %v933 = vadd.f32 %v829, %v932
          %v934 = vpop.f32.mrb[0].mxu0
          %935 = vmatprep.mubr.bf16.mxu0 0
          %936 = vmatmul.mubr.bf16.gmra.mrb[0].mxu0 %v803
          %v937 = vpop.f32.mrb[0].mxu0
          %v938 = vadd.f32 %v829, %v937
          %v939 = vpop.f32.mrb[0].mxu0
          %v940 = vpop.f32.mrb[0].mxu0
          %v941 = vadd.f32 %v829, %v940
          %v942 = vpop.f32.mrb[0].mxu0
          %943 = vmatprep.mubr.bf16.mxu0 0
          %944 = vmatmul.mubr.bf16.gmra.mrb[0].mxu0 %v804
          %v945 = vpop.f32.mrb[0].mxu0
          %v946 = vadd.f32 %v829, %v945
          %v947 = vpop.f32.mrb[0].mxu0
          %v948 = vpop.f32.mrb[0].mxu0
          %v949 = vadd.f32 %v829, %v948
          %v950 = vpop.f32.mrb[0].mxu0
          %951 = vmatprep.mubr.bf16.mxu0 0
          %952 = vmatmul.mubr.bf16.gmra.mrb[0].mxu0 %v805
          %v953 = vpop.f32.mrb[0].mxu0
          %v954 = vadd.f32 %v829, %v953
          %v955 = vpop.f32.mrb[0].mxu0
          %v956 = vpop.f32.mrb[0].mxu0
          %v957 = vadd.f32 %v829, %v956
          %v958 = vpop.f32.mrb[0].mxu0
          %959 = vmatprep.mubr.bf16.mxu0 0
          %960 = vmatmul.mubr.bf16.gmra.mrb[0].mxu0 %v806
          %v961 = vpop.f32.mrb[0].mxu0
          %v962 = vadd.f32 %v829, %v961
          %v963 = vpop.f32.mrb[0].mxu0
          %v964 = vpop.f32.mrb[0].mxu0
          %v965 = vadd.f32 %v829, %v964
          %v966 = vpop.f32.mrb[0].mxu0
          %967 = vmatprep.mubr.bf16.mxu0 0
          %968 = vmatmul.mubr.bf16.gmra.mrb[0].mxu0 %v807
          %v969 = vpop.f32.mrb[0].mxu0
          %v970 = vadd.f32 %v829, %v969
          %v971 = vpop.f32.mrb[0].mxu0
          %v972 = vpop.f32.mrb[0].mxu0
          %v973 = vadd.f32 %v829, %v972
          %v974 = vpop.f32.mrb[0].mxu0
          %975 = vdwg.mxu0
          %976 = vst [vmem:[#allocation2] sm:$0xff] %v914
          %977 = vst [vmem:[#allocation2 + $0x8] sm:$0xff] %v917
          %978 = vst [vmem:[#allocation2 + $0x10] sm:$0xff] %v922
          %979 = vst [vmem:[#allocation2 + $0x18] sm:$0xff] %v925
          %980 = vst [vmem:[#allocation2 + $0x20] sm:$0xff] %v930
          %981 = vst [vmem:[#allocation2 + $0x28] sm:$0xff] %v933
          %982 = vst [vmem:[#allocation2 + $0x30] sm:$0xff] %v938
          %983 = vst [vmem:[#allocation2 + $0x38] sm:$0xff] %v941
          %984 = vst [vmem:[#allocation3] sm:$0xff] %v946
          %985 = vst [vmem:[#allocation3 + $0x8] sm:$0xff] %v949
          %986 = vst [vmem:[#allocation3 + $0x10] sm:$0xff] %v954
          %987 = vst [vmem:[#allocation3 + $0x18] sm:$0xff] %v957
          %988 = vst [vmem:[#allocation3 + $0x20] sm:$0xff] %v962
          %989 = vst [vmem:[#allocation3 + $0x28] sm:$0xff] %v965
          %990 = vst [vmem:[#allocation3 + $0x30] sm:$0xff] %v970
          %991 = vst [vmem:[#allocation3 + $0x38] sm:$0xff] %v973
        $region92: #{ladder_forward.1} parent=87 // pred_fallthru
          _
        %p992 = scmp.eq.s32.totalorder %s36, 1
        // Predicated region
        $region93: #{ladder_forward.1} parent=87 // pred_check
          %p993 = pneg %p992
        $region94: #{ladder_forward.1} parent=87 // pred_check_branch
          %995 = sbr.rel (%p993) target = $region96
        $region95: #{ladder_forward.1} parent=87 // pred_region
          %v996 = vld [vmem:[#allocation2] sm:$0xff]
          %v997 = vld [vmem:[#allocation2 + $0x8] sm:$0xff]
          %v998 = vld [vmem:[#allocation2 + $0x10] sm:$0xff]
          %v999 = vld [vmem:[#allocation2 + $0x18] sm:$0xff]
          %v1000 = vld [vmem:[#allocation2 + $0x20] sm:$0xff]
          %v1001 = vld [vmem:[#allocation2 + $0x28] sm:$0xff]
          %v1002 = vld [vmem:[#allocation2 + $0x30] sm:$0xff]
          %v1003 = vld [vmem:[#allocation2 + $0x38] sm:$0xff]
          %v1004 = vld [vmem:[#allocation3] sm:$0xff]
          %v1005 = vld [vmem:[#allocation3 + $0x8] sm:$0xff]
          %v1006 = vld [vmem:[#allocation3 + $0x10] sm:$0xff]
          %v1007 = vld [vmem:[#allocation3 + $0x18] sm:$0xff]
          %v1008 = vld [vmem:[#allocation3 + $0x20] sm:$0xff]
          %v1009 = vld [vmem:[#allocation3 + $0x28] sm:$0xff]
          %v1010 = vld [vmem:[#allocation3 + $0x30] sm:$0xff]
          %v1011 = vld [vmem:[#allocation3 + $0x38] sm:$0xff]
          %v1012 = vadd.f32 %v996, %v1004
          %v1013 = vadd.f32 %v997, %v1005
          %v1014 = vadd.f32 %v998, %v1006
          %v1015 = vadd.f32 %v999, %v1007
          %v1016 = vadd.f32 %v1000, %v1008
          %v1017 = vadd.f32 %v1001, %v1009
          %v1018 = vadd.f32 %v1002, %v1010
          %v1019 = vadd.f32 %v1003, %v1011
          %1020 = vst [vmem:[#allocation2] sm:$0xff] %v1012
          %1021 = vst [vmem:[#allocation2 + $0x8] sm:$0xff] %v1013
          %1022 = vst [vmem:[#allocation2 + $0x10] sm:$0xff] %v1014
          %1023 = vst [vmem:[#allocation2 + $0x18] sm:$0xff] %v1015
          %1024 = vst [vmem:[#allocation2 + $0x20] sm:$0xff] %v1016
          %1025 = vst [vmem:[#allocation2 + $0x28] sm:$0xff] %v1017
          %1026 = vst [vmem:[#allocation2 + $0x30] sm:$0xff] %v1018
          %1027 = vst [vmem:[#allocation2 + $0x38] sm:$0xff] %v1019
        $region96: #{ladder_forward.1} parent=87 // pred_fallthru
          _
        %v1028 = vld [vmem:[#allocation2] sm:$0xff]
        %v1029 = vld [vmem:[#allocation2 + $0x8] sm:$0xff]
        %v1030 = vld [vmem:[#allocation2 + $0x10] sm:$0xff]
        %v1031 = vld [vmem:[#allocation2 + $0x18] sm:$0xff]
        %v1032 = vld [vmem:[#allocation2 + $0x20] sm:$0xff]
        %v1033 = vld [vmem:[#allocation2 + $0x28] sm:$0xff]
        %v1034 = vld [vmem:[#allocation2 + $0x30] sm:$0xff]
        %v1035 = vld [vmem:[#allocation2 + $0x38] sm:$0xff]
        %v1036 = vpack.c.bf16 %v1029, %v1028
        %v1037 = vpack.c.bf16 %v1031, %v1030
        %v1038 = vpack.c.bf16 %v1033, %v1032
        %v1039 = vpack.c.bf16 %v1035, %v1034
        %v1040 = vld [vmem:[%s741] sm:$0xf]
        %v1041 = vld [vmem:[%s741 + $0x4] sm:$0xf]
        %v1042 = vld [vmem:[%s741 + $0x8] sm:$0xf]
        %v1043 = vld [vmem:[%s741 + $0xc] sm:$0xf]
        %v1044 = vld [vmem:[%s741 + $0x10] sm:$0xf]
        %v1045 = vld [vmem:[%s741 + $0x14] sm:$0xf]
        %v1046 = vld [vmem:[%s741 + $0x18] sm:$0xf]
        %v1047 = vld [vmem:[%s741 + $0x1c] sm:$0xf]
        %v1048 = vld [vmem:[%s741 + $0x20] sm:$0xf]
        %v1049 = vld [vmem:[%s741 + $0x24] sm:$0xf]
        %v1050 = vld [vmem:[%s741 + $0x28] sm:$0xf]
        %v1051 = vld [vmem:[%s741 + $0x2c] sm:$0xf]
        %v1052 = vld [vmem:[%s741 + $0x30] sm:$0xf]
        %v1053 = vld [vmem:[%s741 + $0x34] sm:$0xf]
        %v1054 = vld [vmem:[%s741 + $0x38] sm:$0xf]
        %v1055 = vld [vmem:[%s741 + $0x3c] sm:$0xf]
        %v1056 = vld [vmem:[%s744] sm:$0x1]
        %v1058 = vlaneseq
        %v1059 = vshrl.u32 %v1058, 7
        %v1060 = vsub.s32 0, %v1059
        %v1061 = vrot.slane %v1056, %v1060
        %v1079 = vunpack.c.l.b16 %v1040
        %v1080 = vunpack.c.l.b16 %v1041
        %v1081 = vunpack.c.l.b16 %v1042
        %v1082 = vunpack.c.l.b16 %v1043
        %v1083 = vunpack.c.l.b16 %v1044
        %v1084 = vunpack.c.l.b16 %v1045
        %v1085 = vunpack.c.l.b16 %v1046
        %v1086 = vunpack.c.l.b16 %v1047
        %v1087 = vunpack.c.l.b16 %v1048
        %v1088 = vunpack.c.l.b16 %v1049
        %v1089 = vunpack.c.l.b16 %v1050
        %v1090 = vunpack.c.l.b16 %v1051
        %v1091 = vunpack.c.l.b16 %v1052
        %v1092 = vunpack.c.l.b16 %v1053
        %v1093 = vunpack.c.l.b16 %v1054
        %v1094 = vunpack.c.l.b16 %v1055
        %v1095 = vpack.c.b16 %v1080, %v1079
        %v1096 = vpack.c.b16 %v1082, %v1081
        %v1097 = vpack.c.b16 %v1084, %v1083
        %v1098 = vpack.c.b16 %v1086, %v1085
        %v1099 = vpack.c.b16 %v1088, %v1087
        %v1100 = vpack.c.b16 %v1090, %v1089
        %v1101 = vpack.c.b16 %v1092, %v1091
        %v1102 = vpack.c.b16 %v1094, %v1093
        %1111 = vmatprep.subr.bf16.mxu0 0
        %1112 = vmatpush1.bf16.msra.mxu0 %v1095
        %1113 = vmatprep.subr.bf16.mxu0 0
        %1114 = vmatpush1.bf16.msra.mxu0 %v1096
        %1115 = vmatprep.subr.bf16.mxu0 0
        %1116 = vmatpush1.bf16.msra.mxu0 %v1097
        %1117 = vmatprep.subr.bf16.mxu0 0
        %1118 = vmatpush1.bf16.msra.mxu0 %v1098
        %1119 = vmatprep.subr.bf16.mxu0 0
        %1120 = vmatpush1.bf16.msra.mxu0 %v1099
        %1121 = vmatprep.subr.bf16.mxu0 0
        %1122 = vmatpush1.bf16.msra.mxu0 %v1100
        %1123 = vmatprep.subr.bf16.mxu0 0
        %1124 = vmatpush1.bf16.msra.mxu0 %v1101
        %1125 = vmatprep.subr.bf16.mxu0 0
        %1126 = vmatpush1.bf16.msra.mxu0 %v1102
        %1127 = vmatprep.subr.bf16.mxu0 0
        %1128 = vmatpush1.bf16.msra.mxu0 0
        %1129 = vmatprep.subr.bf16.mxu0 0
        %1130 = vmatpush1.bf16.msra.mxu0 0
        %1131 = vmatprep.subr.bf16.mxu0 0
        %1132 = vmatpush1.bf16.msra.mxu0 0
        %1133 = vmatprep.subr.bf16.mxu0 0
        %1134 = vmatpush1.bf16.msra.mxu0 0
        %1135 = vmatprep.subr.bf16.mxu0 0
        %1136 = vmatpush1.bf16.msra.mxu0 0
        %1137 = vmatprep.subr.bf16.mxu0 0
        %1138 = vmatpush1.bf16.msra.mxu0 0
        %1139 = vmatprep.subr.bf16.mxu0 0
        %1140 = vmatpush1.bf16.msra.mxu0 0
        %1141 = vmatprep.subr.bf16.mxu0 0
        %1142 = vmatpush1.bf16.msra.mxu0 0
        %1143 = vmatprep.mubr.bf16.mxu0 0
        %1144 = vmatmul.mubr.bf16.gmra.mrb[0].mxu0 %v1036
        %v1145 = vpop.f32.mrb[0].mxu0
        %v1146 = vadd.f32 %v1061, %v1145
        %v1147 = vpop.f32.mrb[0].mxu0
        %v1148 = vpop.f32.mrb[0].mxu0
        %v1149 = vadd.f32 %v1061, %v1148
        %v1150 = vpop.f32.mrb[0].mxu0
        %1151 = vmatprep.mubr.bf16.mxu0 0
        %1152 = vmatmul.mubr.bf16.gmra.mrb[0].mxu0 %v1037
        %v1153 = vpop.f32.mrb[0].mxu0
        %v1154 = vadd.f32 %v1061, %v1153
        %v1155 = vpop.f32.mrb[0].mxu0
        %v1156 = vpop.f32.mrb[0].mxu0
        %v1157 = vadd.f32 %v1061, %v1156
        %v1158 = vpop.f32.mrb[0].mxu0
        %1159 = vmatprep.mubr.bf16.mxu0 0
        %1160 = vmatmul.mubr.bf16.gmra.mrb[0].mxu0 %v1038
        %v1161 = vpop.f32.mrb[0].mxu0
        %v1162 = vadd.f32 %v1061, %v1161
        %v1163 = vpop.f32.mrb[0].mxu0
        %v1164 = vpop.f32.mrb[0].mxu0
        %v1165 = vadd.f32 %v1061, %v1164
        %v1166 = vpop.f32.mrb[0].mxu0
        %1167 = vmatprep.mubr.bf16.mxu0 0
        %1168 = vmatmul.mubr.bf16.gmra.mrb[0].mxu0 %v1039
        %v1169 = vpop.f32.mrb[0].mxu0
        %v1170 = vadd.f32 %v1061, %v1169
        %v1171 = vpop.f32.mrb[0].mxu0
        %v1172 = vpop.f32.mrb[0].mxu0
        %v1173 = vadd.f32 %v1061, %v1172
        %v1174 = vpop.f32.mrb[0].mxu0
        %1175 = vdwg.mxu0
        %v1176 = vld [vmem:[%s749] sm:$0xf]
        %v1177 = vld [vmem:[%s749 + $0x4] sm:$0xf]
        %v1178 = vld [vmem:[%s749 + $0x8] sm:$0xf]
        %v1179 = vld [vmem:[%s749 + $0xc] sm:$0xf]
        %v1180 = vld [vmem:[%s749 + $0x10] sm:$0xf]
        %v1181 = vld [vmem:[%s749 + $0x14] sm:$0xf]
        %v1182 = vld [vmem:[%s749 + $0x18] sm:$0xf]
        %v1183 = vld [vmem:[%s749 + $0x1c] sm:$0xf]
        %v1184 = vld [vmem:[%s749 + $0x20] sm:$0xf]
        %v1185 = vld [vmem:[%s749 + $0x24] sm:$0xf]
        %v1186 = vld [vmem:[%s749 + $0x28] sm:$0xf]
        %v1187 = vld [vmem:[%s749 + $0x2c] sm:$0xf]
        %v1188 = vld [vmem:[%s749 + $0x30] sm:$0xf]
        %v1189 = vld [vmem:[%s749 + $0x34] sm:$0xf]
        %v1190 = vld [vmem:[%s749 + $0x38] sm:$0xf]
        %v1191 = vld [vmem:[%s749 + $0x3c] sm:$0xf]
        %v1192 = vld [vmem:[%s752] sm:$0x1]
        %v1194 = vlaneseq
        %v1195 = vshrl.u32 %v1194, 7
        %v1196 = vsub.s32 0, %v1195
        %v1197 = vrot.slane %v1192, %v1196
        %v1215 = vunpack.c.l.b16 %v1176
        %v1216 = vunpack.c.l.b16 %v1177
        %v1217 = vunpack.c.l.b16 %v1178
        %v1218 = vunpack.c.l.b16 %v1179
        %v1219 = vunpack.c.l.b16 %v1180
        %v1220 = vunpack.c.l.b16 %v1181
        %v1221 = vunpack.c.l.b16 %v1182
        %v1222 = vunpack.c.l.b16 %v1183
        %v1223 = vunpack.c.l.b16 %v1184
        %v1224 = vunpack.c.l.b16 %v1185
        %v1225 = vunpack.c.l.b16 %v1186
        %v1226 = vunpack.c.l.b16 %v1187
        %v1227 = vunpack.c.l.b16 %v1188
        %v1228 = vunpack.c.l.b16 %v1189
        %v1229 = vunpack.c.l.b16 %v1190
        %v1230 = vunpack.c.l.b16 %v1191
        %v1231 = vpack.c.b16 %v1216, %v1215
        %v1232 = vpack.c.b16 %v1218, %v1217
        %v1233 = vpack.c.b16 %v1220, %v1219
        %v1234 = vpack.c.b16 %v1222, %v1221
        %v1235 = vpack.c.b16 %v1224, %v1223
        %v1236 = vpack.c.b16 %v1226, %v1225
        %v1237 = vpack.c.b16 %v1228, %v1227
        %v1238 = vpack.c.b16 %v1230, %v1229
        %1247 = vmatprep.subr.bf16.mxu0 0
        %1248 = vmatpush1.bf16.msra.mxu0 %v1231
        %1249 = vmatprep.subr.bf16.mxu0 0
        %1250 = vmatpush1.bf16.msra.mxu0 %v1232
        %1251 = vmatprep.subr.bf16.mxu0 0
        %1252 = vmatpush1.bf16.msra.mxu0 %v1233
        %1253 = vmatprep.subr.bf16.mxu0 0
        %1254 = vmatpush1.bf16.msra.mxu0 %v1234
        %1255 = vmatprep.subr.bf16.mxu0 0
        %1256 = vmatpush1.bf16.msra.mxu0 %v1235
        %1257 = vmatprep.subr.bf16.mxu0 0
        %1258 = vmatpush1.bf16.msra.mxu0 %v1236
        %1259 = vmatprep.subr.bf16.mxu0 0
        %1260 = vmatpush1.bf16.msra.mxu0 %v1237
        %1261 = vmatprep.subr.bf16.mxu0 0
        %1262 = vmatpush1.bf16.msra.mxu0 %v1238
        %1263 = vmatprep.subr.bf16.mxu0 0
        %1264 = vmatpush1.bf16.msra.mxu0 0
        %1265 = vmatprep.subr.bf16.mxu0 0
        %1266 = vmatpush1.bf16.msra.mxu0 0
        %1267 = vmatprep.subr.bf16.mxu0 0
        %1268 = vmatpush1.bf16.msra.mxu0 0
        %1269 = vmatprep.subr.bf16.mxu0 0
        %1270 = vmatpush1.bf16.msra.mxu0 0
        %1271 = vmatprep.subr.bf16.mxu0 0
        %1272 = vmatpush1.bf16.msra.mxu0 0
        %1273 = vmatprep.subr.bf16.mxu0 0
        %1274 = vmatpush1.bf16.msra.mxu0 0
        %1275 = vmatprep.subr.bf16.mxu0 0
        %1276 = vmatpush1.bf16.msra.mxu0 0
        %1277 = vmatprep.subr.bf16.mxu0 0
        %1278 = vmatpush1.bf16.msra.mxu0 0
        %1279 = vmatprep.mubr.bf16.mxu0 0
        %1280 = vmatmul.mubr.bf16.gmra.mrb[0].mxu0 %v1036
        %v1281 = vpop.f32.mrb[0].mxu0
        %v1282 = vadd.f32 %v1197, %v1281
        %v1283 = vpop.f32.mrb[0].mxu0
        %v1284 = vpop.f32.mrb[0].mxu0
        %v1285 = vadd.f32 %v1197, %v1284
        %v1286 = vpop.f32.mrb[0].mxu0
        %1287 = vmatprep.mubr.bf16.mxu0 0
        %1288 = vmatmul.mubr.bf16.gmra.mrb[0].mxu0 %v1037
        %v1289 = vpop.f32.mrb[0].mxu0
        %v1290 = vadd.f32 %v1197, %v1289
        %v1291 = vpop.f32.mrb[0].mxu0
        %v1292 = vpop.f32.mrb[0].mxu0
        %v1293 = vadd.f32 %v1197, %v1292
        %v1294 = vpop.f32.mrb[0].mxu0
        %1295 = vmatprep.mubr.bf16.mxu0 0
        %1296 = vmatmul.mubr.bf16.gmra.mrb[0].mxu0 %v1038
        %v1297 = vpop.f32.mrb[0].mxu0
        %v1298 = vadd.f32 %v1197, %v1297
        %v1299 = vpop.f32.mrb[0].mxu0
        %v1300 = vpop.f32.mrb[0].mxu0
        %v1301 = vadd.f32 %v1197, %v1300
        %v1302 = vpop.f32.mrb[0].mxu0
        %1303 = vmatprep.mubr.bf16.mxu0 0
        %1304 = vmatmul.mubr.bf16.gmra.mrb[0].mxu0 %v1039
        %v1305 = vpop.f32.mrb[0].mxu0
        %v1306 = vadd.f32 %v1197, %v1305
        %v1307 = vpop.f32.mrb[0].mxu0
        %v1308 = vpop.f32.mrb[0].mxu0
        %v1309 = vadd.f32 %v1197, %v1308
        %v1310 = vpop.f32.mrb[0].mxu0
        %1311 = vdwg.mxu0
        %v1312 = vld [vmem:[%s757] sm:$0xf]
        %v1313 = vld [vmem:[%s757 + $0x4] sm:$0xf]
        %v1314 = vld [vmem:[%s757 + $0x8] sm:$0xf]
        %v1315 = vld [vmem:[%s757 + $0xc] sm:$0xf]
        %v1316 = vld [vmem:[%s757 + $0x10] sm:$0xf]
        %v1317 = vld [vmem:[%s757 + $0x14] sm:$0xf]
        %v1318 = vld [vmem:[%s757 + $0x18] sm:$0xf]
        %v1319 = vld [vmem:[%s757 + $0x1c] sm:$0xf]
        %v1320 = vld [vmem:[%s757 + $0x20] sm:$0xf]
        %v1321 = vld [vmem:[%s757 + $0x24] sm:$0xf]
        %v1322 = vld [vmem:[%s757 + $0x28] sm:$0xf]
        %v1323 = vld [vmem:[%s757 + $0x2c] sm:$0xf]
        %v1324 = vld [vmem:[%s757 + $0x30] sm:$0xf]
        %v1325 = vld [vmem:[%s757 + $0x34] sm:$0xf]
        %v1326 = vld [vmem:[%s757 + $0x38] sm:$0xf]
        %v1327 = vld [vmem:[%s757 + $0x3c] sm:$0xf]
        %v1328 = vld [vmem:[%s760] sm:$0x1]
        %v1330 = vlaneseq
        %v1331 = vshrl.u32 %v1330, 7
        %v1332 = vsub.s32 0, %v1331
        %v1333 = vrot.slane %v1328, %v1332
        %v1351 = vunpack.c.l.b16 %v1312
        %v1352 = vunpack.c.l.b16 %v1313
        %v1353 = vunpack.c.l.b16 %v1314
        %v1354 = vunpack.c.l.b16 %v1315
        %v1355 = vunpack.c.l.b16 %v1316
        %v1356 = vunpack.c.l.b16 %v1317
        %v1357 = vunpack.c.l.b16 %v1318
        %v1358 = vunpack.c.l.b16 %v1319
        %v1359 = vunpack.c.l.b16 %v1320
        %v1360 = vunpack.c.l.b16 %v1321
        %v1361 = vunpack.c.l.b16 %v1322
        %v1362 = vunpack.c.l.b16 %v1323
        %v1363 = vunpack.c.l.b16 %v1324
        %v1364 = vunpack.c.l.b16 %v1325
        %v1365 = vunpack.c.l.b16 %v1326
        %v1366 = vunpack.c.l.b16 %v1327
        %v1367 = vpack.c.b16 %v1352, %v1351
        %v1368 = vpack.c.b16 %v1354, %v1353
        %v1369 = vpack.c.b16 %v1356, %v1355
        %v1370 = vpack.c.b16 %v1358, %v1357
        %v1371 = vpack.c.b16 %v1360, %v1359
        %v1372 = vpack.c.b16 %v1362, %v1361
        %v1373 = vpack.c.b16 %v1364, %v1363
        %v1374 = vpack.c.b16 %v1366, %v1365
        %1383 = vmatprep.subr.bf16.mxu0 0
        %1384 = vmatpush1.bf16.msra.mxu0 %v1367
        %1385 = vmatprep.subr.bf16.mxu0 0
        %1386 = vmatpush1.bf16.msra.mxu0 %v1368
        %1387 = vmatprep.subr.bf16.mxu0 0
        %1388 = vmatpush1.bf16.msra.mxu0 %v1369
        %1389 = vmatprep.subr.bf16.mxu0 0
        %1390 = vmatpush1.bf16.msra.mxu0 %v1370
        %1391 = vmatprep.subr.bf16.mxu0 0
        %1392 = vmatpush1.bf16.msra.mxu0 %v1371
        %1393 = vmatprep.subr.bf16.mxu0 0
        %1394 = vmatpush1.bf16.msra.mxu0 %v1372
        %1395 = vmatprep.subr.bf16.mxu0 0
        %1396 = vmatpush1.bf16.msra.mxu0 %v1373
        %1397 = vmatprep.subr.bf16.mxu0 0
        %1398 = vmatpush1.bf16.msra.mxu0 %v1374
        %1399 = vmatprep.subr.bf16.mxu0 0
        %1400 = vmatpush1.bf16.msra.mxu0 0
        %1401 = vmatprep.subr.bf16.mxu0 0
        %1402 = vmatpush1.bf16.msra.mxu0 0
        %1403 = vmatprep.subr.bf16.mxu0 0
        %1404 = vmatpush1.bf16.msra.mxu0 0
        %1405 = vmatprep.subr.bf16.mxu0 0
        %1406 = vmatpush1.bf16.msra.mxu0 0
        %1407 = vmatprep.subr.bf16.mxu0 0
        %1408 = vmatpush1.bf16.msra.mxu0 0
        %1409 = vmatprep.subr.bf16.mxu0 0
        %1410 = vmatpush1.bf16.msra.mxu0 0
        %1411 = vmatprep.subr.bf16.mxu0 0
        %1412 = vmatpush1.bf16.msra.mxu0 0
        %1413 = vmatprep.subr.bf16.mxu0 0
        %1414 = vmatpush1.bf16.msra.mxu0 0
        %1415 = vmatprep.mubr.bf16.mxu0 0
        %1416 = vmatmul.mubr.bf16.gmra.mrb[0].mxu0 %v1036
        %v1417 = vpop.f32.mrb[0].mxu0
        %v1418 = vadd.f32 %v1333, %v1417
        %v1419 = vpop.f32.mrb[0].mxu0
        %v1420 = vpop.f32.mrb[0].mxu0
        %v1421 = vadd.f32 %v1333, %v1420
        %v1422 = vpop.f32.mrb[0].mxu0
        %1423 = vmatprep.mubr.bf16.mxu0 0
        %1424 = vmatmul.mubr.bf16.gmra.mrb[0].mxu0 %v1037
        %v1425 = vpop.f32.mrb[0].mxu0
        %v1426 = vadd.f32 %v1333, %v1425
        %v1427 = vpop.f32.mrb[0].mxu0
        %v1428 = vpop.f32.mrb[0].mxu0
        %v1429 = vadd.f32 %v1333, %v1428
        %v1430 = vpop.f32.mrb[0].mxu0
        %1431 = vmatprep.mubr.bf16.mxu0 0
        %1432 = vmatmul.mubr.bf16.gmra.mrb[0].mxu0 %v1038
        %v1433 = vpop.f32.mrb[0].mxu0
        %v1434 = vadd.f32 %v1333, %v1433
        %v1435 = vpop.f32.mrb[0].mxu0
        %v1436 = vpop.f32.mrb[0].mxu0
        %v1437 = vadd.f32 %v1333, %v1436
        %v1438 = vpop.f32.mrb[0].mxu0
        %1439 = vmatprep.mubr.bf16.mxu0 0
        %1440 = vmatmul.mubr.bf16.gmra.mrb[0].mxu0 %v1039
        %v1441 = vpop.f32.mrb[0].mxu0
        %v1442 = vadd.f32 %v1333, %v1441
        %v1443 = vpop.f32.mrb[0].mxu0
        %v1444 = vpop.f32.mrb[0].mxu0
        %v1445 = vadd.f32 %v1333, %v1444
        %v1446 = vpop.f32.mrb[0].mxu0
        %1447 = vdwg.mxu0
        %v1448 = vpack.c.bf16 %v1146, %v1146
        %v1449 = vpack.c.bf16 %v1149, %v1149
        %v1450 = vpack.c.bf16 %v1154, %v1154
        %v1451 = vpack.c.bf16 %v1157, %v1157
        %v1452 = vpack.c.bf16 %v1162, %v1162
        %v1453 = vpack.c.bf16 %v1165, %v1165
        %v1454 = vpack.c.bf16 %v1170, %v1170
        %v1455 = vpack.c.bf16 %v1173, %v1173
        %v1456 = vpack.c.bf16 %v1282, %v1282
        %v1457 = vpack.c.bf16 %v1285, %v1285
        %v1458 = vpack.c.bf16 %v1290, %v1290
        %v1459 = vpack.c.bf16 %v1293, %v1293
        %v1460 = vpack.c.bf16 %v1298, %v1298
        %v1461 = vpack.c.bf16 %v1301, %v1301
        %v1462 = vpack.c.bf16 %v1306, %v1306
        %v1463 = vpack.c.bf16 %v1309, %v1309
        %v1464 = vpack.c.bf16 %v1418, %v1418
        %v1465 = vpack.c.bf16 %v1421, %v1421
        %v1466 = vpack.c.bf16 %v1426, %v1426
        %v1467 = vpack.c.bf16 %v1429, %v1429
        %v1468 = vpack.c.bf16 %v1434, %v1434
        %v1469 = vpack.c.bf16 %v1437, %v1437
        %v1470 = vpack.c.bf16 %v1442, %v1442
        %v1471 = vpack.c.bf16 %v1445, %v1445
        %v1472 = vlaneseq
        %v1473 = vshrl.u32 %v1472, 7
        %v1474 = vlaneseq
        %v1475 = vand.u32 %v1474, 127
        %vm1476 = vcmp.ge.s32.totalorder %v1473, %v1475
        %v1477 = vsel %vm1476, 0.0, -1e+09
        %1478 = vmatprep.subr.bf16.mxu0 0
        %1479 = vmatpush1.bf16.xpose.msra.mxu0 %v1456
        %1480 = vmatprep.subr.bf16.mxu0 0
        %1481 = vmatpush1.bf16.xpose.msra.mxu0 0
        %1482 = vmatprep.subr.bf16.mxu0 0
        %1483 = vmatpush1.bf16.xpose.msra.mxu0 0
        %1484 = vmatprep.subr.bf16.mxu0 0
        %1485 = vmatpush1.bf16.xpose.msra.mxu0 0
        %1486 = vmatprep.subr.bf16.mxu0 0
        %1487 = vmatpush1.bf16.xpose.msra.mxu0 0
        %1488 = vmatprep.subr.bf16.mxu0 0
        %1489 = vmatpush1.bf16.xpose.msra.mxu0 0
        %1490 = vmatprep.subr.bf16.mxu0 0
        %1491 = vmatpush1.bf16.xpose.msra.mxu0 0
        %1492 = vmatprep.subr.bf16.mxu0 0
        %1493 = vmatpush1.bf16.xpose.msra.mxu0 0
        %1494 = vmatprep.subr.bf16.mxu0 0
        %1495 = vmatpush1.bf16.xpose.msra.mxu0 0
        %1496 = vmatprep.subr.bf16.mxu0 0
        %1497 = vmatpush1.bf16.xpose.msra.mxu0 0
        %1498 = vmatprep.subr.bf16.mxu0 0
        %1499 = vmatpush1.bf16.xpose.msra.mxu0 0
        %1500 = vmatprep.subr.bf16.mxu0 0
        %1501 = vmatpush1.bf16.xpose.msra.mxu0 0
        %1502 = vmatprep.subr.bf16.mxu0 0
        %1503 = vmatpush1.bf16.xpose.msra.mxu0 0
        %1504 = vmatprep.subr.bf16.mxu0 0
        %1505 = vmatpush1.bf16.xpose.msra.mxu0 0
        %1506 = vmatprep.subr.bf16.mxu0 0
        %1507 = vmatpush1.bf16.xpose.msra.mxu0 0
        %1508 = vmatprep.subr.bf16.mxu0 0
        %1509 = vmatpush1.bf16.xpose.msra.mxu0 0
        %1510 = vmatprep.mubr.bf16.mxu0 0
        %1511 = vmatmul.mubr.bf16.gmra.mrb[0].mxu0 %v1448
        %v1512 = vpop.f32.mrb[0].mxu0
        %v1513 = vadd.f32 0.0, %v1512
        %v1514 = vpop.f32.mrb[0].mxu0
        %v1515 = vpop.f32.mrb[0].mxu0
        %v1516 = vpop.f32.mrb[0].mxu0
        %1517 = vdwg.mxu0
        %1518 = vmatprep.subr.bf16.mxu0 0
        %1519 = vmatpush1.bf16.xpose.msra.mxu0 %v1457
        %1520 = vmatprep.subr.bf16.mxu0 0
        %1521 = vmatpush1.bf16.xpose.msra.mxu0 0
        %1522 = vmatprep.subr.bf16.mxu0 0
        %1523 = vmatpush1.bf16.xpose.msra.mxu0 0
        %1524 = vmatprep.subr.bf16.mxu0 0
        %1525 = vmatpush1.bf16.xpose.msra.mxu0 0
        %1526 = vmatprep.subr.bf16.mxu0 0
        %1527 = vmatpush1.bf16.xpose.msra.mxu0 0
        %1528 = vmatprep.subr.bf16.mxu0 0
        %1529 = vmatpush1.bf16.xpose.msra.mxu0 0
        %1530 = vmatprep.subr.bf16.mxu0 0
        %1531 = vmatpush1.bf16.xpose.msra.mxu0 0
        %1532 = vmatprep.subr.bf16.mxu0 0
        %1533 = vmatpush1.bf16.xpose.msra.mxu0 0
        %1534 = vmatprep.subr.bf16.mxu0 0
        %1535 = vmatpush1.bf16.xpose.msra.mxu0 0
        %1536 = vmatprep.subr.bf16.mxu0 0
        %1537 = vmatpush1.bf16.xpose.msra.mxu0 0
        %1538 = vmatprep.subr.bf16.mxu0 0
        %1539 = vmatpush1.bf16.xpose.msra.mxu0 0
        %1540 = vmatprep.subr.bf16.mxu0 0
        %1541 = vmatpush1.bf16.xpose.msra.mxu0 0
        %1542 = vmatprep.subr.bf16.mxu0 0
        %1543 = vmatpush1.bf16.xpose.msra.mxu0 0
        %1544 = vmatprep.subr.bf16.mxu0 0
        %1545 = vmatpush1.bf16.xpose.msra.mxu0 0
        %1546 = vmatprep.subr.bf16.mxu0 0
        %1547 = vmatpush1.bf16.xpose.msra.mxu0 0
        %1548 = vmatprep.subr.bf16.mxu0 0
        %1549 = vmatpush1.bf16.xpose.msra.mxu0 0
        %1550 = vmatprep.mubr.bf16.mxu0 0
        %1551 = vmatmul.mubr.bf16.gmra.mrb[0].mxu0 %v1449
        %v1552 = vpop.f32.mrb[0].mxu0
        %v1553 = vadd.f32 0.0, %v1552
        %v1554 = vpop.f32.mrb[0].mxu0
        %v1555 = vpop.f32.mrb[0].mxu0
        %v1556 = vpop.f32.mrb[0].mxu0
        %1557 = vdwg.mxu0
        %1558 = vmatprep.subr.bf16.mxu0 0
        %1559 = vmatpush1.bf16.xpose.msra.mxu0 %v1458
        %1560 = vmatprep.subr.bf16.mxu0 0
        %1561 = vmatpush1.bf16.xpose.msra.mxu0 0
        %1562 = vmatprep.subr.bf16.mxu0 0
        %1563 = vmatpush1.bf16.xpose.msra.mxu0 0
        %1564 = vmatprep.subr.bf16.mxu0 0
        %1565 = vmatpush1.bf16.xpose.msra.mxu0 0
        %1566 = vmatprep.subr.bf16.mxu0 0
        %1567 = vmatpush1.bf16.xpose.msra.mxu0 0
        %1568 = vmatprep.subr.bf16.mxu0 0
        %1569 = vmatpush1.bf16.xpose.msra.mxu0 0
        %1570 = vmatprep.subr.bf16.mxu0 0
        %1571 = vmatpush1.bf16.xpose.msra.mxu0 0
        %1572 = vmatprep.subr.bf16.mxu0 0
        %1573 = vmatpush1.bf16.xpose.msra.mxu0 0
        %1574 = vmatprep.subr.bf16.mxu0 0
        %1575 = vmatpush1.bf16.xpose.msra.mxu0 0
        %1576 = vmatprep.subr.bf16.mxu0 0
        %1577 = vmatpush1.bf16.xpose.msra.mxu0 0
        %1578 = vmatprep.subr.bf16.mxu0 0
        %1579 = vmatpush1.bf16.xpose.msra.mxu0 0
        %1580 = vmatprep.subr.bf16.mxu0 0
        %1581 = vmatpush1.bf16.xpose.msra.mxu0 0
        %1582 = vmatprep.subr.bf16.mxu0 0
        %1583 = vmatpush1.bf16.xpose.msra.mxu0 0
        %1584 = vmatprep.subr.bf16.mxu0 0
        %1585 = vmatpush1.bf16.xpose.msra.mxu0 0
        %1586 = vmatprep.subr.bf16.mxu0 0
        %1587 = vmatpush1.bf16.xpose.msra.mxu0 0
        %1588 = vmatprep.subr.bf16.mxu0 0
        %1589 = vmatpush1.bf16.xpose.msra.mxu0 0
        %1590 = vmatprep.mubr.bf16.mxu0 0
        %1591 = vmatmul.mubr.bf16.gmra.mrb[0].mxu0 %v1450
        %v1592 = vpop.f32.mrb[0].mxu0
        %v1593 = vadd.f32 0.0, %v1592
        %v1594 = vpop.f32.mrb[0].mxu0
        %v1595 = vpop.f32.mrb[0].mxu0
        %v1596 = vpop.f32.mrb[0].mxu0
        %1597 = vdwg.mxu0
        %1598 = vmatprep.subr.bf16.mxu0 0
        %1599 = vmatpush1.bf16.xpose.msra.mxu0 %v1459
        %1600 = vmatprep.subr.bf16.mxu0 0
        %1601 = vmatpush1.bf16.xpose.msra.mxu0 0
        %1602 = vmatprep.subr.bf16.mxu0 0
        %1603 = vmatpush1.bf16.xpose.msra.mxu0 0
        %1604 = vmatprep.subr.bf16.mxu0 0
        %1605 = vmatpush1.bf16.xpose.msra.mxu0 0
        %1606 = vmatprep.subr.bf16.mxu0 0
        %1607 = vmatpush1.bf16.xpose.msra.mxu0 0
        %1608 = vmatprep.subr.bf16.mxu0 0
        %1609 = vmatpush1.bf16.xpose.msra.mxu0 0
        %1610 = vmatprep.subr.bf16.mxu0 0
        %1611 = vmatpush1.bf16.xpose.msra.mxu0 0
        %1612 = vmatprep.subr.bf16.mxu0 0
        %1613 = vmatpush1.bf16.xpose.msra.mxu0 0
        %1614 = vmatprep.subr.bf16.mxu0 0
        %1615 = vmatpush1.bf16.xpose.msra.mxu0 0
        %1616 = vmatprep.subr.bf16.mxu0 0
        %1617 = vmatpush1.bf16.xpose.msra.mxu0 0
        %1618 = vmatprep.subr.bf16.mxu0 0
        %1619 = vmatpush1.bf16.xpose.msra.mxu0 0
        %1620 = vmatprep.subr.bf16.mxu0 0
        %1621 = vmatpush1.bf16.xpose.msra.mxu0 0
        %1622 = vmatprep.subr.bf16.mxu0 0
        %1623 = vmatpush1.bf16.xpose.msra.mxu0 0
        %1624 = vmatprep.subr.bf16.mxu0 0
        %1625 = vmatpush1.bf16.xpose.msra.mxu0 0
        %1626 = vmatprep.subr.bf16.mxu0 0
        %1627 = vmatpush1.bf16.xpose.msra.mxu0 0
        %1628 = vmatprep.subr.bf16.mxu0 0
        %1629 = vmatpush1.bf16.xpose.msra.mxu0 0
        %1630 = vmatprep.mubr.bf16.mxu0 0
        %1631 = vmatmul.mubr.bf16.gmra.mrb[0].mxu0 %v1451
        %v1632 = vpop.f32.mrb[0].mxu0
        %v1633 = vadd.f32 0.0, %v1632
        %v1634 = vpop.f32.mrb[0].mxu0
        %v1635 = vpop.f32.mrb[0].mxu0
        %v1636 = vpop.f32.mrb[0].mxu0
        %1637 = vdwg.mxu0
        %1638 = vmatprep.subr.bf16.mxu0 0
        %1639 = vmatpush1.bf16.xpose.msra.mxu0 %v1460
        %1640 = vmatprep.subr.bf16.mxu0 0
        %1641 = vmatpush1.bf16.xpose.msra.mxu0 0
        %1642 = vmatprep.subr.bf16.mxu0 0
        %1643 = vmatpush1.bf16.xpose.msra.mxu0 0
        %1644 = vmatprep.subr.bf16.mxu0 0
        %1645 = vmatpush1.bf16.xpose.msra.mxu0 0
        %1646 = vmatprep.subr.bf16.mxu0 0
        %1647 = vmatpush1.bf16.xpose.msra.mxu0 0
        %1648 = vmatprep.subr.bf16.mxu0 0
        %1649 = vmatpush1.bf16.xpose.msra.mxu0 0
        %1650 = vmatprep.subr.bf16.mxu0 0
        %1651 = vmatpush1.bf16.xpose.msra.mxu0 0
        %1652 = vmatprep.subr.bf16.mxu0 0
        %1653 = vmatpush1.bf16.xpose.msra.mxu0 0
        %1654 = vmatprep.subr.bf16.mxu0 0
        %1655 = vmatpush1.bf16.xpose.msra.mxu0 0
        %1656 = vmatprep.subr.bf16.mxu0 0
        %1657 = vmatpush1.bf16.xpose.msra.mxu0 0
        %1658 = vmatprep.subr.bf16.mxu0 0
        %1659 = vmatpush1.bf16.xpose.msra.mxu0 0
        %1660 = vmatprep.subr.bf16.mxu0 0
        %1661 = vmatpush1.bf16.xpose.msra.mxu0 0
        %1662 = vmatprep.subr.bf16.mxu0 0
        %1663 = vmatpush1.bf16.xpose.msra.mxu0 0
        %1664 = vmatprep.subr.bf16.mxu0 0
        %1665 = vmatpush1.bf16.xpose.msra.mxu0 0
        %1666 = vmatprep.subr.bf16.mxu0 0
        %1667 = vmatpush1.bf16.xpose.msra.mxu0 0
        %1668 = vmatprep.subr.bf16.mxu0 0
        %1669 = vmatpush1.bf16.xpose.msra.mxu0 0
        %1670 = vmatprep.mubr.bf16.mxu0 0
        %1671 = vmatmul.mubr.bf16.gmra.mrb[0].mxu0 %v1452
        %v1672 = vpop.f32.mrb[0].mxu0
        %v1673 = vadd.f32 0.0, %v1672
        %v1674 = vpop.f32.mrb[0].mxu0
        %v1675 = vpop.f32.mrb[0].mxu0
        %v1676 = vpop.f32.mrb[0].mxu0
        %1677 = vdwg.mxu0
        %1678 = vmatprep.subr.bf16.mxu0 0
        %1679 = vmatpush1.bf16.xpose.msra.mxu0 %v1461
        %1680 = vmatprep.subr.bf16.mxu0 0
        %1681 = vmatpush1.bf16.xpose.msra.mxu0 0
        %1682 = vmatprep.subr.bf16.mxu0 0
        %1683 = vmatpush1.bf16.xpose.msra.mxu0 0
        %1684 = vmatprep.subr.bf16.mxu0 0
        %1685 = vmatpush1.bf16.xpose.msra.mxu0 0
        %1686 = vmatprep.subr.bf16.mxu0 0
        %1687 = vmatpush1.bf16.xpose.msra.mxu0 0
        %1688 = vmatprep.subr.bf16.mxu0 0
        %1689 = vmatpush1.bf16.xpose.msra.mxu0 0
        %1690 = vmatprep.subr.bf16.mxu0 0
        %1691 = vmatpush1.bf16.xpose.msra.mxu0 0
        %1692 = vmatprep.subr.bf16.mxu0 0
        %1693 = vmatpush1.bf16.xpose.msra.mxu0 0
        %1694 = vmatprep.subr.bf16.mxu0 0
        %1695 = vmatpush1.bf16.xpose.msra.mxu0 0
        %1696 = vmatprep.subr.bf16.mxu0 0
        %1697 = vmatpush1.bf16.xpose.msra.mxu0 0
        %1698 = vmatprep.subr.bf16.mxu0 0
        %1699 = vmatpush1.bf16.xpose.msra.mxu0 0
        %1700 = vmatprep.subr.bf16.mxu0 0
        %1701 = vmatpush1.bf16.xpose.msra.mxu0 0
        %1702 = vmatprep.subr.bf16.mxu0 0
        %1703 = vmatpush1.bf16.xpose.msra.mxu0 0
        %1704 = vmatprep.subr.bf16.mxu0 0
        %1705 = vmatpush1.bf16.xpose.msra.mxu0 0
        %1706 = vmatprep.subr.bf16.mxu0 0
        %1707 = vmatpush1.bf16.xpose.msra.mxu0 0
        %1708 = vmatprep.subr.bf16.mxu0 0
        %1709 = vmatpush1.bf16.xpose.msra.mxu0 0
        %1710 = vmatprep.mubr.bf16.mxu0 0
        %1711 = vmatmul.mubr.bf16.gmra.mrb[0].mxu0 %v1453
        %v1712 = vpop.f32.mrb[0].mxu0
        %v1713 = vadd.f32 0.0, %v1712
        %v1714 = vpop.f32.mrb[0].mxu0
        %v1715 = vpop.f32.mrb[0].mxu0
        %v1716 = vpop.f32.mrb[0].mxu0
        %1717 = vdwg.mxu0
        %1718 = vmatprep.subr.bf16.mxu0 0
        %1719 = vmatpush1.bf16.xpose.msra.mxu0 %v1462
        %1720 = vmatprep.subr.bf16.mxu0 0
        %1721 = vmatpush1.bf16.xpose.msra.mxu0 0
        %1722 = vmatprep.subr.bf16.mxu0 0
        %1723 = vmatpush1.bf16.xpose.msra.mxu0 0
        %1724 = vmatprep.subr.bf16.mxu0 0
        %1725 = vmatpush1.bf16.xpose.msra.mxu0 0
        %1726 = vmatprep.subr.bf16.mxu0 0
        %1727 = vmatpush1.bf16.xpose.msra.mxu0 0
        %1728 = vmatprep.subr.bf16.mxu0 0
        %1729 = vmatpush1.bf16.xpose.msra.mxu0 0
        %1730 = vmatprep.subr.bf16.mxu0 0
        %1731 = vmatpush1.bf16.xpose.msra.mxu0 0
        %1732 = vmatprep.subr.bf16.mxu0 0
        %1733 = vmatpush1.bf16.xpose.msra.mxu0 0
        %1734 = vmatprep.subr.bf16.mxu0 0
        %1735 = vmatpush1.bf16.xpose.msra.mxu0 0
        %1736 = vmatprep.subr.bf16.mxu0 0
        %1737 = vmatpush1.bf16.xpose.msra.mxu0 0
        %1738 = vmatprep.subr.bf16.mxu0 0
        %1739 = vmatpush1.bf16.xpose.msra.mxu0 0
        %1740 = vmatprep.subr.bf16.mxu0 0
        %1741 = vmatpush1.bf16.xpose.msra.mxu0 0
        %1742 = vmatprep.subr.bf16.mxu0 0
        %1743 = vmatpush1.bf16.xpose.msra.mxu0 0
        %1744 = vmatprep.subr.bf16.mxu0 0
        %1745 = vmatpush1.bf16.xpose.msra.mxu0 0
        %1746 = vmatprep.subr.bf16.mxu0 0
        %1747 = vmatpush1.bf16.xpose.msra.mxu0 0
        %1748 = vmatprep.subr.bf16.mxu0 0
        %1749 = vmatpush1.bf16.xpose.msra.mxu0 0
        %1750 = vmatprep.mubr.bf16.mxu0 0
        %1751 = vmatmul.mubr.bf16.gmra.mrb[0].mxu0 %v1454
        %v1752 = vpop.f32.mrb[0].mxu0
        %v1753 = vadd.f32 0.0, %v1752
        %v1754 = vpop.f32.mrb[0].mxu0
        %v1755 = vpop.f32.mrb[0].mxu0
        %v1756 = vpop.f32.mrb[0].mxu0
        %1757 = vdwg.mxu0
        %1758 = vmatprep.subr.bf16.mxu0 0
        %1759 = vmatpush1.bf16.xpose.msra.mxu0 %v1463
        %1760 = vmatprep.subr.bf16.mxu0 0
        %1761 = vmatpush1.bf16.xpose.msra.mxu0 0
        %1762 = vmatprep.subr.bf16.mxu0 0
        %1763 = vmatpush1.bf16.xpose.msra.mxu0 0
        %1764 = vmatprep.subr.bf16.mxu0 0
        %1765 = vmatpush1.bf16.xpose.msra.mxu0 0
        %1766 = vmatprep.subr.bf16.mxu0 0
        %1767 = vmatpush1.bf16.xpose.msra.mxu0 0
        %1768 = vmatprep.subr.bf16.mxu0 0
        %1769 = vmatpush1.bf16.xpose.msra.mxu0 0
        %1770 = vmatprep.subr.bf16.mxu0 0
        %1771 = vmatpush1.bf16.xpose.msra.mxu0 0
        %1772 = vmatprep.subr.bf16.mxu0 0
        %1773 = vmatpush1.bf16.xpose.msra.mxu0 0
        %1774 = vmatprep.subr.bf16.mxu0 0
        %1775 = vmatpush1.bf16.xpose.msra.mxu0 0
        %1776 = vmatprep.subr.bf16.mxu0 0
        %1777 = vmatpush1.bf16.xpose.msra.mxu0 0
        %1778 = vmatprep.subr.bf16.mxu0 0
        %1779 = vmatpush1.bf16.xpose.msra.mxu0 0
        %1780 = vmatprep.subr.bf16.mxu0 0
        %1781 = vmatpush1.bf16.xpose.msra.mxu0 0
        %1782 = vmatprep.subr.bf16.mxu0 0
        %1783 = vmatpush1.bf16.xpose.msra.mxu0 0
        %1784 = vmatprep.subr.bf16.mxu0 0
        %1785 = vmatpush1.bf16.xpose.msra.mxu0 0
        %1786 = vmatprep.subr.bf16.mxu0 0
        %1787 = vmatpush1.bf16.xpose.msra.mxu0 0
        %1788 = vmatprep.subr.bf16.mxu0 0
        %1789 = vmatpush1.bf16.xpose.msra.mxu0 0
        %1790 = vmatprep.mubr.bf16.mxu0 0
        %1791 = vmatmul.mubr.bf16.gmra.mrb[0].mxu0 %v1455
        %v1792 = vpop.f32.mrb[0].mxu0
        %v1793 = vadd.f32 0.0, %v1792
        %v1794 = vpop.f32.mrb[0].mxu0
        %v1795 = vpop.f32.mrb[0].mxu0
        %v1796 = vpop.f32.mrb[0].mxu0
        %1797 = vdwg.mxu0
        %v1798 = vmul.f32 %v1513, 0.088388346
        %v1799 = vmul.f32 %v1553, 0.088388346
        %v1800 = vmul.f32 %v1593, 0.088388346
        %v1801 = vmul.f32 %v1633, 0.088388346
        %v1802 = vmul.f32 %v1673, 0.088388346
        %v1803 = vmul.f32 %v1713, 0.088388346
        %v1804 = vmul.f32 %v1753, 0.088388346
        %v1805 = vmul.f32 %v1793, 0.088388346
        %v1806 = vadd.f32 %v1798, %v1477
        %v1807 = vadd.f32 %v1799, %v1477
        %v1808 = vadd.f32 %v1800, %v1477
        %v1809 = vadd.f32 %v1801, %v1477
        %v1810 = vadd.f32 %v1802, %v1477
        %v1811 = vadd.f32 %v1803, %v1477
        %v1812 = vadd.f32 %v1804, %v1477
        %v1813 = vadd.f32 %v1805, %v1477
        %vm1814 = vcmask 64512
        %v1815 = vsel %vm1814, %v1806, -inf
        %1816 = vmax.xlane.f32.xlu0 %v1815
        %v1817 = vpop.xlane.xlu0 %1816
        %v1818 = vsel %vm1814, %v1807, -inf
        %1819 = vmax.xlane.f32.xlu0 %v1818
        %v1820 = vpop.xlane.xlu0 %1819
        %v1821 = vsel %vm1814, %v1808, -inf
        %1822 = vmax.xlane.f32.xlu0 %v1821
        %v1823 = vpop.xlane.xlu0 %1822
        %v1824 = vsel %vm1814, %v1809, -inf
        %1825 = vmax.xlane.f32.xlu0 %v1824
        %v1826 = vpop.xlane.xlu0 %1825
        %v1827 = vsel %vm1814, %v1810, -inf
        %1828 = vmax.xlane.f32.xlu0 %v1827
        %v1829 = vpop.xlane.xlu0 %1828
        %v1830 = vsel %vm1814, %v1811, -inf
        %1831 = vmax.xlane.f32.xlu0 %v1830
        %v1832 = vpop.xlane.xlu0 %1831
        %v1833 = vsel %vm1814, %v1812, -inf
        %1834 = vmax.xlane.f32.xlu0 %v1833
        %v1835 = vpop.xlane.xlu0 %1834
        %v1836 = vsel %vm1814, %v1813, -inf
        %1837 = vmax.xlane.f32.xlu0 %v1836
        %v1838 = vpop.xlane.xlu0 %1837
        %v1839 = vsub.f32 %v1806, %v1817
        %v1840 = vsub.f32 %v1807, %v1820
        %v1841 = vsub.f32 %v1808, %v1823
        %v1842 = vsub.f32 %v1809, %v1826
        %v1843 = vsub.f32 %v1810, %v1829
        %v1844 = vsub.f32 %v1811, %v1832
        %v1845 = vsub.f32 %v1812, %v1835
        %v1846 = vsub.f32 %v1813, %v1838
        %v1847 = vmul.f32 %v1839, 1.442695
        %v1848 = vpow.pop %v1847
        %v1849 = vmul.f32 %v1840, 1.442695
        %v1850 = vpow.pop %v1849
        %v1851 = vmul.f32 %v1841, 1.442695
        %v1852 = vpow.pop %v1851
        %v1853 = vmul.f32 %v1842, 1.442695
        %v1854 = vpow.pop %v1853
        %v1855 = vmul.f32 %v1843, 1.442695
        %v1856 = vpow.pop %v1855
        %v1857 = vmul.f32 %v1844, 1.442695
        %v1858 = vpow.pop %v1857
        %v1859 = vmul.f32 %v1845, 1.442695
        %v1860 = vpow.pop %v1859
        %v1861 = vmul.f32 %v1846, 1.442695
        %v1862 = vpow.pop %v1861
        %v1863 = vsel %vm1814, %v1848, 0.0
        %1864 = vadd.xlane.f32.xlu0 %v1863
        %v1865 = vpop.xlane.xlu0 %1864
        %v1866 = vsel %vm1814, %v1850, 0.0
        %1867 = vadd.xlane.f32.xlu0 %v1866
        %v1868 = vpop.xlane.xlu0 %1867
        %v1869 = vsel %vm1814, %v1852, 0.0
        %1870 = vadd.xlane.f32.xlu0 %v1869
        %v1871 = vpop.xlane.xlu0 %1870
        %v1872 = vsel %vm1814, %v1854, 0.0
        %1873 = vadd.xlane.f32.xlu0 %v1872
        %v1874 = vpop.xlane.xlu0 %1873
        %v1875 = vsel %vm1814, %v1856, 0.0
        %1876 = vadd.xlane.f32.xlu0 %v1875
        %v1877 = vpop.xlane.xlu0 %1876
        %v1878 = vsel %vm1814, %v1858, 0.0
        %1879 = vadd.xlane.f32.xlu0 %v1878
        %v1880 = vpop.xlane.xlu0 %1879
        %v1881 = vsel %vm1814, %v1860, 0.0
        %1882 = vadd.xlane.f32.xlu0 %v1881
        %v1883 = vpop.xlane.xlu0 %1882
        %v1884 = vsel %vm1814, %v1862, 0.0
        %1885 = vadd.xlane.f32.xlu0 %v1884
        %v1886 = vpop.xlane.xlu0 %1885
        %v1887 = vrcp.pop %v1865
        %v1888 = vrcp.pop %v1868
        %v1889 = vrcp.pop %v1871
        %v1890 = vrcp.pop %v1874
        %v1891 = vrcp.pop %v1877
        %v1892 = vrcp.pop %v1880
        %v1893 = vrcp.pop %v1883
        %v1894 = vrcp.pop %v1886
        %v1895 = vmul.f32 %v1848, %v1887
        %v1896 = vmul.f32 %v1850, %v1888
        %v1897 = vmul.f32 %v1852, %v1889
        %v1898 = vmul.f32 %v1854, %v1890
        %v1899 = vmul.f32 %v1856, %v1891
        %v1900 = vmul.f32 %v1858, %v1892
        %v1901 = vmul.f32 %v1860, %v1893
        %v1902 = vmul.f32 %v1862, %v1894
        %v1903 = vpack.c.bf16 %v1895, %v1895
        %v1904 = vpack.c.bf16 %v1896, %v1896
        %v1905 = vpack.c.bf16 %v1897, %v1897
        %v1906 = vpack.c.bf16 %v1898, %v1898
        %v1907 = vpack.c.bf16 %v1899, %v1899
        %v1908 = vpack.c.bf16 %v1900, %v1900
        %v1909 = vpack.c.bf16 %v1901, %v1901
        %v1910 = vpack.c.bf16 %v1902, %v1902
        %v1912 = vsel %vm1814, %v1903, 0
        %vm1914 = vcmask 1043456
        %v1916 = vsel %vm1914, %v1464, 0
        %1918 = vmatprep.subr.bf16.mxu0 0
        %1919 = vmatpush1.bf16.msra.mxu0 %v1916
        %1920 = vmatprep.subr.bf16.mxu0 0
        %1921 = vmatpush1.bf16.msra.mxu0 0
        %1922 = vmatprep.subr.bf16.mxu0 0
        %1923 = vmatpush1.bf16.msra.mxu0 0
        %1924 = vmatprep.subr.bf16.mxu0 0
        %1925 = vmatpush1.bf16.msra.mxu0 0
        %1926 = vmatprep.subr.bf16.mxu0 0
        %1927 = vmatpush1.bf16.msra.mxu0 0
        %1928 = vmatprep.subr.bf16.mxu0 0
        %1929 = vmatpush1.bf16.msra.mxu0 0
        %1930 = vmatprep.subr.bf16.mxu0 0
        %1931 = vmatpush1.bf16.msra.mxu0 0
        %1932 = vmatprep.subr.bf16.mxu0 0
        %1933 = vmatpush1.bf16.msra.mxu0 0
        %1934 = vmatprep.subr.bf16.mxu0 0
        %1935 = vmatpush1.bf16.msra.mxu0 0
        %1936 = vmatprep.subr.bf16.mxu0 0
        %1937 = vmatpush1.bf16.msra.mxu0 0
        %1938 = vmatprep.subr.bf16.mxu0 0
        %1939 = vmatpush1.bf16.msra.mxu0 0
        %1940 = vmatprep.subr.bf16.mxu0 0
        %1941 = vmatpush1.bf16.msra.mxu0 0
        %1942 = vmatprep.subr.bf16.mxu0 0
        %1943 = vmatpush1.bf16.msra.mxu0 0
        %1944 = vmatprep.subr.bf16.mxu0 0
        %1945 = vmatpush1.bf16.msra.mxu0 0
        %1946 = vmatprep.subr.bf16.mxu0 0
        %1947 = vmatpush1.bf16.msra.mxu0 0
        %1948 = vmatprep.subr.bf16.mxu0 0
        %1949 = vmatpush1.bf16.msra.mxu0 0
        %1950 = vmatprep.mubr.bf16.mxu0 0
        %1951 = vmatmul.mubr.bf16.gmra.mrb[0].mxu0 %v1912
        %v1952 = vpop.f32.mrb[0].mxu0
        %v1953 = vadd.f32 0.0, %v1952
        %v1954 = vpop.f32.mrb[0].mxu0
        %v1955 = vpop.f32.mrb[0].mxu0
        %v1956 = vpop.f32.mrb[0].mxu0
        %1957 = vdwg.mxu0
        %v1959 = vsel %vm1814, %v1904, 0
        %v1962 = vsel %vm1914, %v1465, 0
        %1964 = vmatprep.subr.bf16.mxu0 0
        %1965 = vmatpush1.bf16.msra.mxu0 %v1962
        %1966 = vmatprep.subr.bf16.mxu0 0
        %1967 = vmatpush1.bf16.msra.mxu0 0
        %1968 = vmatprep.subr.bf16.mxu0 0
        %1969 = vmatpush1.bf16.msra.mxu0 0
        %1970 = vmatprep.subr.bf16.mxu0 0
        %1971 = vmatpush1.bf16.msra.mxu0 0
        %1972 = vmatprep.subr.bf16.mxu0 0
        %1973 = vmatpush1.bf16.msra.mxu0 0
        %1974 = vmatprep.subr.bf16.mxu0 0
        %1975 = vmatpush1.bf16.msra.mxu0 0
        %1976 = vmatprep.subr.bf16.mxu0 0
        %1977 = vmatpush1.bf16.msra.mxu0 0
        %1978 = vmatprep.subr.bf16.mxu0 0
        %1979 = vmatpush1.bf16.msra.mxu0 0
        %1980 = vmatprep.subr.bf16.mxu0 0
        %1981 = vmatpush1.bf16.msra.mxu0 0
        %1982 = vmatprep.subr.bf16.mxu0 0
        %1983 = vmatpush1.bf16.msra.mxu0 0
        %1984 = vmatprep.subr.bf16.mxu0 0
        %1985 = vmatpush1.bf16.msra.mxu0 0
        %1986 = vmatprep.subr.bf16.mxu0 0
        %1987 = vmatpush1.bf16.msra.mxu0 0
        %1988 = vmatprep.subr.bf16.mxu0 0
        %1989 = vmatpush1.bf16.msra.mxu0 0
        %1990 = vmatprep.subr.bf16.mxu0 0
        %1991 = vmatpush1.bf16.msra.mxu0 0
        %1992 = vmatprep.subr.bf16.mxu0 0
        %1993 = vmatpush1.bf16.msra.mxu0 0
        %1994 = vmatprep.subr.bf16.mxu0 0
        %1995 = vmatpush1.bf16.msra.mxu0 0
        %1996 = vmatprep.mubr.bf16.mxu0 0
        %1997 = vmatmul.mubr.bf16.gmra.mrb[0].mxu0 %v1959
        %v1998 = vpop.f32.mrb[0].mxu0
        %v1999 = vadd.f32 0.0, %v1998
        %v2000 = vpop.f32.mrb[0].mxu0
        %v2001 = vpop.f32.mrb[0].mxu0
        %v2002 = vpop.f32.mrb[0].mxu0
        %2003 = vdwg.mxu0
        %v2005 = vsel %vm1814, %v1905, 0
        %v2008 = vsel %vm1914, %v1466, 0
        %2010 = vmatprep.subr.bf16.mxu0 0
        %2011 = vmatpush1.bf16.msra.mxu0 %v2008
        %2012 = vmatprep.subr.bf16.mxu0 0
        %2013 = vmatpush1.bf16.msra.mxu0 0
        %2014 = vmatprep.subr.bf16.mxu0 0
        %2015 = vmatpush1.bf16.msra.mxu0 0
        %2016 = vmatprep.subr.bf16.mxu0 0
        %2017 = vmatpush1.bf16.msra.mxu0 0
        %2018 = vmatprep.subr.bf16.mxu0 0
        %2019 = vmatpush1.bf16.msra.mxu0 0
        %2020 = vmatprep.subr.bf16.mxu0 0
        %2021 = vmatpush1.bf16.msra.mxu0 0
        %2022 = vmatprep.subr.bf16.mxu0 0
        %2023 = vmatpush1.bf16.msra.mxu0 0
        %2024 = vmatprep.subr.bf16.mxu0 0
        %2025 = vmatpush1.bf16.msra.mxu0 0
        %2026 = vmatprep.subr.bf16.mxu0 0
        %2027 = vmatpush1.bf16.msra.mxu0 0
        %2028 = vmatprep.subr.bf16.mxu0 0
        %2029 = vmatpush1.bf16.msra.mxu0 0
        %2030 = vmatprep.subr.bf16.mxu0 0
        %2031 = vmatpush1.bf16.msra.mxu0 0
        %2032 = vmatprep.subr.bf16.mxu0 0
        %2033 = vmatpush1.bf16.msra.mxu0 0
        %2034 = vmatprep.subr.bf16.mxu0 0
        %2035 = vmatpush1.bf16.msra.mxu0 0
        %2036 = vmatprep.subr.bf16.mxu0 0
        %2037 = vmatpush1.bf16.msra.mxu0 0
        %2038 = vmatprep.subr.bf16.mxu0 0
        %2039 = vmatpush1.bf16.msra.mxu0 0
        %2040 = vmatprep.subr.bf16.mxu0 0
        %2041 = vmatpush1.bf16.msra.mxu0 0
        %2042 = vmatprep.mubr.bf16.mxu0 0
        %2043 = vmatmul.mubr.bf16.gmra.mrb[0].mxu0 %v2005
        %v2044 = vpop.f32.mrb[0].mxu0
        %v2045 = vadd.f32 0.0, %v2044
        %v2046 = vpop.f32.mrb[0].mxu0
        %v2047 = vpop.f32.mrb[0].mxu0
        %v2048 = vpop.f32.mrb[0].mxu0
        %2049 = vdwg.mxu0
        %v2051 = vsel %vm1814, %v1906, 0
        %v2054 = vsel %vm1914, %v1467, 0
        %2056 = vmatprep.subr.bf16.mxu0 0
        %2057 = vmatpush1.bf16.msra.mxu0 %v2054
        %2058 = vmatprep.subr.bf16.mxu0 0
        %2059 = vmatpush1.bf16.msra.mxu0 0
        %2060 = vmatprep.subr.bf16.mxu0 0
        %2061 = vmatpush1.bf16.msra.mxu0 0
        %2062 = vmatprep.subr.bf16.mxu0 0
        %2063 = vmatpush1.bf16.msra.mxu0 0
        %2064 = vmatprep.subr.bf16.mxu0 0
        %2065 = vmatpush1.bf16.msra.mxu0 0
        %2066 = vmatprep.subr.bf16.mxu0 0
        %2067 = vmatpush1.bf16.msra.mxu0 0
        %2068 = vmatprep.subr.bf16.mxu0 0
        %2069 = vmatpush1.bf16.msra.mxu0 0
        %2070 = vmatprep.subr.bf16.mxu0 0
        %2071 = vmatpush1.bf16.msra.mxu0 0
        %2072 = vmatprep.subr.bf16.mxu0 0
        %2073 = vmatpush1.bf16.msra.mxu0 0
        %2074 = vmatprep.subr.bf16.mxu0 0
        %2075 = vmatpush1.bf16.msra.mxu0 0
        %2076 = vmatprep.subr.bf16.mxu0 0
        %2077 = vmatpush1.bf16.msra.mxu0 0
        %2078 = vmatprep.subr.bf16.mxu0 0
        %2079 = vmatpush1.bf16.msra.mxu0 0
        %2080 = vmatprep.subr.bf16.mxu0 0
        %2081 = vmatpush1.bf16.msra.mxu0 0
        %2082 = vmatprep.subr.bf16.mxu0 0
        %2083 = vmatpush1.bf16.msra.mxu0 0
        %2084 = vmatprep.subr.bf16.mxu0 0
        %2085 = vmatpush1.bf16.msra.mxu0 0
        %2086 = vmatprep.subr.bf16.mxu0 0
        %2087 = vmatpush1.bf16.msra.mxu0 0
        %2088 = vmatprep.mubr.bf16.mxu0 0
        %2089 = vmatmul.mubr.bf16.gmra.mrb[0].mxu0 %v2051
        %v2090 = vpop.f32.mrb[0].mxu0
        %v2091 = vadd.f32 0.0, %v2090
        %v2092 = vpop.f32.mrb[0].mxu0
        %v2093 = vpop.f32.mrb[0].mxu0
        %v2094 = vpop.f32.mrb[0].mxu0
        %2095 = vdwg.mxu0
        %v2097 = vsel %vm1814, %v1907, 0
        %v2100 = vsel %vm1914, %v1468, 0
        %2102 = vmatprep.subr.bf16.mxu0 0
        %2103 = vmatpush1.bf16.msra.mxu0 %v2100
        %2104 = vmatprep.subr.bf16.mxu0 0
        %2105 = vmatpush1.bf16.msra.mxu0 0
        %2106 = vmatprep.subr.bf16.mxu0 0
        %2107 = vmatpush1.bf16.msra.mxu0 0
        %2108 = vmatprep.subr.bf16.mxu0 0
        %2109 = vmatpush1.bf16.msra.mxu0 0
        %2110 = vmatprep.subr.bf16.mxu0 0
        %2111 = vmatpush1.bf16.msra.mxu0 0
        %2112 = vmatprep.subr.bf16.mxu0 0
        %2113 = vmatpush1.bf16.msra.mxu0 0
        %2114 = vmatprep.subr.bf16.mxu0 0
        %2115 = vmatpush1.bf16.msra.mxu0 0
        %2116 = vmatprep.subr.bf16.mxu0 0
        %2117 = vmatpush1.bf16.msra.mxu0 0
        %2118 = vmatprep.subr.bf16.mxu0 0
        %2119 = vmatpush1.bf16.msra.mxu0 0
        %2120 = vmatprep.subr.bf16.mxu0 0
        %2121 = vmatpush1.bf16.msra.mxu0 0
        %2122 = vmatprep.subr.bf16.mxu0 0
        %2123 = vmatpush1.bf16.msra.mxu0 0
        %2124 = vmatprep.subr.bf16.mxu0 0
        %2125 = vmatpush1.bf16.msra.mxu0 0
        %2126 = vmatprep.subr.bf16.mxu0 0
        %2127 = vmatpush1.bf16.msra.mxu0 0
        %2128 = vmatprep.subr.bf16.mxu0 0
        %2129 = vmatpush1.bf16.msra.mxu0 0
        %2130 = vmatprep.subr.bf16.mxu0 0
        %2131 = vmatpush1.bf16.msra.mxu0 0
        %2132 = vmatprep.subr.bf16.mxu0 0
        %2133 = vmatpush1.bf16.msra.mxu0 0
        %2134 = vmatprep.mubr.bf16.mxu0 0
        %2135 = vmatmul.mubr.bf16.gmra.mrb[0].mxu0 %v2097
        %v2136 = vpop.f32.mrb[0].mxu0
        %v2137 = vadd.f32 0.0, %v2136
        %v2138 = vpop.f32.mrb[0].mxu0
        %v2139 = vpop.f32.mrb[0].mxu0
        %v2140 = vpop.f32.mrb[0].mxu0
        %2141 = vdwg.mxu0
        %v2143 = vsel %vm1814, %v1908, 0
        %v2146 = vsel %vm1914, %v1469, 0
        %2148 = vmatprep.subr.bf16.mxu0 0
        %2149 = vmatpush1.bf16.msra.mxu0 %v2146
        %2150 = vmatprep.subr.bf16.mxu0 0
        %2151 = vmatpush1.bf16.msra.mxu0 0
        %2152 = vmatprep.subr.bf16.mxu0 0
        %2153 = vmatpush1.bf16.msra.mxu0 0
        %2154 = vmatprep.subr.bf16.mxu0 0
        %2155 = vmatpush1.bf16.msra.mxu0 0
        %2156 = vmatprep.subr.bf16.mxu0 0
        %2157 = vmatpush1.bf16.msra.mxu0 0
        %2158 = vmatprep.subr.bf16.mxu0 0
        %2159 = vmatpush1.bf16.msra.mxu0 0
        %2160 = vmatprep.subr.bf16.mxu0 0
        %2161 = vmatpush1.bf16.msra.mxu0 0
        %2162 = vmatprep.subr.bf16.mxu0 0
        %2163 = vmatpush1.bf16.msra.mxu0 0
        %2164 = vmatprep.subr.bf16.mxu0 0
        %2165 = vmatpush1.bf16.msra.mxu0 0
        %2166 = vmatprep.subr.bf16.mxu0 0
        %2167 = vmatpush1.bf16.msra.mxu0 0
        %2168 = vmatprep.subr.bf16.mxu0 0
        %2169 = vmatpush1.bf16.msra.mxu0 0
        %2170 = vmatprep.subr.bf16.mxu0 0
        %2171 = vmatpush1.bf16.msra.mxu0 0
        %2172 = vmatprep.subr.bf16.mxu0 0
        %2173 = vmatpush1.bf16.msra.mxu0 0
        %2174 = vmatprep.subr.bf16.mxu0 0
        %2175 = vmatpush1.bf16.msra.mxu0 0
        %2176 = vmatprep.subr.bf16.mxu0 0
        %2177 = vmatpush1.bf16.msra.mxu0 0
        %2178 = vmatprep.subr.bf16.mxu0 0
        %2179 = vmatpush1.bf16.msra.mxu0 0
        %2180 = vmatprep.mubr.bf16.mxu0 0
        %2181 = vmatmul.mubr.bf16.gmra.mrb[0].mxu0 %v2143
        %v2182 = vpop.f32.mrb[0].mxu0
        %v2183 = vadd.f32 0.0, %v2182
        %v2184 = vpop.f32.mrb[0].mxu0
        %v2185 = vpop.f32.mrb[0].mxu0
        %v2186 = vpop.f32.mrb[0].mxu0
        %2187 = vdwg.mxu0
        %v2189 = vsel %vm1814, %v1909, 0
        %v2192 = vsel %vm1914, %v1470, 0
        %2194 = vmatprep.subr.bf16.mxu0 0
        %2195 = vmatpush1.bf16.msra.mxu0 %v2192
        %2196 = vmatprep.subr.bf16.mxu0 0
        %2197 = vmatpush1.bf16.msra.mxu0 0
        %2198 = vmatprep.subr.bf16.mxu0 0
        %2199 = vmatpush1.bf16.msra.mxu0 0
        %2200 = vmatprep.subr.bf16.mxu0 0
        %2201 = vmatpush1.bf16.msra.mxu0 0
        %2202 = vmatprep.subr.bf16.mxu0 0
        %2203 = vmatpush1.bf16.msra.mxu0 0
        %2204 = vmatprep.subr.bf16.mxu0 0
        %2205 = vmatpush1.bf16.msra.mxu0 0
        %2206 = vmatprep.subr.bf16.mxu0 0
        %2207 = vmatpush1.bf16.msra.mxu0 0
        %2208 = vmatprep.subr.bf16.mxu0 0
        %2209 = vmatpush1.bf16.msra.mxu0 0
        %2210 = vmatprep.subr.bf16.mxu0 0
        %2211 = vmatpush1.bf16.msra.mxu0 0
        %2212 = vmatprep.subr.bf16.mxu0 0
        %2213 = vmatpush1.bf16.msra.mxu0 0
        %2214 = vmatprep.subr.bf16.mxu0 0
        %2215 = vmatpush1.bf16.msra.mxu0 0
        %2216 = vmatprep.subr.bf16.mxu0 0
        %2217 = vmatpush1.bf16.msra.mxu0 0
        %2218 = vmatprep.subr.bf16.mxu0 0
        %2219 = vmatpush1.bf16.msra.mxu0 0
        %2220 = vmatprep.subr.bf16.mxu0 0
        %2221 = vmatpush1.bf16.msra.mxu0 0
        %2222 = vmatprep.subr.bf16.mxu0 0
        %2223 = vmatpush1.bf16.msra.mxu0 0
        %2224 = vmatprep.subr.bf16.mxu0 0
        %2225 = vmatpush1.bf16.msra.mxu0 0
        %2226 = vmatprep.mubr.bf16.mxu0 0
        %2227 = vmatmul.mubr.bf16.gmra.mrb[0].mxu0 %v2189
        %v2228 = vpop.f32.mrb[0].mxu0
        %v2229 = vadd.f32 0.0, %v2228
        %v2230 = vpop.f32.mrb[0].mxu0
        %v2231 = vpop.f32.mrb[0].mxu0
        %v2232 = vpop.f32.mrb[0].mxu0
        %2233 = vdwg.mxu0
        %v2235 = vsel %vm1814, %v1910, 0
        %v2238 = vsel %vm1914, %v1471, 0
        %2240 = vmatprep.subr.bf16.mxu0 0
        %2241 = vmatpush1.bf16.msra.mxu0 %v2238
        %2242 = vmatprep.subr.bf16.mxu0 0
        %2243 = vmatpush1.bf16.msra.mxu0 0
        %2244 = vmatprep.subr.bf16.mxu0 0
        %2245 = vmatpush1.bf16.msra.mxu0 0
        %2246 = vmatprep.subr.bf16.mxu0 0
        %2247 = vmatpush1.bf16.msra.mxu0 0
        %2248 = vmatprep.subr.bf16.mxu0 0
        %2249 = vmatpush1.bf16.msra.mxu0 0
        %2250 = vmatprep.subr.bf16.mxu0 0
        %2251 = vmatpush1.bf16.msra.mxu0 0
        %2252 = vmatprep.subr.bf16.mxu0 0
        %2253 = vmatpush1.bf16.msra.mxu0 0
        %2254 = vmatprep.subr.bf16.mxu0 0
        %2255 = vmatpush1.bf16.msra.mxu0 0
        %2256 = vmatprep.subr.bf16.mxu0 0
        %2257 = vmatpush1.bf16.msra.mxu0 0
        %2258 = vmatprep.subr.bf16.mxu0 0
        %2259 = vmatpush1.bf16.msra.mxu0 0
        %2260 = vmatprep.subr.bf16.mxu0 0
        %2261 = vmatpush1.bf16.msra.mxu0 0
        %2262 = vmatprep.subr.bf16.mxu0 0
        %2263 = vmatpush1.bf16.msra.mxu0 0
        %2264 = vmatprep.subr.bf16.mxu0 0
        %2265 = vmatpush1.bf16.msra.mxu0 0
        %2266 = vmatprep.subr.bf16.mxu0 0
        %2267 = vmatpush1.bf16.msra.mxu0 0
        %2268 = vmatprep.subr.bf16.mxu0 0
        %2269 = vmatpush1.bf16.msra.mxu0 0
        %2270 = vmatprep.subr.bf16.mxu0 0
        %2271 = vmatpush1.bf16.msra.mxu0 0
        %2272 = vmatprep.mubr.bf16.mxu0 0
        %2273 = vmatmul.mubr.bf16.gmra.mrb[0].mxu0 %v2235
        %v2274 = vpop.f32.mrb[0].mxu0
        %v2275 = vadd.f32 0.0, %v2274
        %v2276 = vpop.f32.mrb[0].mxu0
        %v2277 = vpop.f32.mrb[0].mxu0
        %v2278 = vpop.f32.mrb[0].mxu0
        %2279 = vdwg.mxu0
        %v2280 = vadd.f32 %v1028, %v1953
        %v2281 = vadd.f32 %v1029, %v1999
        %v2282 = vadd.f32 %v1030, %v2045
        %v2283 = vadd.f32 %v1031, %v2091
        %v2284 = vadd.f32 %v1032, %v2137
        %v2285 = vadd.f32 %v1033, %v2183
        %v2286 = vadd.f32 %v1034, %v2229
        %v2287 = vadd.f32 %v1035, %v2275
        %v2288 = vpack.c.bf16 %v2281, %v2280
        %v2289 = vpack.c.bf16 %v2283, %v2282
        %v2290 = vpack.c.bf16 %v2285, %v2284
        %v2291 = vpack.c.bf16 %v2287, %v2286
        %v2292 = vld [vmem:[%s765] sm:$0xff]
        %v2293 = vld [vmem:[%s765 + $0x8] sm:$0xff]
        %v2294 = vld [vmem:[%s765 + $0x10] sm:$0xff]
        %v2295 = vld [vmem:[%s765 + $0x18] sm:$0xff]
        %v2296 = vld [vmem:[%s765 + $0x20] sm:$0xff]
        %v2297 = vld [vmem:[%s765 + $0x28] sm:$0xff]
        %v2298 = vld [vmem:[%s765 + $0x30] sm:$0xff]
        %v2299 = vld [vmem:[%s765 + $0x38] sm:$0xff]
        %v2300 = vld [vmem:[%s765 + $0x40] sm:$0xff]
        %v2301 = vld [vmem:[%s765 + $0x48] sm:$0xff]
        %v2302 = vld [vmem:[%s765 + $0x50] sm:$0xff]
        %v2303 = vld [vmem:[%s765 + $0x58] sm:$0xff]
        %v2304 = vld [vmem:[%s765 + $0x60] sm:$0xff]
        %v2305 = vld [vmem:[%s765 + $0x68] sm:$0xff]
        %v2306 = vld [vmem:[%s765 + $0x70] sm:$0xff]
        %v2307 = vld [vmem:[%s765 + $0x78] sm:$0xff]
        %v2308 = vld [vmem:[%s765 + $0x80] sm:$0xff]
        %v2309 = vld [vmem:[%s765 + $0x88] sm:$0xff]
        %v2310 = vld [vmem:[%s765 + $0x90] sm:$0xff]
        %v2311 = vld [vmem:[%s765 + $0x98] sm:$0xff]
        %v2312 = vld [vmem:[%s765 + $0xa0] sm:$0xff]
        %v2313 = vld [vmem:[%s765 + $0xa8] sm:$0xff]
        %v2314 = vld [vmem:[%s765 + $0xb0] sm:$0xff]
        %v2315 = vld [vmem:[%s765 + $0xb8] sm:$0xff]
        %v2316 = vld [vmem:[%s765 + $0xc0] sm:$0xff]
        %v2317 = vld [vmem:[%s765 + $0xc8] sm:$0xff]
        %v2318 = vld [vmem:[%s765 + $0xd0] sm:$0xff]
        %v2319 = vld [vmem:[%s765 + $0xd8] sm:$0xff]
        %v2320 = vld [vmem:[%s765 + $0xe0] sm:$0xff]
        %v2321 = vld [vmem:[%s765 + $0xe8] sm:$0xff]
        %v2322 = vld [vmem:[%s765 + $0xf0] sm:$0xff]
        %v2323 = vld [vmem:[%s765 + $0xf8] sm:$0xff]
        %v2324 = vld [vmem:[%s769] sm:$0xf]
        %v2326 = vlaneseq
        %v2327 = vshrl.u32 %v2326, 7
        %v2328 = vsub.s32 0, %v2327
        %v2329 = vrot.slane %v2324, %v2328
        %v2330 = vlaneseq
        %v2331 = vshrl.u32 %v2330, 7
        %v2332 = vsub.s32 1, %v2331
        %v2333 = vrot.slane %v2324, %v2332
        %v2334 = vlaneseq
        %v2335 = vshrl.u32 %v2334, 7
        %v2336 = vsub.s32 2, %v2335
        %v2337 = vrot.slane %v2324, %v2336
        %v2338 = vlaneseq
        %v2339 = vshrl.u32 %v2338, 7
        %v2340 = vsub.s32 3, %v2339
        %v2341 = vrot.slane %v2324, %v2340
        %v2378 = vunpack.c.l.b16 %v2292
        %v2379 = vunpack.c.h.b16 %v2292
        %v2380 = vunpack.c.l.b16 %v2293
        %v2381 = vunpack.c.h.b16 %v2293
        %v2382 = vunpack.c.l.b16 %v2294
        %v2383 = vunpack.c.h.b16 %v2294
        %v2384 = vunpack.c.l.b16 %v2295
        %v2385 = vunpack.c.h.b16 %v2295
        %v2386 = vunpack.c.l.b16 %v2296
        %v2387 = vunpack.c.h.b16 %v2296
        %v2388 = vunpack.c.l.b16 %v2297
        %v2389 = vunpack.c.h.b16 %v2297
        %v2390 = vunpack.c.l.b16 %v2298
        %v2391 = vunpack.c.h.b16 %v2298
        %v2392 = vunpack.c.l.b16 %v2299
        %v2393 = vunpack.c.h.b16 %v2299
        %v2394 = vunpack.c.l.b16 %v2300
        %v2395 = vunpack.c.h.b16 %v2300
        %v2396 = vunpack.c.l.b16 %v2301
        %v2397 = vunpack.c.h.b16 %v2301
        %v2398 = vunpack.c.l.b16 %v2302
        %v2399 = vunpack.c.h.b16 %v2302
        %v2400 = vunpack.c.l.b16 %v2303
        %v2401 = vunpack.c.h.b16 %v2303
        %v2402 = vunpack.c.l.b16 %v2304
        %v2403 = vunpack.c.h.b16 %v2304
        %v2404 = vunpack.c.l.b16 %v2305
        %v2405 = vunpack.c.h.b16 %v2305
        %v2406 = vunpack.c.l.b16 %v2306
        %v2407 = vunpack.c.h.b16 %v2306
        %v2408 = vunpack.c.l.b16 %v2307
        %v2409 = vunpack.c.h.b16 %v2307
        %v2410 = vunpack.c.l.b16 %v2308
        %v2411 = vunpack.c.h.b16 %v2308
        %v2412 = vunpack.c.l.b16 %v2309
        %v2413 = vunpack.c.h.b16 %v2309
        %v2414 = vunpack.c.l.b16 %v2310
        %v2415 = vunpack.c.h.b16 %v2310
        %v2416 = vunpack.c.l.b16 %v2311
        %v2417 = vunpack.c.h.b16 %v2311
        %v2418 = vunpack.c.l.b16 %v2312
        %v2419 = vunpack.c.h.b16 %v2312
        %v2420 = vunpack.c.l.b16 %v2313
        %v2421 = vunpack.c.h.b16 %v2313
        %v2422 = vunpack.c.l.b16 %v2314
        %v2423 = vunpack.c.h.b16 %v2314
        %v2424 = vunpack.c.l.b16 %v2315
        %v2425 = vunpack.c.h.b16 %v2315
        %v2426 = vunpack.c.l.b16 %v2316
        %v2427 = vunpack.c.h.b16 %v2316
        %v2428 = vunpack.c.l.b16 %v2317
        %v2429 = vunpack.c.h.b16 %v2317
        %v2430 = vunpack.c.l.b16 %v2318
        %v2431 = vunpack.c.h.b16 %v2318
        %v2432 = vunpack.c.l.b16 %v2319
        %v2433 = vunpack.c.h.b16 %v2319
        %v2434 = vunpack.c.l.b16 %v2320
        %v2435 = vunpack.c.h.b16 %v2320
        %v2436 = vunpack.c.l.b16 %v2321
        %v2437 = vunpack.c.h.b16 %v2321
        %v2438 = vunpack.c.l.b16 %v2322
        %v2439 = vunpack.c.h.b16 %v2322
        %v2440 = vunpack.c.l.b16 %v2323
        %v2441 = vunpack.c.h.b16 %v2323
        %v2442 = vpack.c.b16 %v2382, %v2378
        %v2443 = vpack.c.b16 %v2383, %v2379
        %v2444 = vpack.c.b16 %v2384, %v2380
        %v2445 = vpack.c.b16 %v2385, %v2381
        %v2446 = vpack.c.b16 %v2390, %v2386
        %v2447 = vpack.c.b16 %v2391, %v2387
        %v2448 = vpack.c.b16 %v2392, %v2388
        %v2449 = vpack.c.b16 %v2393, %v2389
        %v2450 = vpack.c.b16 %v2398, %v2394
        %v2451 = vpack.c.b16 %v2399, %v2395
        %v2452 = vpack.c.b16 %v2400, %v2396
        %v2453 = vpack.c.b16 %v2401, %v2397
        %v2454 = vpack.c.b16 %v2406, %v2402
        %v2455 = vpack.c.b16 %v2407, %v2403
        %v2456 = vpack.c.b16 %v2408, %v2404
        %v2457 = vpack.c.b16 %v2409, %v2405
        %v2458 = vpack.c.b16 %v2414, %v2410
        %v2459 = vpack.c.b16 %v2415, %v2411
        %v2460 = vpack.c.b16 %v2416, %v2412
        %v2461 = vpack.c.b16 %v2417, %v2413
        %v2462 = vpack.c.b16 %v2422, %v2418
        %v2463 = vpack.c.b16 %v2423, %v2419
        %v2464 = vpack.c.b16 %v2424, %v2420
        %v2465 = vpack.c.b16 %v2425, %v2421
        %v2466 = vpack.c.b16 %v2430, %v2426
        %v2467 = vpack.c.b16 %v2431, %v2427
        %v2468 = vpack.c.b16 %v2432, %v2428
        %v2469 = vpack.c.b16 %v2433, %v2429
        %v2470 = vpack.c.b16 %v2438, %v2434
        %v2471 = vpack.c.b16 %v2439, %v2435
        %v2472 = vpack.c.b16 %v2440, %v2436
        %v2473 = vpack.c.b16 %v2441, %v2437
        %2506 = vmatprep.subr.bf16.mxu0 %v2443
        %2507 = vmatpush1.bf16.msra.mxu0 %v2442
        %2508 = vmatprep.subr.bf16.mxu0 %v2447
        %2509 = vmatpush1.bf16.msra.mxu0 %v2446
        %2510 = vmatprep.subr.bf16.mxu0 %v2451
        %2511 = vmatpush1.bf16.msra.mxu0 %v2450
        %2512 = vmatprep.subr.bf16.mxu0 %v2455
        %2513 = vmatpush1.bf16.msra.mxu0 %v2454
        %2514 = vmatprep.subr.bf16.mxu0 %v2459
        %2515 = vmatpush1.bf16.msra.mxu0 %v2458
        %2516 = vmatprep.subr.bf16.mxu0 %v2463
        %2517 = vmatpush1.bf16.msra.mxu0 %v2462
        %2518 = vmatprep.subr.bf16.mxu0 %v2467
        %2519 = vmatpush1.bf16.msra.mxu0 %v2466
        %2520 = vmatprep.subr.bf16.mxu0 %v2471
        %2521 = vmatpush1.bf16.msra.mxu0 %v2470
        %2522 = vmatprep.subr.bf16.mxu0 0
        %2523 = vmatpush1.bf16.msra.mxu0 0
        %2524 = vmatprep.subr.bf16.mxu0 0
        %2525 = vmatpush1.bf16.msra.mxu0 0
        %2526 = vmatprep.subr.bf16.mxu0 0
        %2527 = vmatpush1.bf16.msra.mxu0 0
        %2528 = vmatprep.subr.bf16.mxu0 0
        %2529 = vmatpush1.bf16.msra.mxu0 0
        %2530 = vmatprep.subr.bf16.mxu0 0
        %2531 = vmatpush1.bf16.msra.mxu0 0
        %2532 = vmatprep.subr.bf16.mxu0 0
        %2533 = vmatpush1.bf16.msra.mxu0 0
        %2534 = vmatprep.subr.bf16.mxu0 0
        %2535 = vmatpush1.bf16.msra.mxu0 0
        %2536 = vmatprep.subr.bf16.mxu0 0
        %2537 = vmatpush1.bf16.msra.mxu0 0
        %2538 = vmatprep.mubr.bf16.mxu0 0
        %2539 = vmatmul.mubr.bf16.gmra.mrb[0].mxu0 %v2288
        %v2540 = vpop.f32.mrb[0].mxu0
        %v2541 = vadd.f32 %v2329, %v2540
        %v2542 = vpop.f32.mrb[0].mxu0
        %v2543 = vadd.f32 %v2333, %v2542
        %v2544 = vpop.f32.mrb[0].mxu0
        %v2545 = vadd.f32 %v2329, %v2544
        %v2546 = vpop.f32.mrb[0].mxu0
        %v2547 = vadd.f32 %v2333, %v2546
        %2548 = vmatprep.mubr.bf16.mxu0 0
        %2549 = vmatmul.mubr.bf16.gmra.mrb[0].mxu0 %v2289
        %v2550 = vpop.f32.mrb[0].mxu0
        %v2551 = vadd.f32 %v2329, %v2550
        %v2552 = vpop.f32.mrb[0].mxu0
        %v2553 = vadd.f32 %v2333, %v2552
        %v2554 = vpop.f32.mrb[0].mxu0
        %v2555 = vadd.f32 %v2329, %v2554
        %v2556 = vpop.f32.mrb[0].mxu0
        %v2557 = vadd.f32 %v2333, %v2556
        %2558 = vmatprep.mubr.bf16.mxu0 0
        %2559 = vmatmul.mubr.bf16.gmra.mrb[0].mxu0 %v2290
        %v2560 = vpop.f32.mrb[0].mxu0
        %v2561 = vadd.f32 %v2329, %v2560
        %v2562 = vpop.f32.mrb[0].mxu0
        %v2563 = vadd.f32 %v2333, %v2562
        %v2564 = vpop.f32.mrb[0].mxu0
        %v2565 = vadd.f32 %v2329, %v2564
        %v2566 = vpop.f32.mrb[0].mxu0
        %v2567 = vadd.f32 %v2333, %v2566
        %2568 = vmatprep.mubr.bf16.mxu0 0
        %2569 = vmatmul.mubr.bf16.gmra.mrb[0].mxu0 %v2291
        %v2570 = vpop.f32.mrb[0].mxu0
        %v2571 = vadd.f32 %v2329, %v2570
        %v2572 = vpop.f32.mrb[0].mxu0
        %v2573 = vadd.f32 %v2333, %v2572
        %v2574 = vpop.f32.mrb[0].mxu0
        %v2575 = vadd.f32 %v2329, %v2574
        %v2576 = vpop.f32.mrb[0].mxu0
        %v2577 = vadd.f32 %v2333, %v2576
        %2578 = vdwg.mxu0
        %2579 = vmatprep.subr.bf16.mxu0 %v2445
        %2580 = vmatpush1.bf16.msra.mxu0 %v2444
        %2581 = vmatprep.subr.bf16.mxu0 %v2449
        %2582 = vmatpush1.bf16.msra.mxu0 %v2448
        %2583 = vmatprep.subr.bf16.mxu0 %v2453
        %2584 = vmatpush1.bf16.msra.mxu0 %v2452
        %2585 = vmatprep.subr.bf16.mxu0 %v2457
        %2586 = vmatpush1.bf16.msra.mxu0 %v2456
        %2587 = vmatprep.subr.bf16.mxu0 %v2461
        %2588 = vmatpush1.bf16.msra.mxu0 %v2460
        %2589 = vmatprep.subr.bf16.mxu0 %v2465
        %2590 = vmatpush1.bf16.msra.mxu0 %v2464
        %2591 = vmatprep.subr.bf16.mxu0 %v2469
        %2592 = vmatpush1.bf16.msra.mxu0 %v2468
        %2593 = vmatprep.subr.bf16.mxu0 %v2473
        %2594 = vmatpush1.bf16.msra.mxu0 %v2472
        %2595 = vmatprep.subr.bf16.mxu0 0
        %2596 = vmatpush1.bf16.msra.mxu0 0
        %2597 = vmatprep.subr.bf16.mxu0 0
        %2598 = vmatpush1.bf16.msra.mxu0 0
        %2599 = vmatprep.subr.bf16.mxu0 0
        %2600 = vmatpush1.bf16.msra.mxu0 0
        %2601 = vmatprep.subr.bf16.mxu0 0
        %2602 = vmatpush1.bf16.msra.mxu0 0
        %2603 = vmatprep.subr.bf16.mxu0 0
        %2604 = vmatpush1.bf16.msra.mxu0 0
        %2605 = vmatprep.subr.bf16.mxu0 0
        %2606 = vmatpush1.bf16.msra.mxu0 0
        %2607 = vmatprep.subr.bf16.mxu0 0
        %2608 = vmatpush1.bf16.msra.mxu0 0
        %2609 = vmatprep.subr.bf16.mxu0 0
        %2610 = vmatpush1.bf16.msra.mxu0 0
        %2611 = vmatprep.mubr.bf16.mxu0 0
        %2612 = vmatmul.mubr.bf16.gmra.mrb[0].mxu0 %v2288
        %v2613 = vpop.f32.mrb[0].mxu0
        %v2614 = vadd.f32 %v2337, %v2613
        %v2615 = vpop.f32.mrb[0].mxu0
        %v2616 = vadd.f32 %v2341, %v2615
        %v2617 = vpop.f32.mrb[0].mxu0
        %v2618 = vadd.f32 %v2337, %v2617
        %v2619 = vpop.f32.mrb[0].mxu0
        %v2620 = vadd.f32 %v2341, %v2619
        %2621 = vmatprep.mubr.bf16.mxu0 0
        %2622 = vmatmul.mubr.bf16.gmra.mrb[0].mxu0 %v2289
        %v2623 = vpop.f32.mrb[0].mxu0
        %v2624 = vadd.f32 %v2337, %v2623
        %v2625 = vpop.f32.mrb[0].mxu0
        %v2626 = vadd.f32 %v2341, %v2625
        %v2627 = vpop.f32.mrb[0].mxu0
        %v2628 = vadd.f32 %v2337, %v2627
        %v2629 = vpop.f32.mrb[0].mxu0
        %v2630 = vadd.f32 %v2341, %v2629
        %2631 = vmatprep.mubr.bf16.mxu0 0
        %2632 = vmatmul.mubr.bf16.gmra.mrb[0].mxu0 %v2290
        %v2633 = vpop.f32.mrb[0].mxu0
        %v2634 = vadd.f32 %v2337, %v2633
        %v2635 = vpop.f32.mrb[0].mxu0
        %v2636 = vadd.f32 %v2341, %v2635
        %v2637 = vpop.f32.mrb[0].mxu0
        %v2638 = vadd.f32 %v2337, %v2637
        %v2639 = vpop.f32.mrb[0].mxu0
        %v2640 = vadd.f32 %v2341, %v2639
        %2641 = vmatprep.mubr.bf16.mxu0 0
        %2642 = vmatmul.mubr.bf16.gmra.mrb[0].mxu0 %v2291
        %v2643 = vpop.f32.mrb[0].mxu0
        %v2644 = vadd.f32 %v2337, %v2643
        %v2645 = vpop.f32.mrb[0].mxu0
        %v2646 = vadd.f32 %v2341, %v2645
        %v2647 = vpop.f32.mrb[0].mxu0
        %v2648 = vadd.f32 %v2337, %v2647
        %v2649 = vpop.f32.mrb[0].mxu0
        %v2650 = vadd.f32 %v2341, %v2649
        %2651 = vdwg.mxu0
        %v2652 = vmax.f32 %v2541, 0.0
        %v2653 = vmax.f32 %v2543, 0.0
        %v2654 = vmax.f32 %v2614, 0.0
        %v2655 = vmax.f32 %v2616, 0.0
        %v2656 = vmax.f32 %v2545, 0.0
        %v2657 = vmax.f32 %v2547, 0.0
        %v2658 = vmax.f32 %v2618, 0.0
        %v2659 = vmax.f32 %v2620, 0.0
        %v2660 = vmax.f32 %v2551, 0.0
        %v2661 = vmax.f32 %v2553, 0.0
        %v2662 = vmax.f32 %v2624, 0.0
        %v2663 = vmax.f32 %v2626, 0.0
        %v2664 = vmax.f32 %v2555, 0.0
        %v2665 = vmax.f32 %v2557, 0.0
        %v2666 = vmax.f32 %v2628, 0.0
        %v2667 = vmax.f32 %v2630, 0.0
        %v2668 = vmax.f32 %v2561, 0.0
        %v2669 = vmax.f32 %v2563, 0.0
        %v2670 = vmax.f32 %v2634, 0.0
        %v2671 = vmax.f32 %v2636, 0.0
        %v2672 = vmax.f32 %v2565, 0.0
        %v2673 = vmax.f32 %v2567, 0.0
        %v2674 = vmax.f32 %v2638, 0.0
        %v2675 = vmax.f32 %v2640, 0.0
        %v2676 = vmax.f32 %v2571, 0.0
        %v2677 = vmax.f32 %v2573, 0.0
        %v2678 = vmax.f32 %v2644, 0.0
        %v2679 = vmax.f32 %v2646, 0.0
        %v2680 = vmax.f32 %v2575, 0.0
        %v2681 = vmax.f32 %v2577, 0.0
        %v2682 = vmax.f32 %v2648, 0.0
        %v2683 = vmax.f32 %v2650, 0.0
        %v2684 = vpack.c.bf16 %v2656, %v2652
        %v2685 = vpack.c.bf16 %v2657, %v2653
        %v2686 = vpack.c.bf16 %v2658, %v2654
        %v2687 = vpack.c.bf16 %v2659, %v2655
        %v2688 = vpack.c.bf16 %v2664, %v2660
        %v2689 = vpack.c.bf16 %v2665, %v2661
        %v2690 = vpack.c.bf16 %v2666, %v2662
        %v2691 = vpack.c.bf16 %v2667, %v2663
        %v2692 = vpack.c.bf16 %v2672, %v2668
        %v2693 = vpack.c.bf16 %v2673, %v2669
        %v2694 = vpack.c.bf16 %v2674, %v2670
        %v2695 = vpack.c.bf16 %v2675, %v2671
        %v2696 = vpack.c.bf16 %v2680, %v2676
        %v2697 = vpack.c.bf16 %v2681, %v2677
        %v2698 = vpack.c.bf16 %v2682, %v2678
        %v2699 = vpack.c.bf16 %v2683, %v2679
        %v2700 = vld [vmem:[%s774] sm:$0xf]
        %v2701 = vld [vmem:[%s774 + $0x4] sm:$0xf]
        %v2702 = vld [vmem:[%s774 + $0x8] sm:$0xf]
        %v2703 = vld [vmem:[%s774 + $0xc] sm:$0xf]
        %v2704 = vld [vmem:[%s774 + $0x10] sm:$0xf]
        %v2705 = vld [vmem:[%s774 + $0x14] sm:$0xf]
        %v2706 = vld [vmem:[%s774 + $0x18] sm:$0xf]
        %v2707 = vld [vmem:[%s774 + $0x1c] sm:$0xf]
        %v2708 = vld [vmem:[%s774 + $0x20] sm:$0xf]
        %v2709 = vld [vmem:[%s774 + $0x24] sm:$0xf]
        %v2710 = vld [vmem:[%s774 + $0x28] sm:$0xf]
        %v2711 = vld [vmem:[%s774 + $0x2c] sm:$0xf]
        %v2712 = vld [vmem:[%s774 + $0x30] sm:$0xf]
        %v2713 = vld [vmem:[%s774 + $0x34] sm:$0xf]
        %v2714 = vld [vmem:[%s774 + $0x38] sm:$0xf]
        %v2715 = vld [vmem:[%s774 + $0x3c] sm:$0xf]
        %v2716 = vld [vmem:[%s774 + $0x40] sm:$0xf]
        %v2717 = vld [vmem:[%s774 + $0x44] sm:$0xf]
        %v2718 = vld [vmem:[%s774 + $0x48] sm:$0xf]
        %v2719 = vld [vmem:[%s774 + $0x4c] sm:$0xf]
        %v2720 = vld [vmem:[%s774 + $0x50] sm:$0xf]
        %v2721 = vld [vmem:[%s774 + $0x54] sm:$0xf]
        %v2722 = vld [vmem:[%s774 + $0x58] sm:$0xf]
        %v2723 = vld [vmem:[%s774 + $0x5c] sm:$0xf]
        %v2724 = vld [vmem:[%s774 + $0x60] sm:$0xf]
        %v2725 = vld [vmem:[%s774 + $0x64] sm:$0xf]
        %v2726 = vld [vmem:[%s774 + $0x68] sm:$0xf]
        %v2727 = vld [vmem:[%s774 + $0x6c] sm:$0xf]
        %v2728 = vld [vmem:[%s774 + $0x70] sm:$0xf]
        %v2729 = vld [vmem:[%s774 + $0x74] sm:$0xf]
        %v2730 = vld [vmem:[%s774 + $0x78] sm:$0xf]
        %v2731 = vld [vmem:[%s774 + $0x7c] sm:$0xf]
        %v2732 = vld [vmem:[%s774 + $0x80] sm:$0xf]
        %v2733 = vld [vmem:[%s774 + $0x84] sm:$0xf]
        %v2734 = vld [vmem:[%s774 + $0x88] sm:$0xf]
        %v2735 = vld [vmem:[%s774 + $0x8c] sm:$0xf]
        %v2736 = vld [vmem:[%s774 + $0x90] sm:$0xf]
        %v2737 = vld [vmem:[%s774 + $0x94] sm:$0xf]
        %v2738 = vld [vmem:[%s774 + $0x98] sm:$0xf]
        %v2739 = vld [vmem:[%s774 + $0x9c] sm:$0xf]
        %v2740 = vld [vmem:[%s774 + $0xa0] sm:$0xf]
        %v2741 = vld [vmem:[%s774 + $0xa4] sm:$0xf]
        %v2742 = vld [vmem:[%s774 + $0xa8] sm:$0xf]
        %v2743 = vld [vmem:[%s774 + $0xac] sm:$0xf]
        %v2744 = vld [vmem:[%s774 + $0xb0] sm:$0xf]
        %v2745 = vld [vmem:[%s774 + $0xb4] sm:$0xf]
        %v2746 = vld [vmem:[%s774 + $0xb8] sm:$0xf]
        %v2747 = vld [vmem:[%s774 + $0xbc] sm:$0xf]
        %v2748 = vld [vmem:[%s774 + $0xc0] sm:$0xf]
        %v2749 = vld [vmem:[%s774 + $0xc4] sm:$0xf]
        %v2750 = vld [vmem:[%s774 + $0xc8] sm:$0xf]
        %v2751 = vld [vmem:[%s774 + $0xcc] sm:$0xf]
        %v2752 = vld [vmem:[%s774 + $0xd0] sm:$0xf]
        %v2753 = vld [vmem:[%s774 + $0xd4] sm:$0xf]
        %v2754 = vld [vmem:[%s774 + $0xd8] sm:$0xf]
        %v2755 = vld [vmem:[%s774 + $0xdc] sm:$0xf]
        %v2756 = vld [vmem:[%s774 + $0xe0] sm:$0xf]
        %v2757 = vld [vmem:[%s774 + $0xe4] sm:$0xf]
        %v2758 = vld [vmem:[%s774 + $0xe8] sm:$0xf]
        %v2759 = vld [vmem:[%s774 + $0xec] sm:$0xf]
        %v2760 = vld [vmem:[%s774 + $0xf0] sm:$0xf]
        %v2761 = vld [vmem:[%s774 + $0xf4] sm:$0xf]
        %v2762 = vld [vmem:[%s774 + $0xf8] sm:$0xf]
        %v2763 = vld [vmem:[%s774 + $0xfc] sm:$0xf]
        %v2764 = vld [vmem:[%s777] sm:$0x1]
        %v2766 = vlaneseq
        %v2767 = vshrl.u32 %v2766, 7
        %v2768 = vsub.s32 0, %v2767
        %v2769 = vrot.slane %v2764, %v2768
        %v2835 = vunpack.c.l.b16 %v2700
        %v2836 = vunpack.c.l.b16 %v2701
        %v2837 = vunpack.c.l.b16 %v2702
        %v2838 = vunpack.c.l.b16 %v2703
        %v2839 = vunpack.c.l.b16 %v2704
        %v2840 = vunpack.c.l.b16 %v2705
        %v2841 = vunpack.c.l.b16 %v2706
        %v2842 = vunpack.c.l.b16 %v2707
        %v2843 = vunpack.c.l.b16 %v2708
        %v2844 = vunpack.c.l.b16 %v2709
        %v2845 = vunpack.c.l.b16 %v2710
        %v2846 = vunpack.c.l.b16 %v2711
        %v2847 = vunpack.c.l.b16 %v2712
        %v2848 = vunpack.c.l.b16 %v2713
        %v2849 = vunpack.c.l.b16 %v2714
        %v2850 = vunpack.c.l.b16 %v2715
        %v2851 = vunpack.c.l.b16 %v2716
        %v2852 = vunpack.c.l.b16 %v2717
        %v2853 = vunpack.c.l.b16 %v2718
        %v2854 = vunpack.c.l.b16 %v2719
        %v2855 = vunpack.c.l.b16 %v2720
        %v2856 = vunpack.c.l.b16 %v2721
        %v2857 = vunpack.c.l.b16 %v2722
        %v2858 = vunpack.c.l.b16 %v2723
        %v2859 = vunpack.c.l.b16 %v2724
        %v2860 = vunpack.c.l.b16 %v2725
        %v2861 = vunpack.c.l.b16 %v2726
        %v2862 = vunpack.c.l.b16 %v2727
        %v2863 = vunpack.c.l.b16 %v2728
        %v2864 = vunpack.c.l.b16 %v2729
        %v2865 = vunpack.c.l.b16 %v2730
        %v2866 = vunpack.c.l.b16 %v2731
        %v2867 = vunpack.c.l.b16 %v2732
        %v2868 = vunpack.c.l.b16 %v2733
        %v2869 = vunpack.c.l.b16 %v2734
        %v2870 = vunpack.c.l.b16 %v2735
        %v2871 = vunpack.c.l.b16 %v2736
        %v2872 = vunpack.c.l.b16 %v2737
        %v2873 = vunpack.c.l.b16 %v2738
        %v2874 = vunpack.c.l.b16 %v2739
        %v2875 = vunpack.c.l.b16 %v2740
        %v2876 = vunpack.c.l.b16 %v2741
        %v2877 = vunpack.c.l.b16 %v2742
        %v2878 = vunpack.c.l.b16 %v2743
        %v2879 = vunpack.c.l.b16 %v2744
        %v2880 = vunpack.c.l.b16 %v2745
        %v2881 = vunpack.c.l.b16 %v2746
        %v2882 = vunpack.c.l.b16 %v2747
        %v2883 = vunpack.c.l.b16 %v2748
        %v2884 = vunpack.c.l.b16 %v2749
        %v2885 = vunpack.c.l.b16 %v2750
        %v2886 = vunpack.c.l.b16 %v2751
        %v2887 = vunpack.c.l.b16 %v2752
        %v2888 = vunpack.c.l.b16 %v2753
        %v2889 = vunpack.c.l.b16 %v2754
        %v2890 = vunpack.c.l.b16 %v2755
        %v2891 = vunpack.c.l.b16 %v2756
        %v2892 = vunpack.c.l.b16 %v2757
        %v2893 = vunpack.c.l.b16 %v2758
        %v2894 = vunpack.c.l.b16 %v2759
        %v2895 = vunpack.c.l.b16 %v2760
        %v2896 = vunpack.c.l.b16 %v2761
        %v2897 = vunpack.c.l.b16 %v2762
        %v2898 = vunpack.c.l.b16 %v2763
        %v2899 = vpack.c.b16 %v2836, %v2835
        %v2900 = vpack.c.b16 %v2838, %v2837
        %v2901 = vpack.c.b16 %v2840, %v2839
        %v2902 = vpack.c.b16 %v2842, %v2841
        %v2903 = vpack.c.b16 %v2844, %v2843
        %v2904 = vpack.c.b16 %v2846, %v2845
        %v2905 = vpack.c.b16 %v2848, %v2847
        %v2906 = vpack.c.b16 %v2850, %v2849
        %v2907 = vpack.c.b16 %v2852, %v2851
        %v2908 = vpack.c.b16 %v2854, %v2853
        %v2909 = vpack.c.b16 %v2856, %v2855
        %v2910 = vpack.c.b16 %v2858, %v2857
        %v2911 = vpack.c.b16 %v2860, %v2859
        %v2912 = vpack.c.b16 %v2862, %v2861
        %v2913 = vpack.c.b16 %v2864, %v2863
        %v2914 = vpack.c.b16 %v2866, %v2865
        %v2915 = vpack.c.b16 %v2868, %v2867
        %v2916 = vpack.c.b16 %v2870, %v2869
        %v2917 = vpack.c.b16 %v2872, %v2871
        %v2918 = vpack.c.b16 %v2874, %v2873
        %v2919 = vpack.c.b16 %v2876, %v2875
        %v2920 = vpack.c.b16 %v2878, %v2877
        %v2921 = vpack.c.b16 %v2880, %v2879
        %v2922 = vpack.c.b16 %v2882, %v2881
        %v2923 = vpack.c.b16 %v2884, %v2883
        %v2924 = vpack.c.b16 %v2886, %v2885
        %v2925 = vpack.c.b16 %v2888, %v2887
        %v2926 = vpack.c.b16 %v2890, %v2889
        %v2927 = vpack.c.b16 %v2892, %v2891
        %v2928 = vpack.c.b16 %v2894, %v2893
        %v2929 = vpack.c.b16 %v2896, %v2895
        %v2930 = vpack.c.b16 %v2898, %v2897
        %2963 = vmatprep.subr.bf16.mxu0 0
        %2964 = vmatpush1.bf16.msra.mxu0 %v2899
        %2965 = vmatprep.subr.bf16.mxu0 0
        %2966 = vmatpush1.bf16.msra.mxu0 %v2900
        %2967 = vmatprep.subr.bf16.mxu0 0
        %2968 = vmatpush1.bf16.msra.mxu0 %v2901
        %2969 = vmatprep.subr.bf16.mxu0 0
        %2970 = vmatpush1.bf16.msra.mxu0 %v2902
        %2971 = vmatprep.subr.bf16.mxu0 0
        %2972 = vmatpush1.bf16.msra.mxu0 %v2903
        %2973 = vmatprep.subr.bf16.mxu0 0
        %2974 = vmatpush1.bf16.msra.mxu0 %v2904
        %2975 = vmatprep.subr.bf16.mxu0 0
        %2976 = vmatpush1.bf16.msra.mxu0 %v2905
        %2977 = vmatprep.subr.bf16.mxu0 0
        %2978 = vmatpush1.bf16.msra.mxu0 %v2906
        %2979 = vmatprep.subr.bf16.mxu0 0
        %2980 = vmatpush1.bf16.msra.mxu0 %v2907
        %2981 = vmatprep.subr.bf16.mxu0 0
        %2982 = vmatpush1.bf16.msra.mxu0 %v2908
        %2983 = vmatprep.subr.bf16.mxu0 0
        %2984 = vmatpush1.bf16.msra.mxu0 %v2909
        %2985 = vmatprep.subr.bf16.mxu0 0
        %2986 = vmatpush1.bf16.msra.mxu0 %v2910
        %2987 = vmatprep.subr.bf16.mxu0 0
        %2988 = vmatpush1.bf16.msra.mxu0 %v2911
        %2989 = vmatprep.subr.bf16.mxu0 0
        %2990 = vmatpush1.bf16.msra.mxu0 %v2912
        %2991 = vmatprep.subr.bf16.mxu0 0
        %2992 = vmatpush1.bf16.msra.mxu0 %v2913
        %2993 = vmatprep.subr.bf16.mxu0 0
        %2994 = vmatpush1.bf16.msra.mxu0 %v2914
        %2995 = vmatprep.mubr.bf16.mxu0 %v2685
        %2996 = vmatmul.mubr.bf16.gmra.mrb[0].mxu0 %v2684
        %v2997 = vpop.f32.mrb[0].mxu0
        %v2998 = vadd.f32 %v2769, %v2997
        %v2999 = vpop.f32.mrb[0].mxu0
        %v3000 = vpop.f32.mrb[0].mxu0
        %v3001 = vadd.f32 %v2769, %v3000
        %v3002 = vpop.f32.mrb[0].mxu0
        %3003 = vmatprep.mubr.bf16.mxu0 %v2689
        %3004 = vmatmul.mubr.bf16.gmra.mrb[0].mxu0 %v2688
        %v3005 = vpop.f32.mrb[0].mxu0
        %v3006 = vadd.f32 %v2769, %v3005
        %v3007 = vpop.f32.mrb[0].mxu0
        %v3008 = vpop.f32.mrb[0].mxu0
        %v3009 = vadd.f32 %v2769, %v3008
        %v3010 = vpop.f32.mrb[0].mxu0
        %3011 = vmatprep.mubr.bf16.mxu0 %v2693
        %3012 = vmatmul.mubr.bf16.gmra.mrb[0].mxu0 %v2692
        %v3013 = vpop.f32.mrb[0].mxu0
        %v3014 = vadd.f32 %v2769, %v3013
        %v3015 = vpop.f32.mrb[0].mxu0
        %v3016 = vpop.f32.mrb[0].mxu0
        %v3017 = vadd.f32 %v2769, %v3016
        %v3018 = vpop.f32.mrb[0].mxu0
        %3019 = vmatprep.mubr.bf16.mxu0 %v2697
        %3020 = vmatmul.mubr.bf16.gmra.mrb[0].mxu0 %v2696
        %v3021 = vpop.f32.mrb[0].mxu0
        %v3022 = vadd.f32 %v2769, %v3021
        %v3023 = vpop.f32.mrb[0].mxu0
        %v3024 = vpop.f32.mrb[0].mxu0
        %v3025 = vadd.f32 %v2769, %v3024
        %v3026 = vpop.f32.mrb[0].mxu0
        %3027 = vdwg.mxu0
        %3028 = vmatprep.subr.bf16.mxu0 0
        %3029 = vmatpush1.bf16.msra.mxu0 %v2915
        %3030 = vmatprep.subr.bf16.mxu0 0
        %3031 = vmatpush1.bf16.msra.mxu0 %v2916
        %3032 = vmatprep.subr.bf16.mxu0 0
        %3033 = vmatpush1.bf16.msra.mxu0 %v2917
        %3034 = vmatprep.subr.bf16.mxu0 0
        %3035 = vmatpush1.bf16.msra.mxu0 %v2918
        %3036 = vmatprep.subr.bf16.mxu0 0
        %3037 = vmatpush1.bf16.msra.mxu0 %v2919
        %3038 = vmatprep.subr.bf16.mxu0 0
        %3039 = vmatpush1.bf16.msra.mxu0 %v2920
        %3040 = vmatprep.subr.bf16.mxu0 0
        %3041 = vmatpush1.bf16.msra.mxu0 %v2921
        %3042 = vmatprep.subr.bf16.mxu0 0
        %3043 = vmatpush1.bf16.msra.mxu0 %v2922
        %3044 = vmatprep.subr.bf16.mxu0 0
        %3045 = vmatpush1.bf16.msra.mxu0 %v2923
        %3046 = vmatprep.subr.bf16.mxu0 0
        %3047 = vmatpush1.bf16.msra.mxu0 %v2924
        %3048 = vmatprep.subr.bf16.mxu0 0
        %3049 = vmatpush1.bf16.msra.mxu0 %v2925
        %3050 = vmatprep.subr.bf16.mxu0 0
        %3051 = vmatpush1.bf16.msra.mxu0 %v2926
        %3052 = vmatprep.subr.bf16.mxu0 0
        %3053 = vmatpush1.bf16.msra.mxu0 %v2927
        %3054 = vmatprep.subr.bf16.mxu0 0
        %3055 = vmatpush1.bf16.msra.mxu0 %v2928
        %3056 = vmatprep.subr.bf16.mxu0 0
        %3057 = vmatpush1.bf16.msra.mxu0 %v2929
        %3058 = vmatprep.subr.bf16.mxu0 0
        %3059 = vmatpush1.bf16.msra.mxu0 %v2930
        %3060 = vmatprep.mubr.bf16.mxu0 %v2687
        %3061 = vmatmul.mubr.bf16.gmra.mrb[0].mxu0 %v2686
        %v3062 = vpop.f32.mrb[0].mxu0
        %v3063 = vadd.f32 %v2998, %v3062
        %v3064 = vpop.f32.mrb[0].mxu0
        %v3065 = vpop.f32.mrb[0].mxu0
        %v3066 = vadd.f32 %v3001, %v3065
        %v3067 = vpop.f32.mrb[0].mxu0
        %3068 = vmatprep.mubr.bf16.mxu0 %v2691
        %3069 = vmatmul.mubr.bf16.gmra.mrb[0].mxu0 %v2690
        %v3070 = vpop.f32.mrb[0].mxu0
        %v3071 = vadd.f32 %v3006, %v3070
        %v3072 = vpop.f32.mrb[0].mxu0
        %v3073 = vpop.f32.mrb[0].mxu0
        %v3074 = vadd.f32 %v3009, %v3073
        %v3075 = vpop.f32.mrb[0].mxu0
        %3076 = vmatprep.mubr.bf16.mxu0 %v2695
        %3077 = vmatmul.mubr.bf16.gmra.mrb[0].mxu0 %v2694
        %v3078 = vpop.f32.mrb[0].mxu0
        %v3079 = vadd.f32 %v3014, %v3078
        %v3080 = vpop.f32.mrb[0].mxu0
        %v3081 = vpop.f32.mrb[0].mxu0
        %v3082 = vadd.f32 %v3017, %v3081
        %v3083 = vpop.f32.mrb[0].mxu0
        %3084 = vmatprep.mubr.bf16.mxu0 %v2699
        %3085 = vmatmul.mubr.bf16.gmra.mrb[0].mxu0 %v2698
        %v3086 = vpop.f32.mrb[0].mxu0
        %v3087 = vadd.f32 %v3022, %v3086
        %v3088 = vpop.f32.mrb[0].mxu0
        %v3089 = vpop.f32.mrb[0].mxu0
        %v3090 = vadd.f32 %v3025, %v3089
        %v3091 = vpop.f32.mrb[0].mxu0
        %3092 = vdwg.mxu0
        %v3093 = vadd.f32 %v2280, %v3063
        %v3094 = vadd.f32 %v2281, %v3066
        %v3095 = vadd.f32 %v2282, %v3071
        %v3096 = vadd.f32 %v2283, %v3074
        %v3097 = vadd.f32 %v2284, %v3079
        %v3098 = vadd.f32 %v2285, %v3082
        %v3099 = vadd.f32 %v2286, %v3087
        %v3100 = vadd.f32 %v2287, %v3090
        %3101 = vst [vmem:[#allocation2] sm:$0xff] %v3093
        %3102 = vst [vmem:[#allocation2 + $0x8] sm:$0xff] %v3094
        %3103 = vst [vmem:[#allocation2 + $0x10] sm:$0xff] %v3095
        %3104 = vst [vmem:[#allocation2 + $0x18] sm:$0xff] %v3096
        %3105 = vst [vmem:[#allocation2 + $0x20] sm:$0xff] %v3097
        %3106 = vst [vmem:[#allocation2 + $0x28] sm:$0xff] %v3098
        %3107 = vst [vmem:[#allocation2 + $0x30] sm:$0xff] %v3099
        %3108 = vst [vmem:[#allocation2 + $0x38] sm:$0xff] %v3100
        %p3109 = scmp.eq.s32.totalorder %s36, 2
        // Predicated region
        $region97: #{ladder_forward.1} parent=87 // pred_check
          %p3110 = pneg %p3109
        $region98: #{ladder_forward.1} parent=87 // pred_check_branch
          %3112 = sbr.rel (%p3110) target = $region100
        $region99: #{ladder_forward.1} parent=87 // pred_region
          %v3113 = vpack.c.bf16 %v3094, %v3093
          %v3114 = vpack.c.bf16 %v3096, %v3095
          %v3115 = vpack.c.bf16 %v3098, %v3097
          %v3116 = vpack.c.bf16 %v3100, %v3099
          %v3117 = vld [vmem:[%s5] sm:$0xf]
          %v3118 = vld [vmem:[%s5 + $0x4] sm:$0xf]
          %v3119 = vld [vmem:[%s5 + $0x8] sm:$0xf]
          %v3120 = vld [vmem:[%s5 + $0xc] sm:$0xf]
          %v3121 = vld [vmem:[%s5 + $0x10] sm:$0xf]
          %v3122 = vld [vmem:[%s5 + $0x14] sm:$0xf]
          %v3123 = vld [vmem:[%s5 + $0x18] sm:$0xf]
          %v3124 = vld [vmem:[%s5 + $0x1c] sm:$0xf]
          %v3125 = vld [vmem:[%s5 + $0x20] sm:$0xf]
          %v3126 = vld [vmem:[%s5 + $0x24] sm:$0xf]
          %v3127 = vld [vmem:[%s5 + $0x28] sm:$0xf]
          %v3128 = vld [vmem:[%s5 + $0x2c] sm:$0xf]
          %v3129 = vld [vmem:[%s5 + $0x30] sm:$0xf]
          %v3130 = vld [vmem:[%s5 + $0x34] sm:$0xf]
          %v3131 = vld [vmem:[%s5 + $0x38] sm:$0xf]
          %v3132 = vld [vmem:[%s5 + $0x3c] sm:$0xf]
          %v3133 = vld [vmem:[%s6] sm:$0x1]
          %v3135 = vlaneseq
          %v3136 = vshrl.u32 %v3135, 7
          %v3137 = vsub.s32 0, %v3136
          %v3138 = vrot.slane %v3133, %v3137
          %v3156 = vunpack.c.l.b16 %v3117
          %v3157 = vunpack.c.l.b16 %v3118
          %v3158 = vunpack.c.l.b16 %v3119
          %v3159 = vunpack.c.l.b16 %v3120
          %v3160 = vunpack.c.l.b16 %v3121
          %v3161 = vunpack.c.l.b16 %v3122
          %v3162 = vunpack.c.l.b16 %v3123
          %v3163 = vunpack.c.l.b16 %v3124
          %v3164 = vunpack.c.l.b16 %v3125
          %v3165 = vunpack.c.l.b16 %v3126
          %v3166 = vunpack.c.l.b16 %v3127
          %v3167 = vunpack.c.l.b16 %v3128
          %v3168 = vunpack.c.l.b16 %v3129
          %v3169 = vunpack.c.l.b16 %v3130
          %v3170 = vunpack.c.l.b16 %v3131
          %v3171 = vunpack.c.l.b16 %v3132
          %v3172 = vpack.c.b16 %v3157, %v3156
          %v3173 = vpack.c.b16 %v3159, %v3158
          %v3174 = vpack.c.b16 %v3161, %v3160
          %v3175 = vpack.c.b16 %v3163, %v3162
          %v3176 = vpack.c.b16 %v3165, %v3164
          %v3177 = vpack.c.b16 %v3167, %v3166
          %v3178 = vpack.c.b16 %v3169, %v3168
          %v3179 = vpack.c.b16 %v3171, %v3170
          %3188 = vmatprep.subr.bf16.mxu0 0
          %3189 = vmatpush1.bf16.msra.mxu0 %v3172
          %3190 = vmatprep.subr.bf16.mxu0 0
          %3191 = vmatpush1.bf16.msra.mxu0 %v3173
          %3192 = vmatprep.subr.bf16.mxu0 0
          %3193 = vmatpush1.bf16.msra.mxu0 %v3174
          %3194 = vmatprep.subr.bf16.mxu0 0
          %3195 = vmatpush1.bf16.msra.mxu0 %v3175
          %3196 = vmatprep.subr.bf16.mxu0 0
          %3197 = vmatpush1.bf16.msra.mxu0 %v3176
          %3198 = vmatprep.subr.bf16.mxu0 0
          %3199 = vmatpush1.bf16.msra.mxu0 %v3177
          %3200 = vmatprep.subr.bf16.mxu0 0
          %3201 = vmatpush1.bf16.msra.mxu0 %v3178
          %3202 = vmatprep.subr.bf16.mxu0 0
          %3203 = vmatpush1.bf16.msra.mxu0 %v3179
          %3204 = vmatprep.subr.bf16.mxu0 0
          %3205 = vmatpush1.bf16.msra.mxu0 0
          %3206 = vmatprep.subr.bf16.mxu0 0
          %3207 = vmatpush1.bf16.msra.mxu0 0
          %3208 = vmatprep.subr.bf16.mxu0 0
          %3209 = vmatpush1.bf16.msra.mxu0 0
          %3210 = vmatprep.subr.bf16.mxu0 0
          %3211 = vmatpush1.bf16.msra.mxu0 0
          %3212 = vmatprep.subr.bf16.mxu0 0
          %3213 = vmatpush1.bf16.msra.mxu0 0
          %3214 = vmatprep.subr.bf16.mxu0 0
          %3215 = vmatpush1.bf16.msra.mxu0 0
          %3216 = vmatprep.subr.bf16.mxu0 0
          %3217 = vmatpush1.bf16.msra.mxu0 0
          %3218 = vmatprep.subr.bf16.mxu0 0
          %3219 = vmatpush1.bf16.msra.mxu0 0
          %3220 = vmatprep.mubr.bf16.mxu0 0
          %3221 = vmatmul.mubr.bf16.gmra.mrb[0].mxu0 %v3113
          %v3222 = vpop.f32.mrb[0].mxu0
          %v3223 = vadd.f32 %v3138, %v3222
          %v3224 = vpop.f32.mrb[0].mxu0
          %v3225 = vpop.f32.mrb[0].mxu0
          %v3226 = vadd.f32 %v3138, %v3225
          %v3227 = vpop.f32.mrb[0].mxu0
          %3228 = vmatprep.mubr.bf16.mxu0 0
          %3229 = vmatmul.mubr.bf16.gmra.mrb[0].mxu0 %v3114
          %v3230 = vpop.f32.mrb[0].mxu0
          %v3231 = vadd.f32 %v3138, %v3230
          %v3232 = vpop.f32.mrb[0].mxu0
          %v3233 = vpop.f32.mrb[0].mxu0
          %v3234 = vadd.f32 %v3138, %v3233
          %v3235 = vpop.f32.mrb[0].mxu0
          %3236 = vmatprep.mubr.bf16.mxu0 0
          %3237 = vmatmul.mubr.bf16.gmra.mrb[0].mxu0 %v3115
          %v3238 = vpop.f32.mrb[0].mxu0
          %v3239 = vadd.f32 %v3138, %v3238
          %v3240 = vpop.f32.mrb[0].mxu0
          %v3241 = vpop.f32.mrb[0].mxu0
          %v3242 = vadd.f32 %v3138, %v3241
          %v3243 = vpop.f32.mrb[0].mxu0
          %3244 = vmatprep.mubr.bf16.mxu0 0
          %3245 = vmatmul.mubr.bf16.gmra.mrb[0].mxu0 %v3116
          %v3246 = vpop.f32.mrb[0].mxu0
          %v3247 = vadd.f32 %v3138, %v3246
          %v3248 = vpop.f32.mrb[0].mxu0
          %v3249 = vpop.f32.mrb[0].mxu0
          %v3250 = vadd.f32 %v3138, %v3249
          %v3251 = vpop.f32.mrb[0].mxu0
          %3252 = vdwg.mxu0
          %v3253 = vld [vmem:[%s723] sm:$0xff]
          %v3254 = vld [vmem:[%s723 + $0x8] sm:$0xff]
          %v3255 = vld [vmem:[%s723 + $0x10] sm:$0xff]
          %v3256 = vld [vmem:[%s723 + $0x18] sm:$0xff]
          %v3257 = vld [vmem:[%s723 + $0x20] sm:$0xff]
          %v3258 = vld [vmem:[%s723 + $0x28] sm:$0xff]
          %v3259 = vld [vmem:[%s723 + $0x30] sm:$0xff]
          %v3260 = vld [vmem:[%s723 + $0x38] sm:$0xff]
          %v3261 = vadd.f32 %v3223, %v3253
          %v3262 = vadd.f32 %v3226, %v3254
          %v3263 = vadd.f32 %v3231, %v3255
          %v3264 = vadd.f32 %v3234, %v3256
          %v3265 = vadd.f32 %v3239, %v3257
          %v3266 = vadd.f32 %v3242, %v3258
          %v3267 = vadd.f32 %v3247, %v3259
          %v3268 = vadd.f32 %v3250, %v3260
          %3269 = vst [vmem:[%s718] sm:$0xff] %v3261
          %3270 = vst [vmem:[%s718 + $0x8] sm:$0xff] %v3262
          %3271 = vst [vmem:[%s718 + $0x10] sm:$0xff] %v3263
          %3272 = vst [vmem:[%s718 + $0x18] sm:$0xff] %v3264
          %3273 = vst [vmem:[%s718 + $0x20] sm:$0xff] %v3265
          %3274 = vst [vmem:[%s718 + $0x28] sm:$0xff] %v3266
          %3275 = vst [vmem:[%s718 + $0x30] sm:$0xff] %v3267
          %3276 = vst [vmem:[%s718 + $0x38] sm:$0xff] %v3268
        $region100: #{ladder_forward.1} parent=87 // pred_fallthru
          _
        %s3277 = sand.u32 %s473, 1
        %s3278 = scalar_lea.sflag [#allocation5], %s3277
        %s3279 = sand.u32 %s473, 1
        %s3280 = smul.addr %s3279, 64
        %s3281 = scalar_lea.vmem [#allocation4], %s3280
        // Predicated region
        $region101: #{ladder_forward.1} parent=87 // pred_check
          %p3282 = pneg %p483
        $region102: #{ladder_forward.1} parent=87 // pred_check_branch
          %3284 = sbr.rel (%p3282) target = $region104
        $region103: #{ladder_forward.1} parent=87 // pred_region
          %s3285 = smul.u32 8, %s35
          %s3287 = ssub.s32 1024, 1024
          %3288 = vsyncadd %s3278, %s3287
          %s3289 = smul.addr %s3285, 128
          %s3290 = scalar_lea.hbm %s17, %s3289
          %s3291 = sshll.u32 %s3281, 4
          %s3292 = int_to_ptr.vmem [resolvable:$true] %s3291
          %3297 = dma.vmem_to_hbm [thread:$0]  %s3292, 1024, %s3290, %s3278, 128, 128, 8
        $region104: #{ladder_forward.1} parent=87 // pred_fallthru
          _
      $region88: #{ladder_forward.1} parent=5 // pred_fallthru
        _
      %p3298 = scmp.le.s32.totalorder 2, %s26
      // Predicated region
      $region105: #{ladder_forward.1} parent=5 // pred_check
        %p3299 = pneg %p3298
      $region106: #{ladder_forward.1} parent=5 // pred_check_branch
        %3301 = sbr.rel (%p3299) target = $region108
      $region107: #{ladder_forward.1} parent=5 // pred_region
        %s3302 = ssub.s32 %s26, 2
        // Predicated region
        $region109: #{ladder_forward.1} parent=107 // pred_check
          %p3303 = pneg %p489
        $region110: #{ladder_forward.1} parent=107 // pred_check_branch
          %3305 = sbr.rel (%p3303) target = $region112
        $region111: #{ladder_forward.1} parent=107 // pred_region
          %s3306 = sand.u32 %s474, 1
          %s3307 = scalar_lea.sflag [#allocation5], %s3306
          %s3308 = sand.u32 %s474, 1
          %s3309 = smul.addr %s3308, 64
          %s3310 = scalar_lea.vmem [#allocation4], %s3309
          %3311 = dma.done %s3307, 1024
        $region112: #{ladder_forward.1} parent=107 // pred_fallthru
          _
      $region108: #{ladder_forward.1} parent=5 // pred_fallthru
        _
    $region6: #{ladder_forward.1} parent=1 // loop_footer
      %s30 = sadd.s32 1, %s26
    $region7: #{ladder_forward.1} parent=1 // loop_footer_branch
      %25 = sbr.rel target = $region3
    $region8: #{ladder_forward.1} parent=1 // loop_exit
      _
    %3312 = vsyncpa [#allocation5], 1
    %s3313 = scalar_lea.sflag [#allocation5], 1
    %3314 = vsyncpa %s3313, 1

</llo_original>
